<compile_context>
chip_gen: v7x
topology: tpu7x:2x2x1
jax: 0.10.0
libtpu: 0.0.40
codegen_flags: <defaults>
</compile_context>

<pallas_src>
import functools

import jax
import jax.numpy as jnp
from jax import lax
from jax.experimental import pallas as pl
from jax.experimental.pallas import tpu as pltpu  # noqa: F401  (imported for TPU backend use)


# ----------------------------------------------------------------------------
# Fused bidirectional LSTM recurrence (single layer), single Pallas invocation.
#
#   gx_ref : (seq, 2, batch, 4*nhid)  precomputed gate pre-activations
#            gx[t, 0] = x[t]        @ W_ih_fwd^T + b_fwd
#            gx[t, 1] = x[seq-1-t]  @ W_ih_bwd^T + b_bwd   (time already reversed)
#   whh_ref: (2, nhid, 4*nhid)       recurrent weights, pre-transposed
#   y_ref  : (seq, 2, batch, nhid)   per-step hidden (bwd rows are in reversed time)
#   hN_ref : (2, batch, nhid)        final hidden per direction
# ----------------------------------------------------------------------------
def _bilstm_kernel(gx_ref, whh_ref, y_ref, hN_ref):
    seq = gx_ref.shape[0]
    ndir, batch = gx_ref.shape[1], gx_ref.shape[2]
    nh = whh_ref.shape[1]

    w_hh = whh_ref[...]  # load once; stays in vregs/VMEM for the whole loop

    h0 = jnp.zeros((ndir, batch, nh), jnp.float32)
    c0 = jnp.zeros((ndir, batch, nh), jnp.float32)

    def step(t, carry):
        h_prev, c_prev = carry
        gx = gx_ref[t]  # (2, batch, 4*nhid)  -- only recurrent matmul remains below
        gates = gx + jnp.einsum(
            "dbh,dhg->dbg", h_prev, w_hh, preferred_element_type=jnp.float32
        )
        # PyTorch gate order [i, f, g, o]
        i_g = jax.nn.sigmoid(gates[..., 0 * nh:1 * nh])
        f_g = jax.nn.sigmoid(gates[..., 1 * nh:2 * nh])
        g_g = jnp.tanh(gates[..., 2 * nh:3 * nh])
        o_g = jax.nn.sigmoid(gates[..., 3 * nh:4 * nh])

        c_new = f_g * c_prev + i_g * g_g
        h_new = o_g * jnp.tanh(c_new)

        y_ref[t] = h_new
        return (h_new, c_new)

    h_fin, _ = lax.fori_loop(0, seq, step, (h0, c0), unroll=True)
    hN_ref[...] = h_fin  # written once, after the recurrence


def bilstm_recurrence(gx, w_hh):
    """gx: (seq, 2, batch, 4*nhid) f32; w_hh: (2, nhid, 4*nhid) f32."""
    seq, ndir, batch, _ = gx.shape
    nhid = w_hh.shape[1]
    return pl.pallas_call(
        _bilstm_kernel,
        out_shape=(
            jax.ShapeDtypeStruct((seq, ndir, batch, nhid), jnp.float32),
            jax.ShapeDtypeStruct((ndir, batch, nhid), jnp.float32),
        ),
        in_specs=[
            pl.BlockSpec(gx.shape, lambda: (0, 0, 0, 0)),
            pl.BlockSpec(w_hh.shape, lambda: (0, 0, 0)),
        ],
        out_specs=(
            pl.BlockSpec((seq, ndir, batch, nhid), lambda: (0, 0, 0, 0)),
            pl.BlockSpec((ndir, batch, nhid), lambda: (0, 0, 0)),
        ),
    )(gx, w_hh)


# ----------------------------------------------------------------------------
# Parameters (weights stored pre-transposed for lane-dense 4*nhid contractions).
# ----------------------------------------------------------------------------
def init_params(key, ntoken, ninp, nhid, nlayers):
    params = {}
    k_emb, key = jax.random.split(key)
    emb = jax.random.normal(k_emb, (ntoken + 1, ninp), jnp.float32)
    emb = emb.at[ntoken].set(0.0)  # padding_idx row zeroed
    params["embedding"] = emb

    bound = 1.0 / (nhid ** 0.5)
    for layer in range(nlayers):
        in_size = ninp if layer == 0 else 2 * nhid
        w_ih, w_hh, bias = [], [], []
        for _direction in range(2):  # 0 = fwd, 1 = bwd
            k1, k2, k3, k4, key = jax.random.split(key, 5)
            # stored already transposed: (in_size, 4*nhid) / (nhid, 4*nhid)
            w_ih.append(
                jax.random.uniform(k1, (in_size, 4 * nhid), jnp.float32, -bound, bound)
            )
            w_hh.append(
                jax.random.uniform(k2, (nhid, 4 * nhid), jnp.float32, -bound, bound)
            )
            b_ih = jax.random.uniform(k3, (4 * nhid,), jnp.float32, -bound, bound)
            b_hh = jax.random.uniform(k4, (4 * nhid,), jnp.float32, -bound, bound)
            bias.append(b_ih + b_hh)
        params[f"w_ih_l{layer}"] = jnp.stack(w_ih)                 # (2, in_size, 4*nhid)
        params[f"w_hh_l{layer}"] = jnp.stack(w_hh)                 # (2, nhid, 4*nhid)
        params[f"b_l{layer}"] = jnp.stack(bias)[:, None, :]        # (2, 1, 4*nhid)

    k_fc, key = jax.random.split(key)
    params["fc_w"] = jax.random.uniform(k_fc, (1, 2 * nhid), jnp.float32, -0.1, 0.1)
    params["fc_b"] = jnp.zeros((1,), jnp.float32)
    return params


# ----------------------------------------------------------------------------
# Full model forward (rnn_type='LSTM', bidirectional).
# ----------------------------------------------------------------------------
def rnn_model_forward(tokens, params, *, nlayers):
    # tokens: (seq, batch) int32
    emb = jnp.take(params["embedding"], tokens, axis=0)  # (seq, batch, ninp)
    # self.drop(emb): identity in eval mode.

    layer_in = emb
    h_last = None
    for layer in range(nlayers):
        w_ih = params[f"w_ih_l{layer}"]   # (2, in_size, 4*nhid)
        w_hh = params[f"w_hh_l{layer}"]   # (2, nhid, 4*nhid)
        b = params[f"b_l{layer}"]         # (2, 1, 4*nhid)

        # Hoisted input projection: one large matmul per direction over the
        # whole sequence (XLA), bwd direction reads the time-reversed input.
        x_fwd = layer_in
        x_bwd = layer_in[::-1]
        gx_fwd = jnp.einsum("sbi,ig->sbg", x_fwd, w_ih[0]) + b[0]
        gx_bwd = jnp.einsum("sbi,ig->sbg", x_bwd, w_ih[1]) + b[1]
        gx = jnp.stack([gx_fwd, gx_bwd], axis=1)  # (seq, 2, batch, 4*nhid)

        # Serial part: only h_prev @ W_hh^T + precomputed gates, both directions
        # fused into one Pallas kernel, whole sequence resident in VMEM.
        y, hN = bilstm_recurrence(gx, w_hh)

        # Re-assemble bidirectional output for the next layer:
        # y[:, 0] is forward in natural time; y[:, 1] is backward in reversed
        # time, so flip it back before concatenating along features.
        yf = y[:, 0]            # (seq, batch, nhid)
        yb = y[::-1, 1]         # (seq, batch, nhid)
        layer_in = jnp.concatenate([yf, yb], axis=-1)  # inter-layer dropout = identity
        h_last = hN

    # hidden = cat(h_n[-2], h_n[-1], dim=1) == [last-layer fwd, last-layer bwd]
    hidden = jnp.concatenate([h_last[0], h_last[1]], axis=-1)  # (batch, 2*nhid)

    # Final FC in plain XLA (N=1 output; a Pallas launch would cost more than it saves).
    out = hidden @ params["fc_w"].T + params["fc_b"]  # (batch, 1)
    if out.shape[0] == 1:  # torch .squeeze(0) only squeezes a size-1 dim 0
        out = jnp.squeeze(out, axis=0)
    return out


if __name__ == "__main__":
    NTOKEN, NINP, NHID, NLAYERS = 50, 32, 32, 2
    SEQ, BATCH = 8, 4

    key = jax.random.PRNGKey(0)
    k_tok, k_par = jax.random.split(key)
    tokens = jax.random.randint(k_tok, (SEQ, BATCH), 0, NTOKEN, dtype=jnp.int32)
    params = init_params(k_par, NTOKEN, NINP, NHID, NLAYERS)

    fwd = jax.jit(functools.partial(rnn_model_forward, nlayers=NLAYERS))
    out = fwd(tokens, params)
    jax.block_until_ready(out)
    assert out.shape == (BATCH, 1)
    print("KERNEL_OK")
</pallas_src>

<mosaic_0001>
module attributes {stable_mosaic.version = 11 : i64} {
  func.func @_bilstm_kernel(%arg0: memref<8x2x4x128xf32, #tpu.memory_space<vmem>>, %arg1: memref<2x32x128xf32, #tpu.memory_space<vmem>>, %arg2: memref<8x2x4x32xf32, #tpu.memory_space<vmem>>, %arg3: memref<2x4x32xf32, #tpu.memory_space<vmem>>) attributes {dimension_semantics = [], scalar_prefetch = 0 : i64, scratch_operands = 0 : i64, tpu.core_type = #tpu.core_type<tc>} {
    %c0 = arith.constant 0 : index
    %c0_0 = arith.constant 0 : index
    %c0_1 = arith.constant 0 : index
    %0 = vector.load %arg1[%c0, %c0_0, %c0_1] : memref<2x32x128xf32, #tpu.memory_space<vmem>>, vector<2x32x128xf32>
    %cst = arith.constant 0.000000e+00 : f32
    %1 = vector.broadcast %cst : f32 to vector<2x4x32xf32>
    %cst_2 = arith.constant 0.000000e+00 : f32
    %2 = vector.broadcast %cst_2 : f32 to vector<2x4x32xf32>
    %c0_i32 = arith.constant 0 : i32
    %3 = arith.index_cast %c0_i32 : i32 to index
    %c0_3 = arith.constant 0 : index
    %c0_4 = arith.constant 0 : index
    %c0_5 = arith.constant 0 : index
    %4 = vector.load %arg0[%3, %c0_3, %c0_4, %c0_5] : memref<8x2x4x128xf32, #tpu.memory_space<vmem>>, vector<1x2x4x128xf32>
    %5 = vector.shape_cast %4 : vector<1x2x4x128xf32> to vector<2x4x128xf32>
    "tpu.trace_start"() <{level = 10 : i32, message = "dbh,dhg->dbg"}> : () -> ()
    %cst_6 = arith.constant dense<0.000000e+00> : vector<2x4x128xf32>
    %6 = tpu.matmul %1, %0, %cst_6 {dimension_numbers = #tpu.dot_dimension_numbers<[2], [1], [1], [2], [0, 0, 0, 1, 1, 2], [0], [0]>} : vector<2x4x32xf32>, vector<2x32x128xf32>, vector<2x4x128xf32> -> vector<2x4x128xf32>
    "tpu.trace_stop"() : () -> ()
    %7 = arith.addf %5, %6 : vector<2x4x128xf32>
    %8 = vector.extract_strided_slice %7 {offsets = [0, 0, 0], sizes = [2, 4, 32], strides = [1, 1, 1]} : vector<2x4x128xf32> to vector<2x4x32xf32>
    %9 = arith.negf %8 : vector<2x4x32xf32>
    %10 = math.exp %9 : vector<2x4x32xf32>
    %cst_7 = arith.constant 1.000000e+00 : f32
    %11 = vector.broadcast %cst_7 : f32 to vector<2x4x32xf32>
    %12 = arith.addf %11, %10 : vector<2x4x32xf32>
    %13 = arith.divf %11, %12 : vector<2x4x32xf32>
    %14 = vector.extract_strided_slice %7 {offsets = [0, 0, 32], sizes = [2, 4, 32], strides = [1, 1, 1]} : vector<2x4x128xf32> to vector<2x4x32xf32>
    %15 = arith.negf %14 : vector<2x4x32xf32>
    %16 = math.exp %15 : vector<2x4x32xf32>
    %cst_8 = arith.constant 1.000000e+00 : f32
    %17 = vector.broadcast %cst_8 : f32 to vector<2x4x32xf32>
    %18 = arith.addf %17, %16 : vector<2x4x32xf32>
    %19 = arith.divf %17, %18 : vector<2x4x32xf32>
    %20 = vector.extract_strided_slice %7 {offsets = [0, 0, 64], sizes = [2, 4, 32], strides = [1, 1, 1]} : vector<2x4x128xf32> to vector<2x4x32xf32>
    %21 = math.tanh %20 : vector<2x4x32xf32>
    %22 = vector.extract_strided_slice %7 {offsets = [0, 0, 96], sizes = [2, 4, 32], strides = [1, 1, 1]} : vector<2x4x128xf32> to vector<2x4x32xf32>
    %23 = arith.negf %22 : vector<2x4x32xf32>
    %24 = math.exp %23 : vector<2x4x32xf32>
    %cst_9 = arith.constant 1.000000e+00 : f32
    %25 = vector.broadcast %cst_9 : f32 to vector<2x4x32xf32>
    %26 = arith.addf %25, %24 : vector<2x4x32xf32>
    %27 = arith.divf %25, %26 : vector<2x4x32xf32>
    %28 = arith.mulf %19, %2 : vector<2x4x32xf32>
    %29 = arith.mulf %13, %21 : vector<2x4x32xf32>
    %30 = arith.addf %28, %29 : vector<2x4x32xf32>
    %31 = math.tanh %30 : vector<2x4x32xf32>
    %32 = arith.mulf %27, %31 : vector<2x4x32xf32>
    %33 = arith.index_cast %c0_i32 : i32 to index
    %c0_10 = arith.constant 0 : index
    %c0_11 = arith.constant 0 : index
    %c0_12 = arith.constant 0 : index
    %34 = vector.load %arg2[%33, %c0_10, %c0_11, %c0_12] : memref<8x2x4x32xf32, #tpu.memory_space<vmem>>, vector<1x2x4x32xf32>
    %35 = vector.shape_cast %34 : vector<1x2x4x32xf32> to vector<2x4x32xf32>
    %36 = vector.shape_cast %32 : vector<2x4x32xf32> to vector<1x2x4x32xf32>
    tpu.vector_store %arg2[%33, %c0_10, %c0_11, %c0_12], %36 {strides = array<i32>} : memref<8x2x4x32xf32, #tpu.memory_space<vmem>>, vector<1x2x4x32xf32>,
    %c1_i32 = arith.constant 1 : i32
    %37 = arith.index_cast %c1_i32 : i32 to index
    %c0_13 = arith.constant 0 : index
    %c0_14 = arith.constant 0 : index
    %c0_15 = arith.constant 0 : index
    %38 = vector.load %arg0[%37, %c0_13, %c0_14, %c0_15] : memref<8x2x4x128xf32, #tpu.memory_space<vmem>>, vector<1x2x4x128xf32>
    %39 = vector.shape_cast %38 : vector<1x2x4x128xf32> to vector<2x4x128xf32>
    "tpu.trace_start"() <{level = 10 : i32, message = "dbh,dhg->dbg"}> : () -> ()
    %cst_16 = arith.constant dense<0.000000e+00> : vector<2x4x128xf32>
    %40 = tpu.matmul %32, %0, %cst_16 {dimension_numbers = #tpu.dot_dimension_numbers<[2], [1], [1], [2], [0, 0, 0, 1, 1, 2], [0], [0]>} : vector<2x4x32xf32>, vector<2x32x128xf32>, vector<2x4x128xf32> -> vector<2x4x128xf32>
    "tpu.trace_stop"() : () -> ()
    %41 = arith.addf %39, %40 : vector<2x4x128xf32>
    %42 = vector.extract_strided_slice %41 {offsets = [0, 0, 0], sizes = [2, 4, 32], strides = [1, 1, 1]} : vector<2x4x128xf32> to vector<2x4x32xf32>
    %43 = arith.negf %42 : vector<2x4x32xf32>
    %44 = math.exp %43 : vector<2x4x32xf32>
    %cst_17 = arith.constant 1.000000e+00 : f32
    %45 = vector.broadcast %cst_17 : f32 to vector<2x4x32xf32>
    %46 = arith.addf %45, %44 : vector<2x4x32xf32>
    %47 = arith.divf %45, %46 : vector<2x4x32xf32>
    %48 = vector.extract_strided_slice %41 {offsets = [0, 0, 32], sizes = [2, 4, 32], strides = [1, 1, 1]} : vector<2x4x128xf32> to vector<2x4x32xf32>
    %49 = arith.negf %48 : vector<2x4x32xf32>
    %50 = math.exp %49 : vector<2x4x32xf32>
    %cst_18 = arith.constant 1.000000e+00 : f32
    %51 = vector.broadcast %cst_18 : f32 to vector<2x4x32xf32>
    %52 = arith.addf %51, %50 : vector<2x4x32xf32>
    %53 = arith.divf %51, %52 : vector<2x4x32xf32>
    %54 = vector.extract_strided_slice %41 {offsets = [0, 0, 64], sizes = [2, 4, 32], strides = [1, 1, 1]} : vector<2x4x128xf32> to vector<2x4x32xf32>
    %55 = math.tanh %54 : vector<2x4x32xf32>
    %56 = vector.extract_strided_slice %41 {offsets = [0, 0, 96], sizes = [2, 4, 32], strides = [1, 1, 1]} : vector<2x4x128xf32> to vector<2x4x32xf32>
    %57 = arith.negf %56 : vector<2x4x32xf32>
    %58 = math.exp %57 : vector<2x4x32xf32>
    %cst_19 = arith.constant 1.000000e+00 : f32
    %59 = vector.broadcast %cst_19 : f32 to vector<2x4x32xf32>
    %60 = arith.addf %59, %58 : vector<2x4x32xf32>
    %61 = arith.divf %59, %60 : vector<2x4x32xf32>
    %62 = arith.mulf %53, %30 : vector<2x4x32xf32>
    %63 = arith.mulf %47, %55 : vector<2x4x32xf32>
    %64 = arith.addf %62, %63 : vector<2x4x32xf32>
    %65 = math.tanh %64 : vector<2x4x32xf32>
    %66 = arith.mulf %61, %65 : vector<2x4x32xf32>
    %67 = arith.index_cast %c1_i32 : i32 to index
    %c0_20 = arith.constant 0 : index
    %c0_21 = arith.constant 0 : index
    %c0_22 = arith.constant 0 : index
    %68 = vector.load %arg2[%67, %c0_20, %c0_21, %c0_22] : memref<8x2x4x32xf32, #tpu.memory_space<vmem>>, vector<1x2x4x32xf32>
    %69 = vector.shape_cast %68 : vector<1x2x4x32xf32> to vector<2x4x32xf32>
    %70 = vector.shape_cast %66 : vector<2x4x32xf32> to vector<1x2x4x32xf32>
    tpu.vector_store %arg2[%67, %c0_20, %c0_21, %c0_22], %70 {strides = array<i32>} : memref<8x2x4x32xf32, #tpu.memory_space<vmem>>, vector<1x2x4x32xf32>,
    %c2_i32 = arith.constant 2 : i32
    %71 = arith.index_cast %c2_i32 : i32 to index
    %c0_23 = arith.constant 0 : index
    %c0_24 = arith.constant 0 : index
    %c0_25 = arith.constant 0 : index
    %72 = vector.load %arg0[%71, %c0_23, %c0_24, %c0_25] : memref<8x2x4x128xf32, #tpu.memory_space<vmem>>, vector<1x2x4x128xf32>
    %73 = vector.shape_cast %72 : vector<1x2x4x128xf32> to vector<2x4x128xf32>
    "tpu.trace_start"() <{level = 10 : i32, message = "dbh,dhg->dbg"}> : () -> ()
    %cst_26 = arith.constant dense<0.000000e+00> : vector<2x4x128xf32>
    %74 = tpu.matmul %66, %0, %cst_26 {dimension_numbers = #tpu.dot_dimension_numbers<[2], [1], [1], [2], [0, 0, 0, 1, 1, 2], [0], [0]>} : vector<2x4x32xf32>, vector<2x32x128xf32>, vector<2x4x128xf32> -> vector<2x4x128xf32>
    "tpu.trace_stop"() : () -> ()
    %75 = arith.addf %73, %74 : vector<2x4x128xf32>
    %76 = vector.extract_strided_slice %75 {offsets = [0, 0, 0], sizes = [2, 4, 32], strides = [1, 1, 1]} : vector<2x4x128xf32> to vector<2x4x32xf32>
    %77 = arith.negf %76 : vector<2x4x32xf32>
    %78 = math.exp %77 : vector<2x4x32xf32>
    %cst_27 = arith.constant 1.000000e+00 : f32
    %79 = vector.broadcast %cst_27 : f32 to vector<2x4x32xf32>
    %80 = arith.addf %79, %78 : vector<2x4x32xf32>
    %81 = arith.divf %79, %80 : vector<2x4x32xf32>
    %82 = vector.extract_strided_slice %75 {offsets = [0, 0, 32], sizes = [2, 4, 32], strides = [1, 1, 1]} : vector<2x4x128xf32> to vector<2x4x32xf32>
    %83 = arith.negf %82 : vector<2x4x32xf32>
    %84 = math.exp %83 : vector<2x4x32xf32>
    %cst_28 = arith.constant 1.000000e+00 : f32
    %85 = vector.broadcast %cst_28 : f32 to vector<2x4x32xf32>
    %86 = arith.addf %85, %84 : vector<2x4x32xf32>
    %87 = arith.divf %85, %86 : vector<2x4x32xf32>
    %88 = vector.extract_strided_slice %75 {offsets = [0, 0, 64], sizes = [2, 4, 32], strides = [1, 1, 1]} : vector<2x4x128xf32> to vector<2x4x32xf32>
    %89 = math.tanh %88 : vector<2x4x32xf32>
    %90 = vector.extract_strided_slice %75 {offsets = [0, 0, 96], sizes = [2, 4, 32], strides = [1, 1, 1]} : vector<2x4x128xf32> to vector<2x4x32xf32>
    %91 = arith.negf %90 : vector<2x4x32xf32>
    %92 = math.exp %91 : vector<2x4x32xf32>
    %cst_29 = arith.constant 1.000000e+00 : f32
    %93 = vector.broadcast %cst_29 : f32 to vector<2x4x32xf32>
    %94 = arith.addf %93, %92 : vector<2x4x32xf32>
    %95 = arith.divf %93, %94 : vector<2x4x32xf32>
    %96 = arith.mulf %87, %64 : vector<2x4x32xf32>
    %97 = arith.mulf %81, %89 : vector<2x4x32xf32>
    %98 = arith.addf %96, %97 : vector<2x4x32xf32>
    %99 = math.tanh %98 : vector<2x4x32xf32>
    %100 = arith.mulf %95, %99 : vector<2x4x32xf32>
    %101 = arith.index_cast %c2_i32 : i32 to index
    %c0_30 = arith.constant 0 : index
    %c0_31 = arith.constant 0 : index
    %c0_32 = arith.constant 0 : index
    %102 = vector.load %arg2[%101, %c0_30, %c0_31, %c0_32] : memref<8x2x4x32xf32, #tpu.memory_space<vmem>>, vector<1x2x4x32xf32>
    %103 = vector.shape_cast %102 : vector<1x2x4x32xf32> to vector<2x4x32xf32>
    %104 = vector.shape_cast %100 : vector<2x4x32xf32> to vector<1x2x4x32xf32>
    tpu.vector_store %arg2[%101, %c0_30, %c0_31, %c0_32], %104 {strides = array<i32>} : memref<8x2x4x32xf32, #tpu.memory_space<vmem>>, vector<1x2x4x32xf32>,
    %c3_i32 = arith.constant 3 : i32
    %105 = arith.index_cast %c3_i32 : i32 to index
    %c0_33 = arith.constant 0 : index
    %c0_34 = arith.constant 0 : index
    %c0_35 = arith.constant 0 : index
    %106 = vector.load %arg0[%105, %c0_33, %c0_34, %c0_35] : memref<8x2x4x128xf32, #tpu.memory_space<vmem>>, vector<1x2x4x128xf32>
    %107 = vector.shape_cast %106 : vector<1x2x4x128xf32> to vector<2x4x128xf32>
    "tpu.trace_start"() <{level = 10 : i32, message = "dbh,dhg->dbg"}> : () -> ()
    %cst_36 = arith.constant dense<0.000000e+00> : vector<2x4x128xf32>
    %108 = tpu.matmul %100, %0, %cst_36 {dimension_numbers = #tpu.dot_dimension_numbers<[2], [1], [1], [2], [0, 0, 0, 1, 1, 2], [0], [0]>} : vector<2x4x32xf32>, vector<2x32x128xf32>, vector<2x4x128xf32> -> vector<2x4x128xf32>
    "tpu.trace_stop"() : () -> ()
    %109 = arith.addf %107, %108 : vector<2x4x128xf32>
    %110 = vector.extract_strided_slice %109 {offsets = [0, 0, 0], sizes = [2, 4, 32], strides = [1, 1, 1]} : vector<2x4x128xf32> to vector<2x4x32xf32>
    %111 = arith.negf %110 : vector<2x4x32xf32>
    %112 = math.exp %111 : vector<2x4x32xf32>
    %cst_37 = arith.constant 1.000000e+00 : f32
    %113 = vector.broadcast %cst_37 : f32 to vector<2x4x32xf32>
    %114 = arith.addf %113, %112 : vector<2x4x32xf32>
    %115 = arith.divf %113, %114 : vector<2x4x32xf32>
    %116 = vector.extract_strided_slice %109 {offsets = [0, 0, 32], sizes = [2, 4, 32], strides = [1, 1, 1]} : vector<2x4x128xf32> to vector<2x4x32xf32>
    %117 = arith.negf %116 : vector<2x4x32xf32>
    %118 = math.exp %117 : vector<2x4x32xf32>
    %cst_38 = arith.constant 1.000000e+00 : f32
    %119 = vector.broadcast %cst_38 : f32 to vector<2x4x32xf32>
    %120 = arith.addf %119, %118 : vector<2x4x32xf32>
    %121 = arith.divf %119, %120 : vector<2x4x32xf32>
    %122 = vector.extract_strided_slice %109 {offsets = [0, 0, 64], sizes = [2, 4, 32], strides = [1, 1, 1]} : vector<2x4x128xf32> to vector<2x4x32xf32>
    %123 = math.tanh %122 : vector<2x4x32xf32>
    %124 = vector.extract_strided_slice %109 {offsets = [0, 0, 96], sizes = [2, 4, 32], strides = [1, 1, 1]} : vector<2x4x128xf32> to vector<2x4x32xf32>
    %125 = arith.negf %124 : vector<2x4x32xf32>
    %126 = math.exp %125 : vector<2x4x32xf32>
    %cst_39 = arith.constant 1.000000e+00 : f32
    %127 = vector.broadcast %cst_39 : f32 to vector<2x4x32xf32>
    %128 = arith.addf %127, %126 : vector<2x4x32xf32>
    %129 = arith.divf %127, %128 : vector<2x4x32xf32>
    %130 = arith.mulf %121, %98 : vector<2x4x32xf32>
    %131 = arith.mulf %115, %123 : vector<2x4x32xf32>
    %132 = arith.addf %130, %131 : vector<2x4x32xf32>
    %133 = math.tanh %132 : vector<2x4x32xf32>
    %134 = arith.mulf %129, %133 : vector<2x4x32xf32>
    %135 = arith.index_cast %c3_i32 : i32 to index
    %c0_40 = arith.constant 0 : index
    %c0_41 = arith.constant 0 : index
    %c0_42 = arith.constant 0 : index
    %136 = vector.load %arg2[%135, %c0_40, %c0_41, %c0_42] : memref<8x2x4x32xf32, #tpu.memory_space<vmem>>, vector<1x2x4x32xf32>
    %137 = vector.shape_cast %136 : vector<1x2x4x32xf32> to vector<2x4x32xf32>
    %138 = vector.shape_cast %134 : vector<2x4x32xf32> to vector<1x2x4x32xf32>
    tpu.vector_store %arg2[%135, %c0_40, %c0_41, %c0_42], %138 {strides = array<i32>} : memref<8x2x4x32xf32, #tpu.memory_space<vmem>>, vector<1x2x4x32xf32>,
    %c4_i32 = arith.constant 4 : i32
    %139 = arith.index_cast %c4_i32 : i32 to index
    %c0_43 = arith.constant 0 : index
    %c0_44 = arith.constant 0 : index
    %c0_45 = arith.constant 0 : index
    %140 = vector.load %arg0[%139, %c0_43, %c0_44, %c0_45] : memref<8x2x4x128xf32, #tpu.memory_space<vmem>>, vector<1x2x4x128xf32>
    %141 = vector.shape_cast %140 : vector<1x2x4x128xf32> to vector<2x4x128xf32>
    "tpu.trace_start"() <{level = 10 : i32, message = "dbh,dhg->dbg"}> : () -> ()
    %cst_46 = arith.constant dense<0.000000e+00> : vector<2x4x128xf32>
    %142 = tpu.matmul %134, %0, %cst_46 {dimension_numbers = #tpu.dot_dimension_numbers<[2], [1], [1], [2], [0, 0, 0, 1, 1, 2], [0], [0]>} : vector<2x4x32xf32>, vector<2x32x128xf32>, vector<2x4x128xf32> -> vector<2x4x128xf32>
    "tpu.trace_stop"() : () -> ()
    %143 = arith.addf %141, %142 : vector<2x4x128xf32>
    %144 = vector.extract_strided_slice %143 {offsets = [0, 0, 0], sizes = [2, 4, 32], strides = [1, 1, 1]} : vector<2x4x128xf32> to vector<2x4x32xf32>
    %145 = arith.negf %144 : vector<2x4x32xf32>
    %146 = math.exp %145 : vector<2x4x32xf32>
    %cst_47 = arith.constant 1.000000e+00 : f32
    %147 = vector.broadcast %cst_47 : f32 to vector<2x4x32xf32>
    %148 = arith.addf %147, %146 : vector<2x4x32xf32>
    %149 = arith.divf %147, %148 : vector<2x4x32xf32>
    %150 = vector.extract_strided_slice %143 {offsets = [0, 0, 32], sizes = [2, 4, 32], strides = [1, 1, 1]} : vector<2x4x128xf32> to vector<2x4x32xf32>
    %151 = arith.negf %150 : vector<2x4x32xf32>
    %152 = math.exp %151 : vector<2x4x32xf32>
    %cst_48 = arith.constant 1.000000e+00 : f32
    %153 = vector.broadcast %cst_48 : f32 to vector<2x4x32xf32>
    %154 = arith.addf %153, %152 : vector<2x4x32xf32>
    %155 = arith.divf %153, %154 : vector<2x4x32xf32>
    %156 = vector.extract_strided_slice %143 {offsets = [0, 0, 64], sizes = [2, 4, 32], strides = [1, 1, 1]} : vector<2x4x128xf32> to vector<2x4x32xf32>
    %157 = math.tanh %156 : vector<2x4x32xf32>
    %158 = vector.extract_strided_slice %143 {offsets = [0, 0, 96], sizes = [2, 4, 32], strides = [1, 1, 1]} : vector<2x4x128xf32> to vector<2x4x32xf32>
    %159 = arith.negf %158 : vector<2x4x32xf32>
    %160 = math.exp %159 : vector<2x4x32xf32>
    %cst_49 = arith.constant 1.000000e+00 : f32
    %161 = vector.broadcast %cst_49 : f32 to vector<2x4x32xf32>
    %162 = arith.addf %161, %160 : vector<2x4x32xf32>
    %163 = arith.divf %161, %162 : vector<2x4x32xf32>
    %164 = arith.mulf %155, %132 : vector<2x4x32xf32>
    %165 = arith.mulf %149, %157 : vector<2x4x32xf32>
    %166 = arith.addf %164, %165 : vector<2x4x32xf32>
    %167 = math.tanh %166 : vector<2x4x32xf32>
    %168 = arith.mulf %163, %167 : vector<2x4x32xf32>
    %169 = arith.index_cast %c4_i32 : i32 to index
    %c0_50 = arith.constant 0 : index
    %c0_51 = arith.constant 0 : index
    %c0_52 = arith.constant 0 : index
    %170 = vector.load %arg2[%169, %c0_50, %c0_51, %c0_52] : memref<8x2x4x32xf32, #tpu.memory_space<vmem>>, vector<1x2x4x32xf32>
    %171 = vector.shape_cast %170 : vector<1x2x4x32xf32> to vector<2x4x32xf32>
    %172 = vector.shape_cast %168 : vector<2x4x32xf32> to vector<1x2x4x32xf32>
    tpu.vector_store %arg2[%169, %c0_50, %c0_51, %c0_52], %172 {strides = array<i32>} : memref<8x2x4x32xf32, #tpu.memory_space<vmem>>, vector<1x2x4x32xf32>,
    %c5_i32 = arith.constant 5 : i32
    %173 = arith.index_cast %c5_i32 : i32 to index
    %c0_53 = arith.constant 0 : index
    %c0_54 = arith.constant 0 : index
    %c0_55 = arith.constant 0 : index
    %174 = vector.load %arg0[%173, %c0_53, %c0_54, %c0_55] : memref<8x2x4x128xf32, #tpu.memory_space<vmem>>, vector<1x2x4x128xf32>
    %175 = vector.shape_cast %174 : vector<1x2x4x128xf32> to vector<2x4x128xf32>
    "tpu.trace_start"() <{level = 10 : i32, message = "dbh,dhg->dbg"}> : () -> ()
    %cst_56 = arith.constant dense<0.000000e+00> : vector<2x4x128xf32>
    %176 = tpu.matmul %168, %0, %cst_56 {dimension_numbers = #tpu.dot_dimension_numbers<[2], [1], [1], [2], [0, 0, 0, 1, 1, 2], [0], [0]>} : vector<2x4x32xf32>, vector<2x32x128xf32>, vector<2x4x128xf32> -> vector<2x4x128xf32>
    "tpu.trace_stop"() : () -> ()
    %177 = arith.addf %175, %176 : vector<2x4x128xf32>
    %178 = vector.extract_strided_slice %177 {offsets = [0, 0, 0], sizes = [2, 4, 32], strides = [1, 1, 1]} : vector<2x4x128xf32> to vector<2x4x32xf32>
    %179 = arith.negf %178 : vector<2x4x32xf32>
    %180 = math.exp %179 : vector<2x4x32xf32>
    %cst_57 = arith.constant 1.000000e+00 : f32
    %181 = vector.broadcast %cst_57 : f32 to vector<2x4x32xf32>
    %182 = arith.addf %181, %180 : vector<2x4x32xf32>
    %183 = arith.divf %181, %182 : vector<2x4x32xf32>
    %184 = vector.extract_strided_slice %177 {offsets = [0, 0, 32], sizes = [2, 4, 32], strides = [1, 1, 1]} : vector<2x4x128xf32> to vector<2x4x32xf32>
    %185 = arith.negf %184 : vector<2x4x32xf32>
    %186 = math.exp %185 : vector<2x4x32xf32>
    %cst_58 = arith.constant 1.000000e+00 : f32
    %187 = vector.broadcast %cst_58 : f32 to vector<2x4x32xf32>
    %188 = arith.addf %187, %186 : vector<2x4x32xf32>
    %189 = arith.divf %187, %188 : vector<2x4x32xf32>
    %190 = vector.extract_strided_slice %177 {offsets = [0, 0, 64], sizes = [2, 4, 32], strides = [1, 1, 1]} : vector<2x4x128xf32> to vector<2x4x32xf32>
    %191 = math.tanh %190 : vector<2x4x32xf32>
    %192 = vector.extract_strided_slice %177 {offsets = [0, 0, 96], sizes = [2, 4, 32], strides = [1, 1, 1]} : vector<2x4x128xf32> to vector<2x4x32xf32>
    %193 = arith.negf %192 : vector<2x4x32xf32>
    %194 = math.exp %193 : vector<2x4x32xf32>
    %cst_59 = arith.constant 1.000000e+00 : f32
    %195 = vector.broadcast %cst_59 : f32 to vector<2x4x32xf32>
    %196 = arith.addf %195, %194 : vector<2x4x32xf32>
    %197 = arith.divf %195, %196 : vector<2x4x32xf32>
    %198 = arith.mulf %189, %166 : vector<2x4x32xf32>
    %199 = arith.mulf %183, %191 : vector<2x4x32xf32>
    %200 = arith.addf %198, %199 : vector<2x4x32xf32>
    %201 = math.tanh %200 : vector<2x4x32xf32>
    %202 = arith.mulf %197, %201 : vector<2x4x32xf32>
    %203 = arith.index_cast %c5_i32 : i32 to index
    %c0_60 = arith.constant 0 : index
    %c0_61 = arith.constant 0 : index
    %c0_62 = arith.constant 0 : index
    %204 = vector.load %arg2[%203, %c0_60, %c0_61, %c0_62] : memref<8x2x4x32xf32, #tpu.memory_space<vmem>>, vector<1x2x4x32xf32>
    %205 = vector.shape_cast %204 : vector<1x2x4x32xf32> to vector<2x4x32xf32>
    %206 = vector.shape_cast %202 : vector<2x4x32xf32> to vector<1x2x4x32xf32>
    tpu.vector_store %arg2[%203, %c0_60, %c0_61, %c0_62], %206 {strides = array<i32>} : memref<8x2x4x32xf32, #tpu.memory_space<vmem>>, vector<1x2x4x32xf32>,
    %c6_i32 = arith.constant 6 : i32
    %207 = arith.index_cast %c6_i32 : i32 to index
    %c0_63 = arith.constant 0 : index
    %c0_64 = arith.constant 0 : index
    %c0_65 = arith.constant 0 : index
    %208 = vector.load %arg0[%207, %c0_63, %c0_64, %c0_65] : memref<8x2x4x128xf32, #tpu.memory_space<vmem>>, vector<1x2x4x128xf32>
    %209 = vector.shape_cast %208 : vector<1x2x4x128xf32> to vector<2x4x128xf32>
    "tpu.trace_start"() <{level = 10 : i32, message = "dbh,dhg->dbg"}> : () -> ()
    %cst_66 = arith.constant dense<0.000000e+00> : vector<2x4x128xf32>
    %210 = tpu.matmul %202, %0, %cst_66 {dimension_numbers = #tpu.dot_dimension_numbers<[2], [1], [1], [2], [0, 0, 0, 1, 1, 2], [0], [0]>} : vector<2x4x32xf32>, vector<2x32x128xf32>, vector<2x4x128xf32> -> vector<2x4x128xf32>
    "tpu.trace_stop"() : () -> ()
    %211 = arith.addf %209, %210 : vector<2x4x128xf32>
    %212 = vector.extract_strided_slice %211 {offsets = [0, 0, 0], sizes = [2, 4, 32], strides = [1, 1, 1]} : vector<2x4x128xf32> to vector<2x4x32xf32>
    %213 = arith.negf %212 : vector<2x4x32xf32>
    %214 = math.exp %213 : vector<2x4x32xf32>
    %cst_67 = arith.constant 1.000000e+00 : f32
    %215 = vector.broadcast %cst_67 : f32 to vector<2x4x32xf32>
    %216 = arith.addf %215, %214 : vector<2x4x32xf32>
    %217 = arith.divf %215, %216 : vector<2x4x32xf32>
    %218 = vector.extract_strided_slice %211 {offsets = [0, 0, 32], sizes = [2, 4, 32], strides = [1, 1, 1]} : vector<2x4x128xf32> to vector<2x4x32xf32>
    %219 = arith.negf %218 : vector<2x4x32xf32>
    %220 = math.exp %219 : vector<2x4x32xf32>
    %cst_68 = arith.constant 1.000000e+00 : f32
    %221 = vector.broadcast %cst_68 : f32 to vector<2x4x32xf32>
    %222 = arith.addf %221, %220 : vector<2x4x32xf32>
    %223 = arith.divf %221, %222 : vector<2x4x32xf32>
    %224 = vector.extract_strided_slice %211 {offsets = [0, 0, 64], sizes = [2, 4, 32], strides = [1, 1, 1]} : vector<2x4x128xf32> to vector<2x4x32xf32>
    %225 = math.tanh %224 : vector<2x4x32xf32>
    %226 = vector.extract_strided_slice %211 {offsets = [0, 0, 96], sizes = [2, 4, 32], strides = [1, 1, 1]} : vector<2x4x128xf32> to vector<2x4x32xf32>
    %227 = arith.negf %226 : vector<2x4x32xf32>
    %228 = math.exp %227 : vector<2x4x32xf32>
    %cst_69 = arith.constant 1.000000e+00 : f32
    %229 = vector.broadcast %cst_69 : f32 to vector<2x4x32xf32>
    %230 = arith.addf %229, %228 : vector<2x4x32xf32>
    %231 = arith.divf %229, %230 : vector<2x4x32xf32>
    %232 = arith.mulf %223, %200 : vector<2x4x32xf32>
    %233 = arith.mulf %217, %225 : vector<2x4x32xf32>
    %234 = arith.addf %232, %233 : vector<2x4x32xf32>
    %235 = math.tanh %234 : vector<2x4x32xf32>
    %236 = arith.mulf %231, %235 : vector<2x4x32xf32>
    %237 = arith.index_cast %c6_i32 : i32 to index
    %c0_70 = arith.constant 0 : index
    %c0_71 = arith.constant 0 : index
    %c0_72 = arith.constant 0 : index
    %238 = vector.load %arg2[%237, %c0_70, %c0_71, %c0_72] : memref<8x2x4x32xf32, #tpu.memory_space<vmem>>, vector<1x2x4x32xf32>
    %239 = vector.shape_cast %238 : vector<1x2x4x32xf32> to vector<2x4x32xf32>
    %240 = vector.shape_cast %236 : vector<2x4x32xf32> to vector<1x2x4x32xf32>
    tpu.vector_store %arg2[%237, %c0_70, %c0_71, %c0_72], %240 {strides = array<i32>} : memref<8x2x4x32xf32, #tpu.memory_space<vmem>>, vector<1x2x4x32xf32>,
    %c7_i32 = arith.constant 7 : i32
    %241 = arith.index_cast %c7_i32 : i32 to index
    %c0_73 = arith.constant 0 : index
    %c0_74 = arith.constant 0 : index
    %c0_75 = arith.constant 0 : index
    %242 = vector.load %arg0[%241, %c0_73, %c0_74, %c0_75] : memref<8x2x4x128xf32, #tpu.memory_space<vmem>>, vector<1x2x4x128xf32>
    %243 = vector.shape_cast %242 : vector<1x2x4x128xf32> to vector<2x4x128xf32>
    "tpu.trace_start"() <{level = 10 : i32, message = "dbh,dhg->dbg"}> : () -> ()
    %cst_76 = arith.constant dense<0.000000e+00> : vector<2x4x128xf32>
    %244 = tpu.matmul %236, %0, %cst_76 {dimension_numbers = #tpu.dot_dimension_numbers<[2], [1], [1], [2], [0, 0, 0, 1, 1, 2], [0], [0]>} : vector<2x4x32xf32>, vector<2x32x128xf32>, vector<2x4x128xf32> -> vector<2x4x128xf32>
    "tpu.trace_stop"() : () -> ()
    %245 = arith.addf %243, %244 : vector<2x4x128xf32>
    %246 = vector.extract_strided_slice %245 {offsets = [0, 0, 0], sizes = [2, 4, 32], strides = [1, 1, 1]} : vector<2x4x128xf32> to vector<2x4x32xf32>
    %247 = arith.negf %246 : vector<2x4x32xf32>
    %248 = math.exp %247 : vector<2x4x32xf32>
    %cst_77 = arith.constant 1.000000e+00 : f32
    %249 = vector.broadcast %cst_77 : f32 to vector<2x4x32xf32>
    %250 = arith.addf %249, %248 : vector<2x4x32xf32>
    %251 = arith.divf %249, %250 : vector<2x4x32xf32>
    %252 = vector.extract_strided_slice %245 {offsets = [0, 0, 32], sizes = [2, 4, 32], strides = [1, 1, 1]} : vector<2x4x128xf32> to vector<2x4x32xf32>
    %253 = arith.negf %252 : vector<2x4x32xf32>
    %254 = math.exp %253 : vector<2x4x32xf32>
    %cst_78 = arith.constant 1.000000e+00 : f32
    %255 = vector.broadcast %cst_78 : f32 to vector<2x4x32xf32>
    %256 = arith.addf %255, %254 : vector<2x4x32xf32>
    %257 = arith.divf %255, %256 : vector<2x4x32xf32>
    %258 = vector.extract_strided_slice %245 {offsets = [0, 0, 64], sizes = [2, 4, 32], strides = [1, 1, 1]} : vector<2x4x128xf32> to vector<2x4x32xf32>
    %259 = math.tanh %258 : vector<2x4x32xf32>
    %260 = vector.extract_strided_slice %245 {offsets = [0, 0, 96], sizes = [2, 4, 32], strides = [1, 1, 1]} : vector<2x4x128xf32> to vector<2x4x32xf32>
    %261 = arith.negf %260 : vector<2x4x32xf32>
    %262 = math.exp %261 : vector<2x4x32xf32>
    %cst_79 = arith.constant 1.000000e+00 : f32
    %263 = vector.broadcast %cst_79 : f32 to vector<2x4x32xf32>
    %264 = arith.addf %263, %262 : vector<2x4x32xf32>
    %265 = arith.divf %263, %264 : vector<2x4x32xf32>
    %266 = arith.mulf %257, %234 : vector<2x4x32xf32>
    %267 = arith.mulf %251, %259 : vector<2x4x32xf32>
    %268 = arith.addf %266, %267 : vector<2x4x32xf32>
    %269 = math.tanh %268 : vector<2x4x32xf32>
    %270 = arith.mulf %265, %269 : vector<2x4x32xf32>
    %271 = arith.index_cast %c7_i32 : i32 to index
    %c0_80 = arith.constant 0 : index
    %c0_81 = arith.constant 0 : index
    %c0_82 = arith.constant 0 : index
    %272 = vector.load %arg2[%271, %c0_80, %c0_81, %c0_82] : memref<8x2x4x32xf32, #tpu.memory_space<vmem>>, vector<1x2x4x32xf32>
    %273 = vector.shape_cast %272 : vector<1x2x4x32xf32> to vector<2x4x32xf32>
    %274 = vector.shape_cast %270 : vector<2x4x32xf32> to vector<1x2x4x32xf32>
    tpu.vector_store %arg2[%271, %c0_80, %c0_81, %c0_82], %274 {strides = array<i32>} : memref<8x2x4x32xf32, #tpu.memory_space<vmem>>, vector<1x2x4x32xf32>,
    %c8_i32 = arith.constant 8 : i32
    %c0_83 = arith.constant 0 : index
    %c0_84 = arith.constant 0 : index
    %c0_85 = arith.constant 0 : index
    %275 = vector.load %arg3[%c0_83, %c0_84, %c0_85] : memref<2x4x32xf32, #tpu.memory_space<vmem>>, vector<2x4x32xf32>
    tpu.vector_store %arg3[%c0_83, %c0_84, %c0_85], %270 {strides = array<i32>} : memref<2x4x32xf32, #tpu.memory_space<vmem>>, vector<2x4x32xf32>,
    return
  }
}

module attributes {stable_mosaic.version = 11 : i64} {
  func.func @_bilstm_kernel(%arg0: memref<8x2x4x128xf32, #tpu.memory_space<vmem>>, %arg1: memref<2x32x128xf32, #tpu.memory_space<vmem>>, %arg2: memref<8x2x4x32xf32, #tpu.memory_space<vmem>>, %arg3: memref<2x4x32xf32, #tpu.memory_space<vmem>>) attributes {dimension_semantics = [], scalar_prefetch = 0 : i64, scratch_operands = 0 : i64, tpu.core_type = #tpu.core_type<tc>} {
    %c0 = arith.constant 0 : index
    %c0_0 = arith.constant 0 : index
    %c0_1 = arith.constant 0 : index
    %0 = vector.load %arg1[%c0, %c0_0, %c0_1] : memref<2x32x128xf32, #tpu.memory_space<vmem>>, vector<2x32x128xf32>
    %cst = arith.constant 0.000000e+00 : f32
    %1 = vector.broadcast %cst : f32 to vector<2x4x32xf32>
    %cst_2 = arith.constant 0.000000e+00 : f32
    %2 = vector.broadcast %cst_2 : f32 to vector<2x4x32xf32>
    %c0_i32 = arith.constant 0 : i32
    %3 = arith.index_cast %c0_i32 : i32 to index
    %c0_3 = arith.constant 0 : index
    %c0_4 = arith.constant 0 : index
    %c0_5 = arith.constant 0 : index
    %4 = vector.load %arg0[%3, %c0_3, %c0_4, %c0_5] : memref<8x2x4x128xf32, #tpu.memory_space<vmem>>, vector<1x2x4x128xf32>
    %5 = vector.shape_cast %4 : vector<1x2x4x128xf32> to vector<2x4x128xf32>
    "tpu.trace_start"() <{level = 10 : i32, message = "dbh,dhg->dbg"}> : () -> ()
    %cst_6 = arith.constant dense<0.000000e+00> : vector<2x4x128xf32>
    %6 = tpu.matmul %1, %0, %cst_6 {dimension_numbers = #tpu.dot_dimension_numbers<[2], [1], [1], [2], [0, 0, 0, 1, 1, 2], [0], [0]>} : vector<2x4x32xf32>, vector<2x32x128xf32>, vector<2x4x128xf32> -> vector<2x4x128xf32>
    "tpu.trace_stop"() : () -> ()
    %7 = arith.addf %5, %6 : vector<2x4x128xf32>
    %8 = vector.extract_strided_slice %7 {offsets = [0, 0, 0], sizes = [2, 4, 32], strides = [1, 1, 1]} : vector<2x4x128xf32> to vector<2x4x32xf32>
    %9 = arith.negf %8 : vector<2x4x32xf32>
    %10 = math.exp %9 : vector<2x4x32xf32>
    %cst_7 = arith.constant 1.000000e+00 : f32
    %11 = vector.broadcast %cst_7 : f32 to vector<2x4x32xf32>
    %12 = arith.addf %11, %10 : vector<2x4x32xf32>
    %13 = arith.divf %11, %12 : vector<2x4x32xf32>
    %14 = vector.extract_strided_slice %7 {offsets = [0, 0, 32], sizes = [2, 4, 32], strides = [1, 1, 1]} : vector<2x4x128xf32> to vector<2x4x32xf32>
    %15 = arith.negf %14 : vector<2x4x32xf32>
    %16 = math.exp %15 : vector<2x4x32xf32>
    %cst_8 = arith.constant 1.000000e+00 : f32
    %17 = vector.broadcast %cst_8 : f32 to vector<2x4x32xf32>
    %18 = arith.addf %17, %16 : vector<2x4x32xf32>
    %19 = arith.divf %17, %18 : vector<2x4x32xf32>
    %20 = vector.extract_strided_slice %7 {offsets = [0, 0, 64], sizes = [2, 4, 32], strides = [1, 1, 1]} : vector<2x4x128xf32> to vector<2x4x32xf32>
    %21 = math.tanh %20 : vector<2x4x32xf32>
    %22 = vector.extract_strided_slice %7 {offsets = [0, 0, 96], sizes = [2, 4, 32], strides = [1, 1, 1]} : vector<2x4x128xf32> to vector<2x4x32xf32>
    %23 = arith.negf %22 : vector<2x4x32xf32>
    %24 = math.exp %23 : vector<2x4x32xf32>
    %cst_9 = arith.constant 1.000000e+00 : f32
    %25 = vector.broadcast %cst_9 : f32 to vector<2x4x32xf32>
    %26 = arith.addf %25, %24 : vector<2x4x32xf32>
    %27 = arith.divf %25, %26 : vector<2x4x32xf32>
    %28 = arith.mulf %19, %2 : vector<2x4x32xf32>
    %29 = arith.mulf %13, %21 : vector<2x4x32xf32>
    %30 = arith.addf %28, %29 : vector<2x4x32xf32>
    %31 = math.tanh %30 : vector<2x4x32xf32>
    %32 = arith.mulf %27, %31 : vector<2x4x32xf32>
    %33 = arith.index_cast %c0_i32 : i32 to index
    %c0_10 = arith.constant 0 : index
    %c0_11 = arith.constant 0 : index
    %c0_12 = arith.constant 0 : index
    %34 = vector.load %arg2[%33, %c0_10, %c0_11, %c0_12] : memref<8x2x4x32xf32, #tpu.memory_space<vmem>>, vector<1x2x4x32xf32>
    %35 = vector.shape_cast %34 : vector<1x2x4x32xf32> to vector<2x4x32xf32>
    %36 = vector.shape_cast %32 : vector<2x4x32xf32> to vector<1x2x4x32xf32>
    tpu.vector_store %arg2[%33, %c0_10, %c0_11, %c0_12], %36 {strides = array<i32>} : memref<8x2x4x32xf32, #tpu.memory_space<vmem>>, vector<1x2x4x32xf32>,
    %c1_i32 = arith.constant 1 : i32
    %37 = arith.index_cast %c1_i32 : i32 to index
    %c0_13 = arith.constant 0 : index
    %c0_14 = arith.constant 0 : index
    %c0_15 = arith.constant 0 : index
    %38 = vector.load %arg0[%37, %c0_13, %c0_14, %c0_15] : memref<8x2x4x128xf32, #tpu.memory_space<vmem>>, vector<1x2x4x128xf32>
    %39 = vector.shape_cast %38 : vector<1x2x4x128xf32> to vector<2x4x128xf32>
    "tpu.trace_start"() <{level = 10 : i32, message = "dbh,dhg->dbg"}> : () -> ()
    %cst_16 = arith.constant dense<0.000000e+00> : vector<2x4x128xf32>
    %40 = tpu.matmul %32, %0, %cst_16 {dimension_numbers = #tpu.dot_dimension_numbers<[2], [1], [1], [2], [0, 0, 0, 1, 1, 2], [0], [0]>} : vector<2x4x32xf32>, vector<2x32x128xf32>, vector<2x4x128xf32> -> vector<2x4x128xf32>
    "tpu.trace_stop"() : () -> ()
    %41 = arith.addf %39, %40 : vector<2x4x128xf32>
    %42 = vector.extract_strided_slice %41 {offsets = [0, 0, 0], sizes = [2, 4, 32], strides = [1, 1, 1]} : vector<2x4x128xf32> to vector<2x4x32xf32>
    %43 = arith.negf %42 : vector<2x4x32xf32>
    %44 = math.exp %43 : vector<2x4x32xf32>
    %cst_17 = arith.constant 1.000000e+00 : f32
    %45 = vector.broadcast %cst_17 : f32 to vector<2x4x32xf32>
    %46 = arith.addf %45, %44 : vector<2x4x32xf32>
    %47 = arith.divf %45, %46 : vector<2x4x32xf32>
    %48 = vector.extract_strided_slice %41 {offsets = [0, 0, 32], sizes = [2, 4, 32], strides = [1, 1, 1]} : vector<2x4x128xf32> to vector<2x4x32xf32>
    %49 = arith.negf %48 : vector<2x4x32xf32>
    %50 = math.exp %49 : vector<2x4x32xf32>
    %cst_18 = arith.constant 1.000000e+00 : f32
    %51 = vector.broadcast %cst_18 : f32 to vector<2x4x32xf32>
    %52 = arith.addf %51, %50 : vector<2x4x32xf32>
    %53 = arith.divf %51, %52 : vector<2x4x32xf32>
    %54 = vector.extract_strided_slice %41 {offsets = [0, 0, 64], sizes = [2, 4, 32], strides = [1, 1, 1]} : vector<2x4x128xf32> to vector<2x4x32xf32>
    %55 = math.tanh %54 : vector<2x4x32xf32>
    %56 = vector.extract_strided_slice %41 {offsets = [0, 0, 96], sizes = [2, 4, 32], strides = [1, 1, 1]} : vector<2x4x128xf32> to vector<2x4x32xf32>
    %57 = arith.negf %56 : vector<2x4x32xf32>
    %58 = math.exp %57 : vector<2x4x32xf32>
    %cst_19 = arith.constant 1.000000e+00 : f32
    %59 = vector.broadcast %cst_19 : f32 to vector<2x4x32xf32>
    %60 = arith.addf %59, %58 : vector<2x4x32xf32>
    %61 = arith.divf %59, %60 : vector<2x4x32xf32>
    %62 = arith.mulf %53, %30 : vector<2x4x32xf32>
    %63 = arith.mulf %47, %55 : vector<2x4x32xf32>
    %64 = arith.addf %62, %63 : vector<2x4x32xf32>
    %65 = math.tanh %64 : vector<2x4x32xf32>
    %66 = arith.mulf %61, %65 : vector<2x4x32xf32>
    %67 = arith.index_cast %c1_i32 : i32 to index
    %c0_20 = arith.constant 0 : index
    %c0_21 = arith.constant 0 : index
    %c0_22 = arith.constant 0 : index
    %68 = vector.load %arg2[%67, %c0_20, %c0_21, %c0_22] : memref<8x2x4x32xf32, #tpu.memory_space<vmem>>, vector<1x2x4x32xf32>
    %69 = vector.shape_cast %68 : vector<1x2x4x32xf32> to vector<2x4x32xf32>
    %70 = vector.shape_cast %66 : vector<2x4x32xf32> to vector<1x2x4x32xf32>
    tpu.vector_store %arg2[%67, %c0_20, %c0_21, %c0_22], %70 {strides = array<i32>} : memref<8x2x4x32xf32, #tpu.memory_space<vmem>>, vector<1x2x4x32xf32>,
    %c2_i32 = arith.constant 2 : i32
    %71 = arith.index_cast %c2_i32 : i32 to index
    %c0_23 = arith.constant 0 : index
    %c0_24 = arith.constant 0 : index
    %c0_25 = arith.constant 0 : index
    %72 = vector.load %arg0[%71, %c0_23, %c0_24, %c0_25] : memref<8x2x4x128xf32, #tpu.memory_space<vmem>>, vector<1x2x4x128xf32>
    %73 = vector.shape_cast %72 : vector<1x2x4x128xf32> to vector<2x4x128xf32>
    "tpu.trace_start"() <{level = 10 : i32, message = "dbh,dhg->dbg"}> : () -> ()
    %cst_26 = arith.constant dense<0.000000e+00> : vector<2x4x128xf32>
    %74 = tpu.matmul %66, %0, %cst_26 {dimension_numbers = #tpu.dot_dimension_numbers<[2], [1], [1], [2], [0, 0, 0, 1, 1, 2], [0], [0]>} : vector<2x4x32xf32>, vector<2x32x128xf32>, vector<2x4x128xf32> -> vector<2x4x128xf32>
    "tpu.trace_stop"() : () -> ()
    %75 = arith.addf %73, %74 : vector<2x4x128xf32>
    %76 = vector.extract_strided_slice %75 {offsets = [0, 0, 0], sizes = [2, 4, 32], strides = [1, 1, 1]} : vector<2x4x128xf32> to vector<2x4x32xf32>
    %77 = arith.negf %76 : vector<2x4x32xf32>
    %78 = math.exp %77 : vector<2x4x32xf32>
    %cst_27 = arith.constant 1.000000e+00 : f32
    %79 = vector.broadcast %cst_27 : f32 to vector<2x4x32xf32>
    %80 = arith.addf %79, %78 : vector<2x4x32xf32>
    %81 = arith.divf %79, %80 : vector<2x4x32xf32>
    %82 = vector.extract_strided_slice %75 {offsets = [0, 0, 32], sizes = [2, 4, 32], strides = [1, 1, 1]} : vector<2x4x128xf32> to vector<2x4x32xf32>
    %83 = arith.negf %82 : vector<2x4x32xf32>
    %84 = math.exp %83 : vector<2x4x32xf32>
    %cst_28 = arith.constant 1.000000e+00 : f32
    %85 = vector.broadcast %cst_28 : f32 to vector<2x4x32xf32>
    %86 = arith.addf %85, %84 : vector<2x4x32xf32>
    %87 = arith.divf %85, %86 : vector<2x4x32xf32>
    %88 = vector.extract_strided_slice %75 {offsets = [0, 0, 64], sizes = [2, 4, 32], strides = [1, 1, 1]} : vector<2x4x128xf32> to vector<2x4x32xf32>
    %89 = math.tanh %88 : vector<2x4x32xf32>
    %90 = vector.extract_strided_slice %75 {offsets = [0, 0, 96], sizes = [2, 4, 32], strides = [1, 1, 1]} : vector<2x4x128xf32> to vector<2x4x32xf32>
    %91 = arith.negf %90 : vector<2x4x32xf32>
    %92 = math.exp %91 : vector<2x4x32xf32>
    %cst_29 = arith.constant 1.000000e+00 : f32
    %93 = vector.broadcast %cst_29 : f32 to vector<2x4x32xf32>
    %94 = arith.addf %93, %92 : vector<2x4x32xf32>
    %95 = arith.divf %93, %94 : vector<2x4x32xf32>
    %96 = arith.mulf %87, %64 : vector<2x4x32xf32>
    %97 = arith.mulf %81, %89 : vector<2x4x32xf32>
    %98 = arith.addf %96, %97 : vector<2x4x32xf32>
    %99 = math.tanh %98 : vector<2x4x32xf32>
    %100 = arith.mulf %95, %99 : vector<2x4x32xf32>
    %101 = arith.index_cast %c2_i32 : i32 to index
    %c0_30 = arith.constant 0 : index
    %c0_31 = arith.constant 0 : index
    %c0_32 = arith.constant 0 : index
    %102 = vector.load %arg2[%101, %c0_30, %c0_31, %c0_32] : memref<8x2x4x32xf32, #tpu.memory_space<vmem>>, vector<1x2x4x32xf32>
    %103 = vector.shape_cast %102 : vector<1x2x4x32xf32> to vector<2x4x32xf32>
    %104 = vector.shape_cast %100 : vector<2x4x32xf32> to vector<1x2x4x32xf32>
    tpu.vector_store %arg2[%101, %c0_30, %c0_31, %c0_32], %104 {strides = array<i32>} : memref<8x2x4x32xf32, #tpu.memory_space<vmem>>, vector<1x2x4x32xf32>,
    %c3_i32 = arith.constant 3 : i32
    %105 = arith.index_cast %c3_i32 : i32 to index
    %c0_33 = arith.constant 0 : index
    %c0_34 = arith.constant 0 : index
    %c0_35 = arith.constant 0 : index
    %106 = vector.load %arg0[%105, %c0_33, %c0_34, %c0_35] : memref<8x2x4x128xf32, #tpu.memory_space<vmem>>, vector<1x2x4x128xf32>
    %107 = vector.shape_cast %106 : vector<1x2x4x128xf32> to vector<2x4x128xf32>
    "tpu.trace_start"() <{level = 10 : i32, message = "dbh,dhg->dbg"}> : () -> ()
    %cst_36 = arith.constant dense<0.000000e+00> : vector<2x4x128xf32>
    %108 = tpu.matmul %100, %0, %cst_36 {dimension_numbers = #tpu.dot_dimension_numbers<[2], [1], [1], [2], [0, 0, 0, 1, 1, 2], [0], [0]>} : vector<2x4x32xf32>, vector<2x32x128xf32>, vector<2x4x128xf32> -> vector<2x4x128xf32>
    "tpu.trace_stop"() : () -> ()
    %109 = arith.addf %107, %108 : vector<2x4x128xf32>
    %110 = vector.extract_strided_slice %109 {offsets = [0, 0, 0], sizes = [2, 4, 32], strides = [1, 1, 1]} : vector<2x4x128xf32> to vector<2x4x32xf32>
    %111 = arith.negf %110 : vector<2x4x32xf32>
    %112 = math.exp %111 : vector<2x4x32xf32>
    %cst_37 = arith.constant 1.000000e+00 : f32
    %113 = vector.broadcast %cst_37 : f32 to vector<2x4x32xf32>
    %114 = arith.addf %113, %112 : vector<2x4x32xf32>
    %115 = arith.divf %113, %114 : vector<2x4x32xf32>
    %116 = vector.extract_strided_slice %109 {offsets = [0, 0, 32], sizes = [2, 4, 32], strides = [1, 1, 1]} : vector<2x4x128xf32> to vector<2x4x32xf32>
    %117 = arith.negf %116 : vector<2x4x32xf32>
    %118 = math.exp %117 : vector<2x4x32xf32>
    %cst_38 = arith.constant 1.000000e+00 : f32
    %119 = vector.broadcast %cst_38 : f32 to vector<2x4x32xf32>
    %120 = arith.addf %119, %118 : vector<2x4x32xf32>
    %121 = arith.divf %119, %120 : vector<2x4x32xf32>
    %122 = vector.extract_strided_slice %109 {offsets = [0, 0, 64], sizes = [2, 4, 32], strides = [1, 1, 1]} : vector<2x4x128xf32> to vector<2x4x32xf32>
    %123 = math.tanh %122 : vector<2x4x32xf32>
    %124 = vector.extract_strided_slice %109 {offsets = [0, 0, 96], sizes = [2, 4, 32], strides = [1, 1, 1]} : vector<2x4x128xf32> to vector<2x4x32xf32>
    %125 = arith.negf %124 : vector<2x4x32xf32>
    %126 = math.exp %125 : vector<2x4x32xf32>
    %cst_39 = arith.constant 1.000000e+00 : f32
    %127 = vector.broadcast %cst_39 : f32 to vector<2x4x32xf32>
    %128 = arith.addf %127, %126 : vector<2x4x32xf32>
    %129 = arith.divf %127, %128 : vector<2x4x32xf32>
    %130 = arith.mulf %121, %98 : vector<2x4x32xf32>
    %131 = arith.mulf %115, %123 : vector<2x4x32xf32>
    %132 = arith.addf %130, %131 : vector<2x4x32xf32>
    %133 = math.tanh %132 : vector<2x4x32xf32>
    %134 = arith.mulf %129, %133 : vector<2x4x32xf32>
    %135 = arith.index_cast %c3_i32 : i32 to index
    %c0_40 = arith.constant 0 : index
    %c0_41 = arith.constant 0 : index
    %c0_42 = arith.constant 0 : index
    %136 = vector.load %arg2[%135, %c0_40, %c0_41, %c0_42] : memref<8x2x4x32xf32, #tpu.memory_space<vmem>>, vector<1x2x4x32xf32>
    %137 = vector.shape_cast %136 : vector<1x2x4x32xf32> to vector<2x4x32xf32>
    %138 = vector.shape_cast %134 : vector<2x4x32xf32> to vector<1x2x4x32xf32>
    tpu.vector_store %arg2[%135, %c0_40, %c0_41, %c0_42], %138 {strides = array<i32>} : memref<8x2x4x32xf32, #tpu.memory_space<vmem>>, vector<1x2x4x32xf32>,
    %c4_i32 = arith.constant 4 : i32
    %139 = arith.index_cast %c4_i32 : i32 to index
    %c0_43 = arith.constant 0 : index
    %c0_44 = arith.constant 0 : index
    %c0_45 = arith.constant 0 : index
    %140 = vector.load %arg0[%139, %c0_43, %c0_44, %c0_45] : memref<8x2x4x128xf32, #tpu.memory_space<vmem>>, vector<1x2x4x128xf32>
    %141 = vector.shape_cast %140 : vector<1x2x4x128xf32> to vector<2x4x128xf32>
    "tpu.trace_start"() <{level = 10 : i32, message = "dbh,dhg->dbg"}> : () -> ()
    %cst_46 = arith.constant dense<0.000000e+00> : vector<2x4x128xf32>
    %142 = tpu.matmul %134, %0, %cst_46 {dimension_numbers = #tpu.dot_dimension_numbers<[2], [1], [1], [2], [0, 0, 0, 1, 1, 2], [0], [0]>} : vector<2x4x32xf32>, vector<2x32x128xf32>, vector<2x4x128xf32> -> vector<2x4x128xf32>
    "tpu.trace_stop"() : () -> ()
    %143 = arith.addf %141, %142 : vector<2x4x128xf32>
    %144 = vector.extract_strided_slice %143 {offsets = [0, 0, 0], sizes = [2, 4, 32], strides = [1, 1, 1]} : vector<2x4x128xf32> to vector<2x4x32xf32>
    %145 = arith.negf %144 : vector<2x4x32xf32>
    %146 = math.exp %145 : vector<2x4x32xf32>
    %cst_47 = arith.constant 1.000000e+00 : f32
    %147 = vector.broadcast %cst_47 : f32 to vector<2x4x32xf32>
    %148 = arith.addf %147, %146 : vector<2x4x32xf32>
    %149 = arith.divf %147, %148 : vector<2x4x32xf32>
    %150 = vector.extract_strided_slice %143 {offsets = [0, 0, 32], sizes = [2, 4, 32], strides = [1, 1, 1]} : vector<2x4x128xf32> to vector<2x4x32xf32>
    %151 = arith.negf %150 : vector<2x4x32xf32>
    %152 = math.exp %151 : vector<2x4x32xf32>
    %cst_48 = arith.constant 1.000000e+00 : f32
    %153 = vector.broadcast %cst_48 : f32 to vector<2x4x32xf32>
    %154 = arith.addf %153, %152 : vector<2x4x32xf32>
    %155 = arith.divf %153, %154 : vector<2x4x32xf32>
    %156 = vector.extract_strided_slice %143 {offsets = [0, 0, 64], sizes = [2, 4, 32], strides = [1, 1, 1]} : vector<2x4x128xf32> to vector<2x4x32xf32>
    %157 = math.tanh %156 : vector<2x4x32xf32>
    %158 = vector.extract_strided_slice %143 {offsets = [0, 0, 96], sizes = [2, 4, 32], strides = [1, 1, 1]} : vector<2x4x128xf32> to vector<2x4x32xf32>
    %159 = arith.negf %158 : vector<2x4x32xf32>
    %160 = math.exp %159 : vector<2x4x32xf32>
    %cst_49 = arith.constant 1.000000e+00 : f32
    %161 = vector.broadcast %cst_49 : f32 to vector<2x4x32xf32>
    %162 = arith.addf %161, %160 : vector<2x4x32xf32>
    %163 = arith.divf %161, %162 : vector<2x4x32xf32>
    %164 = arith.mulf %155, %132 : vector<2x4x32xf32>
    %165 = arith.mulf %149, %157 : vector<2x4x32xf32>
    %166 = arith.addf %164, %165 : vector<2x4x32xf32>
    %167 = math.tanh %166 : vector<2x4x32xf32>
    %168 = arith.mulf %163, %167 : vector<2x4x32xf32>
    %169 = arith.index_cast %c4_i32 : i32 to index
    %c0_50 = arith.constant 0 : index
    %c0_51 = arith.constant 0 : index
    %c0_52 = arith.constant 0 : index
    %170 = vector.load %arg2[%169, %c0_50, %c0_51, %c0_52] : memref<8x2x4x32xf32, #tpu.memory_space<vmem>>, vector<1x2x4x32xf32>
    %171 = vector.shape_cast %170 : vector<1x2x4x32xf32> to vector<2x4x32xf32>
    %172 = vector.shape_cast %168 : vector<2x4x32xf32> to vector<1x2x4x32xf32>
    tpu.vector_store %arg2[%169, %c0_50, %c0_51, %c0_52], %172 {strides = array<i32>} : memref<8x2x4x32xf32, #tpu.memory_space<vmem>>, vector<1x2x4x32xf32>,
    %c5_i32 = arith.constant 5 : i32
    %173 = arith.index_cast %c5_i32 : i32 to index
    %c0_53 = arith.constant 0 : index
    %c0_54 = arith.constant 0 : index
    %c0_55 = arith.constant 0 : index
    %174 = vector.load %arg0[%173, %c0_53, %c0_54, %c0_55] : memref<8x2x4x128xf32, #tpu.memory_space<vmem>>, vector<1x2x4x128xf32>
    %175 = vector.shape_cast %174 : vector<1x2x4x128xf32> to vector<2x4x128xf32>
    "tpu.trace_start"() <{level = 10 : i32, message = "dbh,dhg->dbg"}> : () -> ()
    %cst_56 = arith.constant dense<0.000000e+00> : vector<2x4x128xf32>
    %176 = tpu.matmul %168, %0, %cst_56 {dimension_numbers = #tpu.dot_dimension_numbers<[2], [1], [1], [2], [0, 0, 0, 1, 1, 2], [0], [0]>} : vector<2x4x32xf32>, vector<2x32x128xf32>, vector<2x4x128xf32> -> vector<2x4x128xf32>
    "tpu.trace_stop"() : () -> ()
    %177 = arith.addf %175, %176 : vector<2x4x128xf32>
    %178 = vector.extract_strided_slice %177 {offsets = [0, 0, 0], sizes = [2, 4, 32], strides = [1, 1, 1]} : vector<2x4x128xf32> to vector<2x4x32xf32>
    %179 = arith.negf %178 : vector<2x4x32xf32>
    %180 = math.exp %179 : vector<2x4x32xf32>
    %cst_57 = arith.constant 1.000000e+00 : f32
    %181 = vector.broadcast %cst_57 : f32 to vector<2x4x32xf32>
    %182 = arith.addf %181, %180 : vector<2x4x32xf32>
    %183 = arith.divf %181, %182 : vector<2x4x32xf32>
    %184 = vector.extract_strided_slice %177 {offsets = [0, 0, 32], sizes = [2, 4, 32], strides = [1, 1, 1]} : vector<2x4x128xf32> to vector<2x4x32xf32>
    %185 = arith.negf %184 : vector<2x4x32xf32>
    %186 = math.exp %185 : vector<2x4x32xf32>
    %cst_58 = arith.constant 1.000000e+00 : f32
    %187 = vector.broadcast %cst_58 : f32 to vector<2x4x32xf32>
    %188 = arith.addf %187, %186 : vector<2x4x32xf32>
    %189 = arith.divf %187, %188 : vector<2x4x32xf32>
    %190 = vector.extract_strided_slice %177 {offsets = [0, 0, 64], sizes = [2, 4, 32], strides = [1, 1, 1]} : vector<2x4x128xf32> to vector<2x4x32xf32>
    %191 = math.tanh %190 : vector<2x4x32xf32>
    %192 = vector.extract_strided_slice %177 {offsets = [0, 0, 96], sizes = [2, 4, 32], strides = [1, 1, 1]} : vector<2x4x128xf32> to vector<2x4x32xf32>
    %193 = arith.negf %192 : vector<2x4x32xf32>
    %194 = math.exp %193 : vector<2x4x32xf32>
    %cst_59 = arith.constant 1.000000e+00 : f32
    %195 = vector.broadcast %cst_59 : f32 to vector<2x4x32xf32>
    %196 = arith.addf %195, %194 : vector<2x4x32xf32>
    %197 = arith.divf %195, %196 : vector<2x4x32xf32>
    %198 = arith.mulf %189, %166 : vector<2x4x32xf32>
    %199 = arith.mulf %183, %191 : vector<2x4x32xf32>
    %200 = arith.addf %198, %199 : vector<2x4x32xf32>
    %201 = math.tanh %200 : vector<2x4x32xf32>
    %202 = arith.mulf %197, %201 : vector<2x4x32xf32>
    %203 = arith.index_cast %c5_i32 : i32 to index
    %c0_60 = arith.constant 0 : index
    %c0_61 = arith.constant 0 : index
    %c0_62 = arith.constant 0 : index
    %204 = vector.load %arg2[%203, %c0_60, %c0_61, %c0_62] : memref<8x2x4x32xf32, #tpu.memory_space<vmem>>, vector<1x2x4x32xf32>
    %205 = vector.shape_cast %204 : vector<1x2x4x32xf32> to vector<2x4x32xf32>
    %206 = vector.shape_cast %202 : vector<2x4x32xf32> to vector<1x2x4x32xf32>
    tpu.vector_store %arg2[%203, %c0_60, %c0_61, %c0_62], %206 {strides = array<i32>} : memref<8x2x4x32xf32, #tpu.memory_space<vmem>>, vector<1x2x4x32xf32>,
    %c6_i32 = arith.constant 6 : i32
    %207 = arith.index_cast %c6_i32 : i32 to index
    %c0_63 = arith.constant 0 : index
    %c0_64 = arith.constant 0 : index
    %c0_65 = arith.constant 0 : index
    %208 = vector.load %arg0[%207, %c0_63, %c0_64, %c0_65] : memref<8x2x4x128xf32, #tpu.memory_space<vmem>>, vector<1x2x4x128xf32>
    %209 = vector.shape_cast %208 : vector<1x2x4x128xf32> to vector<2x4x128xf32>
    "tpu.trace_start"() <{level = 10 : i32, message = "dbh,dhg->dbg"}> : () -> ()
    %cst_66 = arith.constant dense<0.000000e+00> : vector<2x4x128xf32>
    %210 = tpu.matmul %202, %0, %cst_66 {dimension_numbers = #tpu.dot_dimension_numbers<[2], [1], [1], [2], [0, 0, 0, 1, 1, 2], [0], [0]>} : vector<2x4x32xf32>, vector<2x32x128xf32>, vector<2x4x128xf32> -> vector<2x4x128xf32>
    "tpu.trace_stop"() : () -> ()
    %211 = arith.addf %209, %210 : vector<2x4x128xf32>
    %212 = vector.extract_strided_slice %211 {offsets = [0, 0, 0], sizes = [2, 4, 32], strides = [1, 1, 1]} : vector<2x4x128xf32> to vector<2x4x32xf32>
    %213 = arith.negf %212 : vector<2x4x32xf32>
    %214 = math.exp %213 : vector<2x4x32xf32>
    %cst_67 = arith.constant 1.000000e+00 : f32
    %215 = vector.broadcast %cst_67 : f32 to vector<2x4x32xf32>
    %216 = arith.addf %215, %214 : vector<2x4x32xf32>
    %217 = arith.divf %215, %216 : vector<2x4x32xf32>
    %218 = vector.extract_strided_slice %211 {offsets = [0, 0, 32], sizes = [2, 4, 32], strides = [1, 1, 1]} : vector<2x4x128xf32> to vector<2x4x32xf32>
    %219 = arith.negf %218 : vector<2x4x32xf32>
    %220 = math.exp %219 : vector<2x4x32xf32>
    %cst_68 = arith.constant 1.000000e+00 : f32
    %221 = vector.broadcast %cst_68 : f32 to vector<2x4x32xf32>
    %222 = arith.addf %221, %220 : vector<2x4x32xf32>
    %223 = arith.divf %221, %222 : vector<2x4x32xf32>
    %224 = vector.extract_strided_slice %211 {offsets = [0, 0, 64], sizes = [2, 4, 32], strides = [1, 1, 1]} : vector<2x4x128xf32> to vector<2x4x32xf32>
    %225 = math.tanh %224 : vector<2x4x32xf32>
    %226 = vector.extract_strided_slice %211 {offsets = [0, 0, 96], sizes = [2, 4, 32], strides = [1, 1, 1]} : vector<2x4x128xf32> to vector<2x4x32xf32>
    %227 = arith.negf %226 : vector<2x4x32xf32>
    %228 = math.exp %227 : vector<2x4x32xf32>
    %cst_69 = arith.constant 1.000000e+00 : f32
    %229 = vector.broadcast %cst_69 : f32 to vector<2x4x32xf32>
    %230 = arith.addf %229, %228 : vector<2x4x32xf32>
    %231 = arith.divf %229, %230 : vector<2x4x32xf32>
    %232 = arith.mulf %223, %200 : vector<2x4x32xf32>
    %233 = arith.mulf %217, %225 : vector<2x4x32xf32>
    %234 = arith.addf %232, %233 : vector<2x4x32xf32>
    %235 = math.tanh %234 : vector<2x4x32xf32>
    %236 = arith.mulf %231, %235 : vector<2x4x32xf32>
    %237 = arith.index_cast %c6_i32 : i32 to index
    %c0_70 = arith.constant 0 : index
    %c0_71 = arith.constant 0 : index
    %c0_72 = arith.constant 0 : index
    %238 = vector.load %arg2[%237, %c0_70, %c0_71, %c0_72] : memref<8x2x4x32xf32, #tpu.memory_space<vmem>>, vector<1x2x4x32xf32>
    %239 = vector.shape_cast %238 : vector<1x2x4x32xf32> to vector<2x4x32xf32>
    %240 = vector.shape_cast %236 : vector<2x4x32xf32> to vector<1x2x4x32xf32>
    tpu.vector_store %arg2[%237, %c0_70, %c0_71, %c0_72], %240 {strides = array<i32>} : memref<8x2x4x32xf32, #tpu.memory_space<vmem>>, vector<1x2x4x32xf32>,
    %c7_i32 = arith.constant 7 : i32
    %241 = arith.index_cast %c7_i32 : i32 to index
    %c0_73 = arith.constant 0 : index
    %c0_74 = arith.constant 0 : index
    %c0_75 = arith.constant 0 : index
    %242 = vector.load %arg0[%241, %c0_73, %c0_74, %c0_75] : memref<8x2x4x128xf32, #tpu.memory_space<vmem>>, vector<1x2x4x128xf32>
    %243 = vector.shape_cast %242 : vector<1x2x4x128xf32> to vector<2x4x128xf32>
    "tpu.trace_start"() <{level = 10 : i32, message = "dbh,dhg->dbg"}> : () -> ()
    %cst_76 = arith.constant dense<0.000000e+00> : vector<2x4x128xf32>
    %244 = tpu.matmul %236, %0, %cst_76 {dimension_numbers = #tpu.dot_dimension_numbers<[2], [1], [1], [2], [0, 0, 0, 1, 1, 2], [0], [0]>} : vector<2x4x32xf32>, vector<2x32x128xf32>, vector<2x4x128xf32> -> vector<2x4x128xf32>
    "tpu.trace_stop"() : () -> ()
    %245 = arith.addf %243, %244 : vector<2x4x128xf32>
    %246 = vector.extract_strided_slice %245 {offsets = [0, 0, 0], sizes = [2, 4, 32], strides = [1, 1, 1]} : vector<2x4x128xf32> to vector<2x4x32xf32>
    %247 = arith.negf %246 : vector<2x4x32xf32>
    %248 = math.exp %247 : vector<2x4x32xf32>
    %cst_77 = arith.constant 1.000000e+00 : f32
    %249 = vector.broadcast %cst_77 : f32 to vector<2x4x32xf32>
    %250 = arith.addf %249, %248 : vector<2x4x32xf32>
    %251 = arith.divf %249, %250 : vector<2x4x32xf32>
    %252 = vector.extract_strided_slice %245 {offsets = [0, 0, 32], sizes = [2, 4, 32], strides = [1, 1, 1]} : vector<2x4x128xf32> to vector<2x4x32xf32>
    %253 = arith.negf %252 : vector<2x4x32xf32>
    %254 = math.exp %253 : vector<2x4x32xf32>
    %cst_78 = arith.constant 1.000000e+00 : f32
    %255 = vector.broadcast %cst_78 : f32 to vector<2x4x32xf32>
    %256 = arith.addf %255, %254 : vector<2x4x32xf32>
    %257 = arith.divf %255, %256 : vector<2x4x32xf32>
    %258 = vector.extract_strided_slice %245 {offsets = [0, 0, 64], sizes = [2, 4, 32], strides = [1, 1, 1]} : vector<2x4x128xf32> to vector<2x4x32xf32>
    %259 = math.tanh %258 : vector<2x4x32xf32>
    %260 = vector.extract_strided_slice %245 {offsets = [0, 0, 96], sizes = [2, 4, 32], strides = [1, 1, 1]} : vector<2x4x128xf32> to vector<2x4x32xf32>
    %261 = arith.negf %260 : vector<2x4x32xf32>
    %262 = math.exp %261 : vector<2x4x32xf32>
    %cst_79 = arith.constant 1.000000e+00 : f32
    %263 = vector.broadcast %cst_79 : f32 to vector<2x4x32xf32>
    %264 = arith.addf %263, %262 : vector<2x4x32xf32>
    %265 = arith.divf %263, %264 : vector<2x4x32xf32>
    %266 = arith.mulf %257, %234 : vector<2x4x32xf32>
    %267 = arith.mulf %251, %259 : vector<2x4x32xf32>
    %268 = arith.addf %266, %267 : vector<2x4x32xf32>
    %269 = math.tanh %268 : vector<2x4x32xf32>
    %270 = arith.mulf %265, %269 : vector<2x4x32xf32>
    %271 = arith.index_cast %c7_i32 : i32 to index
    %c0_80 = arith.constant 0 : index
    %c0_81 = arith.constant 0 : index
    %c0_82 = arith.constant 0 : index
    %272 = vector.load %arg2[%271, %c0_80, %c0_81, %c0_82] : memref<8x2x4x32xf32, #tpu.memory_space<vmem>>, vector<1x2x4x32xf32>
    %273 = vector.shape_cast %272 : vector<1x2x4x32xf32> to vector<2x4x32xf32>
    %274 = vector.shape_cast %270 : vector<2x4x32xf32> to vector<1x2x4x32xf32>
    tpu.vector_store %arg2[%271, %c0_80, %c0_81, %c0_82], %274 {strides = array<i32>} : memref<8x2x4x32xf32, #tpu.memory_space<vmem>>, vector<1x2x4x32xf32>,
    %c8_i32 = arith.constant 8 : i32
    %c0_83 = arith.constant 0 : index
    %c0_84 = arith.constant 0 : index
    %c0_85 = arith.constant 0 : index
    %275 = vector.load %arg3[%c0_83, %c0_84, %c0_85] : memref<2x4x32xf32, #tpu.memory_space<vmem>>, vector<2x4x32xf32>
    tpu.vector_store %arg3[%c0_83, %c0_84, %c0_85], %270 {strides = array<i32>} : memref<2x4x32xf32, #tpu.memory_space<vmem>>, vector<2x4x32xf32>,
    return
  }
}

</mosaic_0001>

<llo_original>
// kernel: rnn_model_forward.3
$region0: #{rnn_model_forward.3}
  #allocation0 [shape = 'u32[]', space=smem, size = 0x4, offset = 0x4, fixed_abs, tag = 'smem constant byte address 0x4 - core index']
  #allocation1 [shape = 'u32[144,128]{1,0:T(1,128)}', space=vmem, size = 0x12000, scoped, tag = 'internal scratch']
  %s0 = inlined_call_operand.vmem [shape: f32[8,2,4,128], index: 0, kind: input, shape index: {}]
  %s1 = inlined_call_operand.vmem [shape: f32[2,32,128], index: 1, kind: input, shape index: {}]
  %s2 = inlined_call_operand.hbm [shape: f32[8,2,4,32], index: 2, kind: output, shape index: {0}]
  %s3 = inlined_call_operand.vmem [shape: f32[2,4,32], index: 3, kind: output, shape index: {1}]
  %4 = xla_tuple %s2, %s3
  %s5 = sld [smem:[#allocation0]]
  $region26: #{rnn_model_forward.3} parent=0
    _
  %s7 = ssub.s32 1, %s5
  %s8 = scalar_select 0, %s7, %s5
  $region1: #{rnn_model_forward.3} parent=0
    #allocation2 [shape = 'u8[32768]{0}', space=vmem, size = 0x8000, scoped, tag = 'output window, operand 0, single buffered']
    #allocation3 [shape = 's32[1]{0}', space=sflag, size = 0x4, scoped, tag = 'scoped memory for rnn_model_forward.3']
    %9 = vsyncpa [#allocation3], 0
    // Predicated region
    $region2: #{rnn_model_forward.3} parent=1 // pred_check
      _
    $region3: #{rnn_model_forward.3} parent=1 // pred_check_branch
      %11 = sbr.rel (0) target = $region5
    $region4: #{rnn_model_forward.3} parent=1 // pred_region
      _
    $region5: #{rnn_model_forward.3} parent=1 // pred_fallthru
      _
    // Predicated region
    $region6: #{rnn_model_forward.3} parent=1 // pred_check
      _
    $region7: #{rnn_model_forward.3} parent=1 // pred_check_branch
      %13 = sbr.rel (0) target = $region9
    $region8: #{rnn_model_forward.3} parent=1 // pred_region
      _
    $region9: #{rnn_model_forward.3} parent=1 // pred_fallthru
      _
    %v14 = vld [vmem:[%s1] sm:$0xff]
    %v15 = vld [vmem:[%s1 + $0x8] sm:$0xff]
    %v16 = vld [vmem:[%s1 + $0x10] sm:$0xff]
    %v17 = vld [vmem:[%s1 + $0x18] sm:$0xff]
    %v18 = vld [vmem:[%s1 + $0x20] sm:$0xff]
    %v19 = vld [vmem:[%s1 + $0x28] sm:$0xff]
    %v20 = vld [vmem:[%s1 + $0x30] sm:$0xff]
    %v21 = vld [vmem:[%s1 + $0x38] sm:$0xff]
    %v22 = vld [vmem:[%s0] sm:$0xf]
    %v23 = vld [vmem:[%s0 + $0x4] sm:$0xf]
    %vm24 = vcmask 261120
    %v26 = vsel %vm24, 0.0, 0
    %28 = vmatprep.subr.mxu0 0.0
    %29 = vmatpush1.msra.mxu0 %v14
    %30 = vmatprep.subr.mxu0 0.0
    %31 = vmatpush1.msra.mxu0 %v15
    %32 = vmatprep.subr.mxu0 0.0
    %33 = vmatpush1.msra.mxu0 %v16
    %34 = vmatprep.subr.mxu0 0.0
    %35 = vmatpush1.msra.mxu0 %v17
    %36 = vmatprep.subr.mxu0 0.0
    %37 = vmatpush1.msra.mxu0 0.0
    %38 = vmatprep.subr.mxu0 0.0
    %39 = vmatpush1.msra.mxu0 0.0
    %40 = vmatprep.subr.mxu0 0.0
    %41 = vmatpush1.msra.mxu0 0.0
    %42 = vmatprep.subr.mxu0 0.0
    %43 = vmatpush1.msra.mxu0 0.0
    %44 = vmatprep.subr.mxu0 0.0
    %45 = vmatpush1.msra.mxu0 0.0
    %46 = vmatprep.subr.mxu0 0.0
    %47 = vmatpush1.msra.mxu0 0.0
    %48 = vmatprep.subr.mxu0 0.0
    %49 = vmatpush1.msra.mxu0 0.0
    %50 = vmatprep.subr.mxu0 0.0
    %51 = vmatpush1.msra.mxu0 0.0
    %52 = vmatprep.subr.mxu0 0.0
    %53 = vmatpush1.msra.mxu0 0.0
    %54 = vmatprep.subr.mxu0 0.0
    %55 = vmatpush1.msra.mxu0 0.0
    %56 = vmatprep.subr.mxu0 0.0
    %57 = vmatpush1.msra.mxu0 0.0
    %58 = vmatprep.subr.mxu0 0.0
    %59 = vmatpush1.msra.mxu0 0.0
    %60 = vmatprep.subr.mxu0 0.0
    %61 = vmatpush1.msra.mxu0 0.0
    %62 = vmatprep.subr.mxu0 0.0
    %63 = vmatpush1.msra.mxu0 0.0
    %64 = vmatprep.subr.mxu0 0.0
    %65 = vmatpush1.msra.mxu0 0.0
    %66 = vmatprep.subr.mxu0 0.0
    %67 = vmatpush1.msra.mxu0 0.0
    %68 = vmatprep.subr.mxu0 0.0
    %69 = vmatpush1.msra.mxu0 0.0
    %70 = vmatprep.subr.mxu0 0.0
    %71 = vmatpush1.msra.mxu0 0.0
    %72 = vmatprep.subr.mxu0 0.0
    %73 = vmatpush1.msra.mxu0 0.0
    %74 = vmatprep.subr.mxu0 0.0
    %75 = vmatpush1.msra.mxu0 0.0
    %76 = vmatprep.subr.mxu0 0.0
    %77 = vmatpush1.msra.mxu0 0.0
    %78 = vmatprep.subr.mxu0 0.0
    %79 = vmatpush1.msra.mxu0 0.0
    %80 = vmatprep.subr.mxu0 0.0
    %81 = vmatpush1.msra.mxu0 0.0
    %82 = vmatprep.subr.mxu0 0.0
    %83 = vmatpush1.msra.mxu0 0.0
    %84 = vmatprep.subr.mxu0 0.0
    %85 = vmatpush1.msra.mxu0 0.0
    %86 = vmatprep.subr.mxu0 0.0
    %87 = vmatpush1.msra.mxu0 0.0
    %88 = vmatprep.subr.mxu0 0.0
    %89 = vmatpush1.msra.mxu0 0.0
    %90 = vmatprep.subr.mxu0 0.0
    %91 = vmatpush1.msra.mxu0 0.0
    %92 = vmatprep.mubr.f32.mxu0 0.0
    %93 = vmatmul.mubr.f32.gmra.mrb[0].mxu0 %v26
    %v94 = vpop.f32.mrb[0].mxu0
    %v95 = vadd.f32 0.0, %v94
    %v96 = vpop.f32.mrb[0].mxu0
    %97 = vdwg.mxu0
    %98 = vmatprep.subr.mxu0 0.0
    %99 = vmatpush1.msra.mxu0 %v18
    %100 = vmatprep.subr.mxu0 0.0
    %101 = vmatpush1.msra.mxu0 %v19
    %102 = vmatprep.subr.mxu0 0.0
    %103 = vmatpush1.msra.mxu0 %v20
    %104 = vmatprep.subr.mxu0 0.0
    %105 = vmatpush1.msra.mxu0 %v21
    %106 = vmatprep.subr.mxu0 0.0
    %107 = vmatpush1.msra.mxu0 0.0
    %108 = vmatprep.subr.mxu0 0.0
    %109 = vmatpush1.msra.mxu0 0.0
    %110 = vmatprep.subr.mxu0 0.0
    %111 = vmatpush1.msra.mxu0 0.0
    %112 = vmatprep.subr.mxu0 0.0
    %113 = vmatpush1.msra.mxu0 0.0
    %114 = vmatprep.subr.mxu0 0.0
    %115 = vmatpush1.msra.mxu0 0.0
    %116 = vmatprep.subr.mxu0 0.0
    %117 = vmatpush1.msra.mxu0 0.0
    %118 = vmatprep.subr.mxu0 0.0
    %119 = vmatpush1.msra.mxu0 0.0
    %120 = vmatprep.subr.mxu0 0.0
    %121 = vmatpush1.msra.mxu0 0.0
    %122 = vmatprep.subr.mxu0 0.0
    %123 = vmatpush1.msra.mxu0 0.0
    %124 = vmatprep.subr.mxu0 0.0
    %125 = vmatpush1.msra.mxu0 0.0
    %126 = vmatprep.subr.mxu0 0.0
    %127 = vmatpush1.msra.mxu0 0.0
    %128 = vmatprep.subr.mxu0 0.0
    %129 = vmatpush1.msra.mxu0 0.0
    %130 = vmatprep.subr.mxu0 0.0
    %131 = vmatpush1.msra.mxu0 0.0
    %132 = vmatprep.subr.mxu0 0.0
    %133 = vmatpush1.msra.mxu0 0.0
    %134 = vmatprep.subr.mxu0 0.0
    %135 = vmatpush1.msra.mxu0 0.0
    %136 = vmatprep.subr.mxu0 0.0
    %137 = vmatpush1.msra.mxu0 0.0
    %138 = vmatprep.subr.mxu0 0.0
    %139 = vmatpush1.msra.mxu0 0.0
    %140 = vmatprep.subr.mxu0 0.0
    %141 = vmatpush1.msra.mxu0 0.0
    %142 = vmatprep.subr.mxu0 0.0
    %143 = vmatpush1.msra.mxu0 0.0
    %144 = vmatprep.subr.mxu0 0.0
    %145 = vmatpush1.msra.mxu0 0.0
    %146 = vmatprep.subr.mxu0 0.0
    %147 = vmatpush1.msra.mxu0 0.0
    %148 = vmatprep.subr.mxu0 0.0
    %149 = vmatpush1.msra.mxu0 0.0
    %150 = vmatprep.subr.mxu0 0.0
    %151 = vmatpush1.msra.mxu0 0.0
    %152 = vmatprep.subr.mxu0 0.0
    %153 = vmatpush1.msra.mxu0 0.0
    %154 = vmatprep.subr.mxu0 0.0
    %155 = vmatpush1.msra.mxu0 0.0
    %156 = vmatprep.subr.mxu0 0.0
    %157 = vmatpush1.msra.mxu0 0.0
    %158 = vmatprep.subr.mxu0 0.0
    %159 = vmatpush1.msra.mxu0 0.0
    %160 = vmatprep.subr.mxu0 0.0
    %161 = vmatpush1.msra.mxu0 0.0
    %162 = vmatprep.mubr.f32.mxu0 0.0
    %163 = vmatmul.mubr.f32.gmra.mrb[0].mxu0 %v26
    %v164 = vpop.f32.mrb[0].mxu0
    %v165 = vadd.f32 0.0, %v164
    %v166 = vpop.f32.mrb[0].mxu0
    %167 = vdwg.mxu0
    %v168 = vadd.f32 %v22, %v95
    %v169 = vadd.f32 %v23, %v165
    %v170 = vxor.u32 %v168, 2147483648
    %v171 = vxor.u32 %v169, 2147483648
    %v172 = vmul.f32 %v170, 1.442695
    %v173 = vpow.pop %v172
    %v174 = vmul.f32 %v171, 1.442695
    %v175 = vpow.pop %v174
    %v176 = vadd.f32 %v173, 1.0
    %v177 = vadd.f32 %v175, 1.0
    %v178 = vrcp.pop %v176
    %v179 = vmul.f32 1.0, %v178
    %v180 = vrcp.pop %v177
    %v181 = vmul.f32 1.0, %v180
    %v182 = vtanh.pop %v168
    %v183 = vtanh.pop %v169
    %v184 = vmul.f32 %v179, 0.0
    %v185 = vmul.f32 %v181, 0.0
    %188 = vrot.lane.b32.xlu0 %v182, 64
    %v189 = vpop.permute.xlu0 %188
    %190 = vrot.lane.b32.xlu0 %v183, 64
    %v191 = vpop.permute.xlu0 %190
    %v194 = vmul.f32 %v179, %v189
    %v195 = vmul.f32 %v181, %v191
    %198 = vrot.lane.b32.xlu0 %v194, 32
    %v199 = vpop.permute.xlu0 %198
    %200 = vrot.lane.b32.xlu0 %v195, 32
    %v201 = vpop.permute.xlu0 %200
    %v204 = vadd.f32 %v184, %v199
    %v205 = vadd.f32 %v185, %v201
    %v206 = vtanh.pop %v204
    %v207 = vtanh.pop %v205
    %210 = vrot.lane.b32.xlu0 %v206, 64
    %v211 = vpop.permute.xlu0 %210
    %212 = vrot.lane.b32.xlu0 %v207, 64
    %v213 = vpop.permute.xlu0 %212
    %v216 = vmul.f32 %v179, %v211
    %v217 = vmul.f32 %v181, %v213
    %220 = vrot.lane.b32.xlu0 %v216, 32
    %v221 = vpop.permute.xlu0 %220
    %222 = vrot.lane.b32.xlu0 %v217, 32
    %v223 = vpop.permute.xlu0 %222
    %vm226 = vcmask 257024
    %227 = vst.msk [vmem:[#allocation2] sm:$0xf] %vm226, %v221
    %228 = vst.msk [vmem:[#allocation2 + $0x4] sm:$0xf] %vm226, %v223
    %s229 = scalar_lea.vmem %s0, 8
    %v230 = vld [vmem:[%s229] sm:$0xf]
    %v231 = vld [vmem:[%s229 + $0x4] sm:$0xf]
    %v232 = vsel %vm24, %v221, 0
    %234 = vmatprep.subr.mxu0 0.0
    %235 = vmatpush1.msra.mxu0 %v14
    %236 = vmatprep.subr.mxu0 0.0
    %237 = vmatpush1.msra.mxu0 %v15
    %238 = vmatprep.subr.mxu0 0.0
    %239 = vmatpush1.msra.mxu0 %v16
    %240 = vmatprep.subr.mxu0 0.0
    %241 = vmatpush1.msra.mxu0 %v17
    %242 = vmatprep.subr.mxu0 0.0
    %243 = vmatpush1.msra.mxu0 0.0
    %244 = vmatprep.subr.mxu0 0.0
    %245 = vmatpush1.msra.mxu0 0.0
    %246 = vmatprep.subr.mxu0 0.0
    %247 = vmatpush1.msra.mxu0 0.0
    %248 = vmatprep.subr.mxu0 0.0
    %249 = vmatpush1.msra.mxu0 0.0
    %250 = vmatprep.subr.mxu0 0.0
    %251 = vmatpush1.msra.mxu0 0.0
    %252 = vmatprep.subr.mxu0 0.0
    %253 = vmatpush1.msra.mxu0 0.0
    %254 = vmatprep.subr.mxu0 0.0
    %255 = vmatpush1.msra.mxu0 0.0
    %256 = vmatprep.subr.mxu0 0.0
    %257 = vmatpush1.msra.mxu0 0.0
    %258 = vmatprep.subr.mxu0 0.0
    %259 = vmatpush1.msra.mxu0 0.0
    %260 = vmatprep.subr.mxu0 0.0
    %261 = vmatpush1.msra.mxu0 0.0
    %262 = vmatprep.subr.mxu0 0.0
    %263 = vmatpush1.msra.mxu0 0.0
    %264 = vmatprep.subr.mxu0 0.0
    %265 = vmatpush1.msra.mxu0 0.0
    %266 = vmatprep.subr.mxu0 0.0
    %267 = vmatpush1.msra.mxu0 0.0
    %268 = vmatprep.subr.mxu0 0.0
    %269 = vmatpush1.msra.mxu0 0.0
    %270 = vmatprep.subr.mxu0 0.0
    %271 = vmatpush1.msra.mxu0 0.0
    %272 = vmatprep.subr.mxu0 0.0
    %273 = vmatpush1.msra.mxu0 0.0
    %274 = vmatprep.subr.mxu0 0.0
    %275 = vmatpush1.msra.mxu0 0.0
    %276 = vmatprep.subr.mxu0 0.0
    %277 = vmatpush1.msra.mxu0 0.0
    %278 = vmatprep.subr.mxu0 0.0
    %279 = vmatpush1.msra.mxu0 0.0
    %280 = vmatprep.subr.mxu0 0.0
    %281 = vmatpush1.msra.mxu0 0.0
    %282 = vmatprep.subr.mxu0 0.0
    %283 = vmatpush1.msra.mxu0 0.0
    %284 = vmatprep.subr.mxu0 0.0
    %285 = vmatpush1.msra.mxu0 0.0
    %286 = vmatprep.subr.mxu0 0.0
    %287 = vmatpush1.msra.mxu0 0.0
    %288 = vmatprep.subr.mxu0 0.0
    %289 = vmatpush1.msra.mxu0 0.0
    %290 = vmatprep.subr.mxu0 0.0
    %291 = vmatpush1.msra.mxu0 0.0
    %292 = vmatprep.subr.mxu0 0.0
    %293 = vmatpush1.msra.mxu0 0.0
    %294 = vmatprep.subr.mxu0 0.0
    %295 = vmatpush1.msra.mxu0 0.0
    %296 = vmatprep.subr.mxu0 0.0
    %297 = vmatpush1.msra.mxu0 0.0
    %298 = vmatprep.mubr.f32.mxu0 0.0
    %299 = vmatmul.mubr.f32.gmra.mrb[0].mxu0 %v232
    %v300 = vpop.f32.mrb[0].mxu0
    %v301 = vadd.f32 0.0, %v300
    %v302 = vpop.f32.mrb[0].mxu0
    %303 = vdwg.mxu0
    %v304 = vsel %vm24, %v223, 0
    %306 = vmatprep.subr.mxu0 0.0
    %307 = vmatpush1.msra.mxu0 %v18
    %308 = vmatprep.subr.mxu0 0.0
    %309 = vmatpush1.msra.mxu0 %v19
    %310 = vmatprep.subr.mxu0 0.0
    %311 = vmatpush1.msra.mxu0 %v20
    %312 = vmatprep.subr.mxu0 0.0
    %313 = vmatpush1.msra.mxu0 %v21
    %314 = vmatprep.subr.mxu0 0.0
    %315 = vmatpush1.msra.mxu0 0.0
    %316 = vmatprep.subr.mxu0 0.0
    %317 = vmatpush1.msra.mxu0 0.0
    %318 = vmatprep.subr.mxu0 0.0
    %319 = vmatpush1.msra.mxu0 0.0
    %320 = vmatprep.subr.mxu0 0.0
    %321 = vmatpush1.msra.mxu0 0.0
    %322 = vmatprep.subr.mxu0 0.0
    %323 = vmatpush1.msra.mxu0 0.0
    %324 = vmatprep.subr.mxu0 0.0
    %325 = vmatpush1.msra.mxu0 0.0
    %326 = vmatprep.subr.mxu0 0.0
    %327 = vmatpush1.msra.mxu0 0.0
    %328 = vmatprep.subr.mxu0 0.0
    %329 = vmatpush1.msra.mxu0 0.0
    %330 = vmatprep.subr.mxu0 0.0
    %331 = vmatpush1.msra.mxu0 0.0
    %332 = vmatprep.subr.mxu0 0.0
    %333 = vmatpush1.msra.mxu0 0.0
    %334 = vmatprep.subr.mxu0 0.0
    %335 = vmatpush1.msra.mxu0 0.0
    %336 = vmatprep.subr.mxu0 0.0
    %337 = vmatpush1.msra.mxu0 0.0
    %338 = vmatprep.subr.mxu0 0.0
    %339 = vmatpush1.msra.mxu0 0.0
    %340 = vmatprep.subr.mxu0 0.0
    %341 = vmatpush1.msra.mxu0 0.0
    %342 = vmatprep.subr.mxu0 0.0
    %343 = vmatpush1.msra.mxu0 0.0
    %344 = vmatprep.subr.mxu0 0.0
    %345 = vmatpush1.msra.mxu0 0.0
    %346 = vmatprep.subr.mxu0 0.0
    %347 = vmatpush1.msra.mxu0 0.0
    %348 = vmatprep.subr.mxu0 0.0
    %349 = vmatpush1.msra.mxu0 0.0
    %350 = vmatprep.subr.mxu0 0.0
    %351 = vmatpush1.msra.mxu0 0.0
    %352 = vmatprep.subr.mxu0 0.0
    %353 = vmatpush1.msra.mxu0 0.0
    %354 = vmatprep.subr.mxu0 0.0
    %355 = vmatpush1.msra.mxu0 0.0
    %356 = vmatprep.subr.mxu0 0.0
    %357 = vmatpush1.msra.mxu0 0.0
    %358 = vmatprep.subr.mxu0 0.0
    %359 = vmatpush1.msra.mxu0 0.0
    %360 = vmatprep.subr.mxu0 0.0
    %361 = vmatpush1.msra.mxu0 0.0
    %362 = vmatprep.subr.mxu0 0.0
    %363 = vmatpush1.msra.mxu0 0.0
    %364 = vmatprep.subr.mxu0 0.0
    %365 = vmatpush1.msra.mxu0 0.0
    %366 = vmatprep.subr.mxu0 0.0
    %367 = vmatpush1.msra.mxu0 0.0
    %368 = vmatprep.subr.mxu0 0.0
    %369 = vmatpush1.msra.mxu0 0.0
    %370 = vmatprep.mubr.f32.mxu0 0.0
    %371 = vmatmul.mubr.f32.gmra.mrb[0].mxu0 %v304
    %v372 = vpop.f32.mrb[0].mxu0
    %v373 = vadd.f32 0.0, %v372
    %v374 = vpop.f32.mrb[0].mxu0
    %375 = vdwg.mxu0
    %v376 = vadd.f32 %v230, %v301
    %v377 = vadd.f32 %v231, %v373
    %v378 = vxor.u32 %v376, 2147483648
    %v379 = vxor.u32 %v377, 2147483648
    %v380 = vmul.f32 %v378, 1.442695
    %v381 = vpow.pop %v380
    %v382 = vmul.f32 %v379, 1.442695
    %v383 = vpow.pop %v382
    %v384 = vadd.f32 %v381, 1.0
    %v385 = vadd.f32 %v383, 1.0
    %v386 = vrcp.pop %v384
    %v387 = vmul.f32 1.0, %v386
    %v388 = vrcp.pop %v385
    %v389 = vmul.f32 1.0, %v388
    %v390 = vtanh.pop %v376
    %v391 = vtanh.pop %v377
    %v392 = vmul.f32 %v387, %v204
    %v393 = vmul.f32 %v389, %v205
    %396 = vrot.lane.b32.xlu0 %v390, 64
    %v397 = vpop.permute.xlu0 %396
    %398 = vrot.lane.b32.xlu0 %v391, 64
    %v399 = vpop.permute.xlu0 %398
    %v402 = vmul.f32 %v387, %v397
    %v403 = vmul.f32 %v389, %v399
    %406 = vrot.lane.b32.xlu0 %v402, 32
    %v407 = vpop.permute.xlu0 %406
    %408 = vrot.lane.b32.xlu0 %v403, 32
    %v409 = vpop.permute.xlu0 %408
    %v412 = vadd.f32 %v392, %v407
    %v413 = vadd.f32 %v393, %v409
    %v414 = vtanh.pop %v412
    %v415 = vtanh.pop %v413
    %418 = vrot.lane.b32.xlu0 %v414, 64
    %v419 = vpop.permute.xlu0 %418
    %420 = vrot.lane.b32.xlu0 %v415, 64
    %v421 = vpop.permute.xlu0 %420
    %v424 = vmul.f32 %v387, %v419
    %v425 = vmul.f32 %v389, %v421
    %428 = vrot.lane.b32.xlu0 %v424, 32
    %v429 = vpop.permute.xlu0 %428
    %430 = vrot.lane.b32.xlu0 %v425, 32
    %v431 = vpop.permute.xlu0 %430
    %s434 = scalar_lea.vmem [#allocation2], 8
    %435 = vst.msk [vmem:[%s434] sm:$0xf] %vm226, %v429
    %436 = vst.msk [vmem:[%s434 + $0x4] sm:$0xf] %vm226, %v431
    %s437 = scalar_lea.vmem %s0, 16
    %v438 = vld [vmem:[%s437] sm:$0xf]
    %v439 = vld [vmem:[%s437 + $0x4] sm:$0xf]
    %v440 = vsel %vm24, %v429, 0
    %442 = vmatprep.subr.mxu0 0.0
    %443 = vmatpush1.msra.mxu0 %v14
    %444 = vmatprep.subr.mxu0 0.0
    %445 = vmatpush1.msra.mxu0 %v15
    %446 = vmatprep.subr.mxu0 0.0
    %447 = vmatpush1.msra.mxu0 %v16
    %448 = vmatprep.subr.mxu0 0.0
    %449 = vmatpush1.msra.mxu0 %v17
    %450 = vmatprep.subr.mxu0 0.0
    %451 = vmatpush1.msra.mxu0 0.0
    %452 = vmatprep.subr.mxu0 0.0
    %453 = vmatpush1.msra.mxu0 0.0
    %454 = vmatprep.subr.mxu0 0.0
    %455 = vmatpush1.msra.mxu0 0.0
    %456 = vmatprep.subr.mxu0 0.0
    %457 = vmatpush1.msra.mxu0 0.0
    %458 = vmatprep.subr.mxu0 0.0
    %459 = vmatpush1.msra.mxu0 0.0
    %460 = vmatprep.subr.mxu0 0.0
    %461 = vmatpush1.msra.mxu0 0.0
    %462 = vmatprep.subr.mxu0 0.0
    %463 = vmatpush1.msra.mxu0 0.0
    %464 = vmatprep.subr.mxu0 0.0
    %465 = vmatpush1.msra.mxu0 0.0
    %466 = vmatprep.subr.mxu0 0.0
    %467 = vmatpush1.msra.mxu0 0.0
    %468 = vmatprep.subr.mxu0 0.0
    %469 = vmatpush1.msra.mxu0 0.0
    %470 = vmatprep.subr.mxu0 0.0
    %471 = vmatpush1.msra.mxu0 0.0
    %472 = vmatprep.subr.mxu0 0.0
    %473 = vmatpush1.msra.mxu0 0.0
    %474 = vmatprep.subr.mxu0 0.0
    %475 = vmatpush1.msra.mxu0 0.0
    %476 = vmatprep.subr.mxu0 0.0
    %477 = vmatpush1.msra.mxu0 0.0
    %478 = vmatprep.subr.mxu0 0.0
    %479 = vmatpush1.msra.mxu0 0.0
    %480 = vmatprep.subr.mxu0 0.0
    %481 = vmatpush1.msra.mxu0 0.0
    %482 = vmatprep.subr.mxu0 0.0
    %483 = vmatpush1.msra.mxu0 0.0
    %484 = vmatprep.subr.mxu0 0.0
    %485 = vmatpush1.msra.mxu0 0.0
    %486 = vmatprep.subr.mxu0 0.0
    %487 = vmatpush1.msra.mxu0 0.0
    %488 = vmatprep.subr.mxu0 0.0
    %489 = vmatpush1.msra.mxu0 0.0
    %490 = vmatprep.subr.mxu0 0.0
    %491 = vmatpush1.msra.mxu0 0.0
    %492 = vmatprep.subr.mxu0 0.0
    %493 = vmatpush1.msra.mxu0 0.0
    %494 = vmatprep.subr.mxu0 0.0
    %495 = vmatpush1.msra.mxu0 0.0
    %496 = vmatprep.subr.mxu0 0.0
    %497 = vmatpush1.msra.mxu0 0.0
    %498 = vmatprep.subr.mxu0 0.0
    %499 = vmatpush1.msra.mxu0 0.0
    %500 = vmatprep.subr.mxu0 0.0
    %501 = vmatpush1.msra.mxu0 0.0
    %502 = vmatprep.subr.mxu0 0.0
    %503 = vmatpush1.msra.mxu0 0.0
    %504 = vmatprep.subr.mxu0 0.0
    %505 = vmatpush1.msra.mxu0 0.0
    %506 = vmatprep.mubr.f32.mxu0 0.0
    %507 = vmatmul.mubr.f32.gmra.mrb[0].mxu0 %v440
    %v508 = vpop.f32.mrb[0].mxu0
    %v509 = vadd.f32 0.0, %v508
    %v510 = vpop.f32.mrb[0].mxu0
    %511 = vdwg.mxu0
    %v512 = vsel %vm24, %v431, 0
    %514 = vmatprep.subr.mxu0 0.0
    %515 = vmatpush1.msra.mxu0 %v18
    %516 = vmatprep.subr.mxu0 0.0
    %517 = vmatpush1.msra.mxu0 %v19
    %518 = vmatprep.subr.mxu0 0.0
    %519 = vmatpush1.msra.mxu0 %v20
    %520 = vmatprep.subr.mxu0 0.0
    %521 = vmatpush1.msra.mxu0 %v21
    %522 = vmatprep.subr.mxu0 0.0
    %523 = vmatpush1.msra.mxu0 0.0
    %524 = vmatprep.subr.mxu0 0.0
    %525 = vmatpush1.msra.mxu0 0.0
    %526 = vmatprep.subr.mxu0 0.0
    %527 = vmatpush1.msra.mxu0 0.0
    %528 = vmatprep.subr.mxu0 0.0
    %529 = vmatpush1.msra.mxu0 0.0
    %530 = vmatprep.subr.mxu0 0.0
    %531 = vmatpush1.msra.mxu0 0.0
    %532 = vmatprep.subr.mxu0 0.0
    %533 = vmatpush1.msra.mxu0 0.0
    %534 = vmatprep.subr.mxu0 0.0
    %535 = vmatpush1.msra.mxu0 0.0
    %536 = vmatprep.subr.mxu0 0.0
    %537 = vmatpush1.msra.mxu0 0.0
    %538 = vmatprep.subr.mxu0 0.0
    %539 = vmatpush1.msra.mxu0 0.0
    %540 = vmatprep.subr.mxu0 0.0
    %541 = vmatpush1.msra.mxu0 0.0
    %542 = vmatprep.subr.mxu0 0.0
    %543 = vmatpush1.msra.mxu0 0.0
    %544 = vmatprep.subr.mxu0 0.0
    %545 = vmatpush1.msra.mxu0 0.0
    %546 = vmatprep.subr.mxu0 0.0
    %547 = vmatpush1.msra.mxu0 0.0
    %548 = vmatprep.subr.mxu0 0.0
    %549 = vmatpush1.msra.mxu0 0.0
    %550 = vmatprep.subr.mxu0 0.0
    %551 = vmatpush1.msra.mxu0 0.0
    %552 = vmatprep.subr.mxu0 0.0
    %553 = vmatpush1.msra.mxu0 0.0
    %554 = vmatprep.subr.mxu0 0.0
    %555 = vmatpush1.msra.mxu0 0.0
    %556 = vmatprep.subr.mxu0 0.0
    %557 = vmatpush1.msra.mxu0 0.0
    %558 = vmatprep.subr.mxu0 0.0
    %559 = vmatpush1.msra.mxu0 0.0
    %560 = vmatprep.subr.mxu0 0.0
    %561 = vmatpush1.msra.mxu0 0.0
    %562 = vmatprep.subr.mxu0 0.0
    %563 = vmatpush1.msra.mxu0 0.0
    %564 = vmatprep.subr.mxu0 0.0
    %565 = vmatpush1.msra.mxu0 0.0
    %566 = vmatprep.subr.mxu0 0.0
    %567 = vmatpush1.msra.mxu0 0.0
    %568 = vmatprep.subr.mxu0 0.0
    %569 = vmatpush1.msra.mxu0 0.0
    %570 = vmatprep.subr.mxu0 0.0
    %571 = vmatpush1.msra.mxu0 0.0
    %572 = vmatprep.subr.mxu0 0.0
    %573 = vmatpush1.msra.mxu0 0.0
    %574 = vmatprep.subr.mxu0 0.0
    %575 = vmatpush1.msra.mxu0 0.0
    %576 = vmatprep.subr.mxu0 0.0
    %577 = vmatpush1.msra.mxu0 0.0
    %578 = vmatprep.mubr.f32.mxu0 0.0
    %579 = vmatmul.mubr.f32.gmra.mrb[0].mxu0 %v512
    %v580 = vpop.f32.mrb[0].mxu0
    %v581 = vadd.f32 0.0, %v580
    %v582 = vpop.f32.mrb[0].mxu0
    %583 = vdwg.mxu0
    %v584 = vadd.f32 %v438, %v509
    %v585 = vadd.f32 %v439, %v581
    %v586 = vxor.u32 %v584, 2147483648
    %v587 = vxor.u32 %v585, 2147483648
    %v588 = vmul.f32 %v586, 1.442695
    %v589 = vpow.pop %v588
    %v590 = vmul.f32 %v587, 1.442695
    %v591 = vpow.pop %v590
    %v592 = vadd.f32 %v589, 1.0
    %v593 = vadd.f32 %v591, 1.0
    %v594 = vrcp.pop %v592
    %v595 = vmul.f32 1.0, %v594
    %v596 = vrcp.pop %v593
    %v597 = vmul.f32 1.0, %v596
    %v598 = vtanh.pop %v584
    %v599 = vtanh.pop %v585
    %v600 = vmul.f32 %v595, %v412
    %v601 = vmul.f32 %v597, %v413
    %604 = vrot.lane.b32.xlu0 %v598, 64
    %v605 = vpop.permute.xlu0 %604
    %606 = vrot.lane.b32.xlu0 %v599, 64
    %v607 = vpop.permute.xlu0 %606
    %v610 = vmul.f32 %v595, %v605
    %v611 = vmul.f32 %v597, %v607
    %614 = vrot.lane.b32.xlu0 %v610, 32
    %v615 = vpop.permute.xlu0 %614
    %616 = vrot.lane.b32.xlu0 %v611, 32
    %v617 = vpop.permute.xlu0 %616
    %v620 = vadd.f32 %v600, %v615
    %v621 = vadd.f32 %v601, %v617
    %v622 = vtanh.pop %v620
    %v623 = vtanh.pop %v621
    %626 = vrot.lane.b32.xlu0 %v622, 64
    %v627 = vpop.permute.xlu0 %626
    %628 = vrot.lane.b32.xlu0 %v623, 64
    %v629 = vpop.permute.xlu0 %628
    %v632 = vmul.f32 %v595, %v627
    %v633 = vmul.f32 %v597, %v629
    %636 = vrot.lane.b32.xlu0 %v632, 32
    %v637 = vpop.permute.xlu0 %636
    %638 = vrot.lane.b32.xlu0 %v633, 32
    %v639 = vpop.permute.xlu0 %638
    %s642 = scalar_lea.vmem [#allocation2], 16
    %643 = vst.msk [vmem:[%s642] sm:$0xf] %vm226, %v637
    %644 = vst.msk [vmem:[%s642 + $0x4] sm:$0xf] %vm226, %v639
    %s645 = scalar_lea.vmem %s0, 24
    %v646 = vld [vmem:[%s645] sm:$0xf]
    %v647 = vld [vmem:[%s645 + $0x4] sm:$0xf]
    %v648 = vsel %vm24, %v637, 0
    %650 = vmatprep.subr.mxu0 0.0
    %651 = vmatpush1.msra.mxu0 %v14
    %652 = vmatprep.subr.mxu0 0.0
    %653 = vmatpush1.msra.mxu0 %v15
    %654 = vmatprep.subr.mxu0 0.0
    %655 = vmatpush1.msra.mxu0 %v16
    %656 = vmatprep.subr.mxu0 0.0
    %657 = vmatpush1.msra.mxu0 %v17
    %658 = vmatprep.subr.mxu0 0.0
    %659 = vmatpush1.msra.mxu0 0.0
    %660 = vmatprep.subr.mxu0 0.0
    %661 = vmatpush1.msra.mxu0 0.0
    %662 = vmatprep.subr.mxu0 0.0
    %663 = vmatpush1.msra.mxu0 0.0
    %664 = vmatprep.subr.mxu0 0.0
    %665 = vmatpush1.msra.mxu0 0.0
    %666 = vmatprep.subr.mxu0 0.0
    %667 = vmatpush1.msra.mxu0 0.0
    %668 = vmatprep.subr.mxu0 0.0
    %669 = vmatpush1.msra.mxu0 0.0
    %670 = vmatprep.subr.mxu0 0.0
    %671 = vmatpush1.msra.mxu0 0.0
    %672 = vmatprep.subr.mxu0 0.0
    %673 = vmatpush1.msra.mxu0 0.0
    %674 = vmatprep.subr.mxu0 0.0
    %675 = vmatpush1.msra.mxu0 0.0
    %676 = vmatprep.subr.mxu0 0.0
    %677 = vmatpush1.msra.mxu0 0.0
    %678 = vmatprep.subr.mxu0 0.0
    %679 = vmatpush1.msra.mxu0 0.0
    %680 = vmatprep.subr.mxu0 0.0
    %681 = vmatpush1.msra.mxu0 0.0
    %682 = vmatprep.subr.mxu0 0.0
    %683 = vmatpush1.msra.mxu0 0.0
    %684 = vmatprep.subr.mxu0 0.0
    %685 = vmatpush1.msra.mxu0 0.0
    %686 = vmatprep.subr.mxu0 0.0
    %687 = vmatpush1.msra.mxu0 0.0
    %688 = vmatprep.subr.mxu0 0.0
    %689 = vmatpush1.msra.mxu0 0.0
    %690 = vmatprep.subr.mxu0 0.0
    %691 = vmatpush1.msra.mxu0 0.0
    %692 = vmatprep.subr.mxu0 0.0
    %693 = vmatpush1.msra.mxu0 0.0
    %694 = vmatprep.subr.mxu0 0.0
    %695 = vmatpush1.msra.mxu0 0.0
    %696 = vmatprep.subr.mxu0 0.0
    %697 = vmatpush1.msra.mxu0 0.0
    %698 = vmatprep.subr.mxu0 0.0
    %699 = vmatpush1.msra.mxu0 0.0
    %700 = vmatprep.subr.mxu0 0.0
    %701 = vmatpush1.msra.mxu0 0.0
    %702 = vmatprep.subr.mxu0 0.0
    %703 = vmatpush1.msra.mxu0 0.0
    %704 = vmatprep.subr.mxu0 0.0
    %705 = vmatpush1.msra.mxu0 0.0
    %706 = vmatprep.subr.mxu0 0.0
    %707 = vmatpush1.msra.mxu0 0.0
    %708 = vmatprep.subr.mxu0 0.0
    %709 = vmatpush1.msra.mxu0 0.0
    %710 = vmatprep.subr.mxu0 0.0
    %711 = vmatpush1.msra.mxu0 0.0
    %712 = vmatprep.subr.mxu0 0.0
    %713 = vmatpush1.msra.mxu0 0.0
    %714 = vmatprep.mubr.f32.mxu0 0.0
    %715 = vmatmul.mubr.f32.gmra.mrb[0].mxu0 %v648
    %v716 = vpop.f32.mrb[0].mxu0
    %v717 = vadd.f32 0.0, %v716
    %v718 = vpop.f32.mrb[0].mxu0
    %719 = vdwg.mxu0
    %v720 = vsel %vm24, %v639, 0
    %722 = vmatprep.subr.mxu0 0.0
    %723 = vmatpush1.msra.mxu0 %v18
    %724 = vmatprep.subr.mxu0 0.0
    %725 = vmatpush1.msra.mxu0 %v19
    %726 = vmatprep.subr.mxu0 0.0
    %727 = vmatpush1.msra.mxu0 %v20
    %728 = vmatprep.subr.mxu0 0.0
    %729 = vmatpush1.msra.mxu0 %v21
    %730 = vmatprep.subr.mxu0 0.0
    %731 = vmatpush1.msra.mxu0 0.0
    %732 = vmatprep.subr.mxu0 0.0
    %733 = vmatpush1.msra.mxu0 0.0
    %734 = vmatprep.subr.mxu0 0.0
    %735 = vmatpush1.msra.mxu0 0.0
    %736 = vmatprep.subr.mxu0 0.0
    %737 = vmatpush1.msra.mxu0 0.0
    %738 = vmatprep.subr.mxu0 0.0
    %739 = vmatpush1.msra.mxu0 0.0
    %740 = vmatprep.subr.mxu0 0.0
    %741 = vmatpush1.msra.mxu0 0.0
    %742 = vmatprep.subr.mxu0 0.0
    %743 = vmatpush1.msra.mxu0 0.0
    %744 = vmatprep.subr.mxu0 0.0
    %745 = vmatpush1.msra.mxu0 0.0
    %746 = vmatprep.subr.mxu0 0.0
    %747 = vmatpush1.msra.mxu0 0.0
    %748 = vmatprep.subr.mxu0 0.0
    %749 = vmatpush1.msra.mxu0 0.0
    %750 = vmatprep.subr.mxu0 0.0
    %751 = vmatpush1.msra.mxu0 0.0
    %752 = vmatprep.subr.mxu0 0.0
    %753 = vmatpush1.msra.mxu0 0.0
    %754 = vmatprep.subr.mxu0 0.0
    %755 = vmatpush1.msra.mxu0 0.0
    %756 = vmatprep.subr.mxu0 0.0
    %757 = vmatpush1.msra.mxu0 0.0
    %758 = vmatprep.subr.mxu0 0.0
    %759 = vmatpush1.msra.mxu0 0.0
    %760 = vmatprep.subr.mxu0 0.0
    %761 = vmatpush1.msra.mxu0 0.0
    %762 = vmatprep.subr.mxu0 0.0
    %763 = vmatpush1.msra.mxu0 0.0
    %764 = vmatprep.subr.mxu0 0.0
    %765 = vmatpush1.msra.mxu0 0.0
    %766 = vmatprep.subr.mxu0 0.0
    %767 = vmatpush1.msra.mxu0 0.0
    %768 = vmatprep.subr.mxu0 0.0
    %769 = vmatpush1.msra.mxu0 0.0
    %770 = vmatprep.subr.mxu0 0.0
    %771 = vmatpush1.msra.mxu0 0.0
    %772 = vmatprep.subr.mxu0 0.0
    %773 = vmatpush1.msra.mxu0 0.0
    %774 = vmatprep.subr.mxu0 0.0
    %775 = vmatpush1.msra.mxu0 0.0
    %776 = vmatprep.subr.mxu0 0.0
    %777 = vmatpush1.msra.mxu0 0.0
    %778 = vmatprep.subr.mxu0 0.0
    %779 = vmatpush1.msra.mxu0 0.0
    %780 = vmatprep.subr.mxu0 0.0
    %781 = vmatpush1.msra.mxu0 0.0
    %782 = vmatprep.subr.mxu0 0.0
    %783 = vmatpush1.msra.mxu0 0.0
    %784 = vmatprep.subr.mxu0 0.0
    %785 = vmatpush1.msra.mxu0 0.0
    %786 = vmatprep.mubr.f32.mxu0 0.0
    %787 = vmatmul.mubr.f32.gmra.mrb[0].mxu0 %v720
    %v788 = vpop.f32.mrb[0].mxu0
    %v789 = vadd.f32 0.0, %v788
    %v790 = vpop.f32.mrb[0].mxu0
    %791 = vdwg.mxu0
    %v792 = vadd.f32 %v646, %v717
    %v793 = vadd.f32 %v647, %v789
    %v794 = vxor.u32 %v792, 2147483648
    %v795 = vxor.u32 %v793, 2147483648
    %v796 = vmul.f32 %v794, 1.442695
    %v797 = vpow.pop %v796
    %v798 = vmul.f32 %v795, 1.442695
    %v799 = vpow.pop %v798
    %v800 = vadd.f32 %v797, 1.0
    %v801 = vadd.f32 %v799, 1.0
    %v802 = vrcp.pop %v800
    %v803 = vmul.f32 1.0, %v802
    %v804 = vrcp.pop %v801
    %v805 = vmul.f32 1.0, %v804
    %v806 = vtanh.pop %v792
    %v807 = vtanh.pop %v793
    %v808 = vmul.f32 %v803, %v620
    %v809 = vmul.f32 %v805, %v621
    %812 = vrot.lane.b32.xlu0 %v806, 64
    %v813 = vpop.permute.xlu0 %812
    %814 = vrot.lane.b32.xlu0 %v807, 64
    %v815 = vpop.permute.xlu0 %814
    %v818 = vmul.f32 %v803, %v813
    %v819 = vmul.f32 %v805, %v815
    %822 = vrot.lane.b32.xlu0 %v818, 32
    %v823 = vpop.permute.xlu0 %822
    %824 = vrot.lane.b32.xlu0 %v819, 32
    %v825 = vpop.permute.xlu0 %824
    %v828 = vadd.f32 %v808, %v823
    %v829 = vadd.f32 %v809, %v825
    %v830 = vtanh.pop %v828
    %v831 = vtanh.pop %v829
    %834 = vrot.lane.b32.xlu0 %v830, 64
    %v835 = vpop.permute.xlu0 %834
    %836 = vrot.lane.b32.xlu0 %v831, 64
    %v837 = vpop.permute.xlu0 %836
    %v840 = vmul.f32 %v803, %v835
    %v841 = vmul.f32 %v805, %v837
    %844 = vrot.lane.b32.xlu0 %v840, 32
    %v845 = vpop.permute.xlu0 %844
    %846 = vrot.lane.b32.xlu0 %v841, 32
    %v847 = vpop.permute.xlu0 %846
    %s850 = scalar_lea.vmem [#allocation2], 24
    %851 = vst.msk [vmem:[%s850] sm:$0xf] %vm226, %v845
    %852 = vst.msk [vmem:[%s850 + $0x4] sm:$0xf] %vm226, %v847
    %s853 = scalar_lea.vmem %s0, 32
    %v854 = vld [vmem:[%s853] sm:$0xf]
    %v855 = vld [vmem:[%s853 + $0x4] sm:$0xf]
    %v856 = vsel %vm24, %v845, 0
    %858 = vmatprep.subr.mxu0 0.0
    %859 = vmatpush1.msra.mxu0 %v14
    %860 = vmatprep.subr.mxu0 0.0
    %861 = vmatpush1.msra.mxu0 %v15
    %862 = vmatprep.subr.mxu0 0.0
    %863 = vmatpush1.msra.mxu0 %v16
    %864 = vmatprep.subr.mxu0 0.0
    %865 = vmatpush1.msra.mxu0 %v17
    %866 = vmatprep.subr.mxu0 0.0
    %867 = vmatpush1.msra.mxu0 0.0
    %868 = vmatprep.subr.mxu0 0.0
    %869 = vmatpush1.msra.mxu0 0.0
    %870 = vmatprep.subr.mxu0 0.0
    %871 = vmatpush1.msra.mxu0 0.0
    %872 = vmatprep.subr.mxu0 0.0
    %873 = vmatpush1.msra.mxu0 0.0
    %874 = vmatprep.subr.mxu0 0.0
    %875 = vmatpush1.msra.mxu0 0.0
    %876 = vmatprep.subr.mxu0 0.0
    %877 = vmatpush1.msra.mxu0 0.0
    %878 = vmatprep.subr.mxu0 0.0
    %879 = vmatpush1.msra.mxu0 0.0
    %880 = vmatprep.subr.mxu0 0.0
    %881 = vmatpush1.msra.mxu0 0.0
    %882 = vmatprep.subr.mxu0 0.0
    %883 = vmatpush1.msra.mxu0 0.0
    %884 = vmatprep.subr.mxu0 0.0
    %885 = vmatpush1.msra.mxu0 0.0
    %886 = vmatprep.subr.mxu0 0.0
    %887 = vmatpush1.msra.mxu0 0.0
    %888 = vmatprep.subr.mxu0 0.0
    %889 = vmatpush1.msra.mxu0 0.0
    %890 = vmatprep.subr.mxu0 0.0
    %891 = vmatpush1.msra.mxu0 0.0
    %892 = vmatprep.subr.mxu0 0.0
    %893 = vmatpush1.msra.mxu0 0.0
    %894 = vmatprep.subr.mxu0 0.0
    %895 = vmatpush1.msra.mxu0 0.0
    %896 = vmatprep.subr.mxu0 0.0
    %897 = vmatpush1.msra.mxu0 0.0
    %898 = vmatprep.subr.mxu0 0.0
    %899 = vmatpush1.msra.mxu0 0.0
    %900 = vmatprep.subr.mxu0 0.0
    %901 = vmatpush1.msra.mxu0 0.0
    %902 = vmatprep.subr.mxu0 0.0
    %903 = vmatpush1.msra.mxu0 0.0
    %904 = vmatprep.subr.mxu0 0.0
    %905 = vmatpush1.msra.mxu0 0.0
    %906 = vmatprep.subr.mxu0 0.0
    %907 = vmatpush1.msra.mxu0 0.0
    %908 = vmatprep.subr.mxu0 0.0
    %909 = vmatpush1.msra.mxu0 0.0
    %910 = vmatprep.subr.mxu0 0.0
    %911 = vmatpush1.msra.mxu0 0.0
    %912 = vmatprep.subr.mxu0 0.0
    %913 = vmatpush1.msra.mxu0 0.0
    %914 = vmatprep.subr.mxu0 0.0
    %915 = vmatpush1.msra.mxu0 0.0
    %916 = vmatprep.subr.mxu0 0.0
    %917 = vmatpush1.msra.mxu0 0.0
    %918 = vmatprep.subr.mxu0 0.0
    %919 = vmatpush1.msra.mxu0 0.0
    %920 = vmatprep.subr.mxu0 0.0
    %921 = vmatpush1.msra.mxu0 0.0
    %922 = vmatprep.mubr.f32.mxu0 0.0
    %923 = vmatmul.mubr.f32.gmra.mrb[0].mxu0 %v856
    %v924 = vpop.f32.mrb[0].mxu0
    %v925 = vadd.f32 0.0, %v924
    %v926 = vpop.f32.mrb[0].mxu0
    %927 = vdwg.mxu0
    %v928 = vsel %vm24, %v847, 0
    %930 = vmatprep.subr.mxu0 0.0
    %931 = vmatpush1.msra.mxu0 %v18
    %932 = vmatprep.subr.mxu0 0.0
    %933 = vmatpush1.msra.mxu0 %v19
    %934 = vmatprep.subr.mxu0 0.0
    %935 = vmatpush1.msra.mxu0 %v20
    %936 = vmatprep.subr.mxu0 0.0
    %937 = vmatpush1.msra.mxu0 %v21
    %938 = vmatprep.subr.mxu0 0.0
    %939 = vmatpush1.msra.mxu0 0.0
    %940 = vmatprep.subr.mxu0 0.0
    %941 = vmatpush1.msra.mxu0 0.0
    %942 = vmatprep.subr.mxu0 0.0
    %943 = vmatpush1.msra.mxu0 0.0
    %944 = vmatprep.subr.mxu0 0.0
    %945 = vmatpush1.msra.mxu0 0.0
    %946 = vmatprep.subr.mxu0 0.0
    %947 = vmatpush1.msra.mxu0 0.0
    %948 = vmatprep.subr.mxu0 0.0
    %949 = vmatpush1.msra.mxu0 0.0
    %950 = vmatprep.subr.mxu0 0.0
    %951 = vmatpush1.msra.mxu0 0.0
    %952 = vmatprep.subr.mxu0 0.0
    %953 = vmatpush1.msra.mxu0 0.0
    %954 = vmatprep.subr.mxu0 0.0
    %955 = vmatpush1.msra.mxu0 0.0
    %956 = vmatprep.subr.mxu0 0.0
    %957 = vmatpush1.msra.mxu0 0.0
    %958 = vmatprep.subr.mxu0 0.0
    %959 = vmatpush1.msra.mxu0 0.0
    %960 = vmatprep.subr.mxu0 0.0
    %961 = vmatpush1.msra.mxu0 0.0
    %962 = vmatprep.subr.mxu0 0.0
    %963 = vmatpush1.msra.mxu0 0.0
    %964 = vmatprep.subr.mxu0 0.0
    %965 = vmatpush1.msra.mxu0 0.0
    %966 = vmatprep.subr.mxu0 0.0
    %967 = vmatpush1.msra.mxu0 0.0
    %968 = vmatprep.subr.mxu0 0.0
    %969 = vmatpush1.msra.mxu0 0.0
    %970 = vmatprep.subr.mxu0 0.0
    %971 = vmatpush1.msra.mxu0 0.0
    %972 = vmatprep.subr.mxu0 0.0
    %973 = vmatpush1.msra.mxu0 0.0
    %974 = vmatprep.subr.mxu0 0.0
    %975 = vmatpush1.msra.mxu0 0.0
    %976 = vmatprep.subr.mxu0 0.0
    %977 = vmatpush1.msra.mxu0 0.0
    %978 = vmatprep.subr.mxu0 0.0
    %979 = vmatpush1.msra.mxu0 0.0
    %980 = vmatprep.subr.mxu0 0.0
    %981 = vmatpush1.msra.mxu0 0.0
    %982 = vmatprep.subr.mxu0 0.0
    %983 = vmatpush1.msra.mxu0 0.0
    %984 = vmatprep.subr.mxu0 0.0
    %985 = vmatpush1.msra.mxu0 0.0
    %986 = vmatprep.subr.mxu0 0.0
    %987 = vmatpush1.msra.mxu0 0.0
    %988 = vmatprep.subr.mxu0 0.0
    %989 = vmatpush1.msra.mxu0 0.0
    %990 = vmatprep.subr.mxu0 0.0
    %991 = vmatpush1.msra.mxu0 0.0
    %992 = vmatprep.subr.mxu0 0.0
    %993 = vmatpush1.msra.mxu0 0.0
    %994 = vmatprep.mubr.f32.mxu0 0.0
    %995 = vmatmul.mubr.f32.gmra.mrb[0].mxu0 %v928
    %v996 = vpop.f32.mrb[0].mxu0
    %v997 = vadd.f32 0.0, %v996
    %v998 = vpop.f32.mrb[0].mxu0
    %999 = vdwg.mxu0
    %v1000 = vadd.f32 %v854, %v925
    %v1001 = vadd.f32 %v855, %v997
    %v1002 = vxor.u32 %v1000, 2147483648
    %v1003 = vxor.u32 %v1001, 2147483648
    %v1004 = vmul.f32 %v1002, 1.442695
    %v1005 = vpow.pop %v1004
    %v1006 = vmul.f32 %v1003, 1.442695
    %v1007 = vpow.pop %v1006
    %v1008 = vadd.f32 %v1005, 1.0
    %v1009 = vadd.f32 %v1007, 1.0
    %v1010 = vrcp.pop %v1008
    %v1011 = vmul.f32 1.0, %v1010
    %v1012 = vrcp.pop %v1009
    %v1013 = vmul.f32 1.0, %v1012
    %v1014 = vtanh.pop %v1000
    %v1015 = vtanh.pop %v1001
    %v1016 = vmul.f32 %v1011, %v828
    %v1017 = vmul.f32 %v1013, %v829
    %1020 = vrot.lane.b32.xlu0 %v1014, 64
    %v1021 = vpop.permute.xlu0 %1020
    %1022 = vrot.lane.b32.xlu0 %v1015, 64
    %v1023 = vpop.permute.xlu0 %1022
    %v1026 = vmul.f32 %v1011, %v1021
    %v1027 = vmul.f32 %v1013, %v1023
    %1030 = vrot.lane.b32.xlu0 %v1026, 32
    %v1031 = vpop.permute.xlu0 %1030
    %1032 = vrot.lane.b32.xlu0 %v1027, 32
    %v1033 = vpop.permute.xlu0 %1032
    %v1036 = vadd.f32 %v1016, %v1031
    %v1037 = vadd.f32 %v1017, %v1033
    %v1038 = vtanh.pop %v1036
    %v1039 = vtanh.pop %v1037
    %1042 = vrot.lane.b32.xlu0 %v1038, 64
    %v1043 = vpop.permute.xlu0 %1042
    %1044 = vrot.lane.b32.xlu0 %v1039, 64
    %v1045 = vpop.permute.xlu0 %1044
    %v1048 = vmul.f32 %v1011, %v1043
    %v1049 = vmul.f32 %v1013, %v1045
    %1052 = vrot.lane.b32.xlu0 %v1048, 32
    %v1053 = vpop.permute.xlu0 %1052
    %1054 = vrot.lane.b32.xlu0 %v1049, 32
    %v1055 = vpop.permute.xlu0 %1054
    %s1058 = scalar_lea.vmem [#allocation2], 32
    %1059 = vst.msk [vmem:[%s1058] sm:$0xf] %vm226, %v1053
    %1060 = vst.msk [vmem:[%s1058 + $0x4] sm:$0xf] %vm226, %v1055
    %s1061 = scalar_lea.vmem %s0, 40
    %v1062 = vld [vmem:[%s1061] sm:$0xf]
    %v1063 = vld [vmem:[%s1061 + $0x4] sm:$0xf]
    %v1064 = vsel %vm24, %v1053, 0
    %1066 = vmatprep.subr.mxu0 0.0
    %1067 = vmatpush1.msra.mxu0 %v14
    %1068 = vmatprep.subr.mxu0 0.0
    %1069 = vmatpush1.msra.mxu0 %v15
    %1070 = vmatprep.subr.mxu0 0.0
    %1071 = vmatpush1.msra.mxu0 %v16
    %1072 = vmatprep.subr.mxu0 0.0
    %1073 = vmatpush1.msra.mxu0 %v17
    %1074 = vmatprep.subr.mxu0 0.0
    %1075 = vmatpush1.msra.mxu0 0.0
    %1076 = vmatprep.subr.mxu0 0.0
    %1077 = vmatpush1.msra.mxu0 0.0
    %1078 = vmatprep.subr.mxu0 0.0
    %1079 = vmatpush1.msra.mxu0 0.0
    %1080 = vmatprep.subr.mxu0 0.0
    %1081 = vmatpush1.msra.mxu0 0.0
    %1082 = vmatprep.subr.mxu0 0.0
    %1083 = vmatpush1.msra.mxu0 0.0
    %1084 = vmatprep.subr.mxu0 0.0
    %1085 = vmatpush1.msra.mxu0 0.0
    %1086 = vmatprep.subr.mxu0 0.0
    %1087 = vmatpush1.msra.mxu0 0.0
    %1088 = vmatprep.subr.mxu0 0.0
    %1089 = vmatpush1.msra.mxu0 0.0
    %1090 = vmatprep.subr.mxu0 0.0
    %1091 = vmatpush1.msra.mxu0 0.0
    %1092 = vmatprep.subr.mxu0 0.0
    %1093 = vmatpush1.msra.mxu0 0.0
    %1094 = vmatprep.subr.mxu0 0.0
    %1095 = vmatpush1.msra.mxu0 0.0
    %1096 = vmatprep.subr.mxu0 0.0
    %1097 = vmatpush1.msra.mxu0 0.0
    %1098 = vmatprep.subr.mxu0 0.0
    %1099 = vmatpush1.msra.mxu0 0.0
    %1100 = vmatprep.subr.mxu0 0.0
    %1101 = vmatpush1.msra.mxu0 0.0
    %1102 = vmatprep.subr.mxu0 0.0
    %1103 = vmatpush1.msra.mxu0 0.0
    %1104 = vmatprep.subr.mxu0 0.0
    %1105 = vmatpush1.msra.mxu0 0.0
    %1106 = vmatprep.subr.mxu0 0.0
    %1107 = vmatpush1.msra.mxu0 0.0
    %1108 = vmatprep.subr.mxu0 0.0
    %1109 = vmatpush1.msra.mxu0 0.0
    %1110 = vmatprep.subr.mxu0 0.0
    %1111 = vmatpush1.msra.mxu0 0.0
    %1112 = vmatprep.subr.mxu0 0.0
    %1113 = vmatpush1.msra.mxu0 0.0
    %1114 = vmatprep.subr.mxu0 0.0
    %1115 = vmatpush1.msra.mxu0 0.0
    %1116 = vmatprep.subr.mxu0 0.0
    %1117 = vmatpush1.msra.mxu0 0.0
    %1118 = vmatprep.subr.mxu0 0.0
    %1119 = vmatpush1.msra.mxu0 0.0
    %1120 = vmatprep.subr.mxu0 0.0
    %1121 = vmatpush1.msra.mxu0 0.0
    %1122 = vmatprep.subr.mxu0 0.0
    %1123 = vmatpush1.msra.mxu0 0.0
    %1124 = vmatprep.subr.mxu0 0.0
    %1125 = vmatpush1.msra.mxu0 0.0
    %1126 = vmatprep.subr.mxu0 0.0
    %1127 = vmatpush1.msra.mxu0 0.0
    %1128 = vmatprep.subr.mxu0 0.0
    %1129 = vmatpush1.msra.mxu0 0.0
    %1130 = vmatprep.mubr.f32.mxu0 0.0
    %1131 = vmatmul.mubr.f32.gmra.mrb[0].mxu0 %v1064
    %v1132 = vpop.f32.mrb[0].mxu0
    %v1133 = vadd.f32 0.0, %v1132
    %v1134 = vpop.f32.mrb[0].mxu0
    %1135 = vdwg.mxu0
    %v1136 = vsel %vm24, %v1055, 0
    %1138 = vmatprep.subr.mxu0 0.0
    %1139 = vmatpush1.msra.mxu0 %v18
    %1140 = vmatprep.subr.mxu0 0.0
    %1141 = vmatpush1.msra.mxu0 %v19
    %1142 = vmatprep.subr.mxu0 0.0
    %1143 = vmatpush1.msra.mxu0 %v20
    %1144 = vmatprep.subr.mxu0 0.0
    %1145 = vmatpush1.msra.mxu0 %v21
    %1146 = vmatprep.subr.mxu0 0.0
    %1147 = vmatpush1.msra.mxu0 0.0
    %1148 = vmatprep.subr.mxu0 0.0
    %1149 = vmatpush1.msra.mxu0 0.0
    %1150 = vmatprep.subr.mxu0 0.0
    %1151 = vmatpush1.msra.mxu0 0.0
    %1152 = vmatprep.subr.mxu0 0.0
    %1153 = vmatpush1.msra.mxu0 0.0
    %1154 = vmatprep.subr.mxu0 0.0
    %1155 = vmatpush1.msra.mxu0 0.0
    %1156 = vmatprep.subr.mxu0 0.0
    %1157 = vmatpush1.msra.mxu0 0.0
    %1158 = vmatprep.subr.mxu0 0.0
    %1159 = vmatpush1.msra.mxu0 0.0
    %1160 = vmatprep.subr.mxu0 0.0
    %1161 = vmatpush1.msra.mxu0 0.0
    %1162 = vmatprep.subr.mxu0 0.0
    %1163 = vmatpush1.msra.mxu0 0.0
    %1164 = vmatprep.subr.mxu0 0.0
    %1165 = vmatpush1.msra.mxu0 0.0
    %1166 = vmatprep.subr.mxu0 0.0
    %1167 = vmatpush1.msra.mxu0 0.0
    %1168 = vmatprep.subr.mxu0 0.0
    %1169 = vmatpush1.msra.mxu0 0.0
    %1170 = vmatprep.subr.mxu0 0.0
    %1171 = vmatpush1.msra.mxu0 0.0
    %1172 = vmatprep.subr.mxu0 0.0
    %1173 = vmatpush1.msra.mxu0 0.0
    %1174 = vmatprep.subr.mxu0 0.0
    %1175 = vmatpush1.msra.mxu0 0.0
    %1176 = vmatprep.subr.mxu0 0.0
    %1177 = vmatpush1.msra.mxu0 0.0
    %1178 = vmatprep.subr.mxu0 0.0
    %1179 = vmatpush1.msra.mxu0 0.0
    %1180 = vmatprep.subr.mxu0 0.0
    %1181 = vmatpush1.msra.mxu0 0.0
    %1182 = vmatprep.subr.mxu0 0.0
    %1183 = vmatpush1.msra.mxu0 0.0
    %1184 = vmatprep.subr.mxu0 0.0
    %1185 = vmatpush1.msra.mxu0 0.0
    %1186 = vmatprep.subr.mxu0 0.0
    %1187 = vmatpush1.msra.mxu0 0.0
    %1188 = vmatprep.subr.mxu0 0.0
    %1189 = vmatpush1.msra.mxu0 0.0
    %1190 = vmatprep.subr.mxu0 0.0
    %1191 = vmatpush1.msra.mxu0 0.0
    %1192 = vmatprep.subr.mxu0 0.0
    %1193 = vmatpush1.msra.mxu0 0.0
    %1194 = vmatprep.subr.mxu0 0.0
    %1195 = vmatpush1.msra.mxu0 0.0
    %1196 = vmatprep.subr.mxu0 0.0
    %1197 = vmatpush1.msra.mxu0 0.0
    %1198 = vmatprep.subr.mxu0 0.0
    %1199 = vmatpush1.msra.mxu0 0.0
    %1200 = vmatprep.subr.mxu0 0.0
    %1201 = vmatpush1.msra.mxu0 0.0
    %1202 = vmatprep.mubr.f32.mxu0 0.0
    %1203 = vmatmul.mubr.f32.gmra.mrb[0].mxu0 %v1136
    %v1204 = vpop.f32.mrb[0].mxu0
    %v1205 = vadd.f32 0.0, %v1204
    %v1206 = vpop.f32.mrb[0].mxu0
    %1207 = vdwg.mxu0
    %v1208 = vadd.f32 %v1062, %v1133
    %v1209 = vadd.f32 %v1063, %v1205
    %v1210 = vxor.u32 %v1208, 2147483648
    %v1211 = vxor.u32 %v1209, 2147483648
    %v1212 = vmul.f32 %v1210, 1.442695
    %v1213 = vpow.pop %v1212
    %v1214 = vmul.f32 %v1211, 1.442695
    %v1215 = vpow.pop %v1214
    %v1216 = vadd.f32 %v1213, 1.0
    %v1217 = vadd.f32 %v1215, 1.0
    %v1218 = vrcp.pop %v1216
    %v1219 = vmul.f32 1.0, %v1218
    %v1220 = vrcp.pop %v1217
    %v1221 = vmul.f32 1.0, %v1220
    %v1222 = vtanh.pop %v1208
    %v1223 = vtanh.pop %v1209
    %v1224 = vmul.f32 %v1219, %v1036
    %v1225 = vmul.f32 %v1221, %v1037
    %1228 = vrot.lane.b32.xlu0 %v1222, 64
    %v1229 = vpop.permute.xlu0 %1228
    %1230 = vrot.lane.b32.xlu0 %v1223, 64
    %v1231 = vpop.permute.xlu0 %1230
    %v1234 = vmul.f32 %v1219, %v1229
    %v1235 = vmul.f32 %v1221, %v1231
    %1238 = vrot.lane.b32.xlu0 %v1234, 32
    %v1239 = vpop.permute.xlu0 %1238
    %1240 = vrot.lane.b32.xlu0 %v1235, 32
    %v1241 = vpop.permute.xlu0 %1240
    %v1244 = vadd.f32 %v1224, %v1239
    %v1245 = vadd.f32 %v1225, %v1241
    %v1246 = vtanh.pop %v1244
    %v1247 = vtanh.pop %v1245
    %1250 = vrot.lane.b32.xlu0 %v1246, 64
    %v1251 = vpop.permute.xlu0 %1250
    %1252 = vrot.lane.b32.xlu0 %v1247, 64
    %v1253 = vpop.permute.xlu0 %1252
    %v1256 = vmul.f32 %v1219, %v1251
    %v1257 = vmul.f32 %v1221, %v1253
    %1260 = vrot.lane.b32.xlu0 %v1256, 32
    %v1261 = vpop.permute.xlu0 %1260
    %1262 = vrot.lane.b32.xlu0 %v1257, 32
    %v1263 = vpop.permute.xlu0 %1262
    %s1266 = scalar_lea.vmem [#allocation2], 40
    %1267 = vst.msk [vmem:[%s1266] sm:$0xf] %vm226, %v1261
    %1268 = vst.msk [vmem:[%s1266 + $0x4] sm:$0xf] %vm226, %v1263
    %s1269 = scalar_lea.vmem %s0, 48
    %v1270 = vld [vmem:[%s1269] sm:$0xf]
    %v1271 = vld [vmem:[%s1269 + $0x4] sm:$0xf]
    %v1272 = vsel %vm24, %v1261, 0
    %1274 = vmatprep.subr.mxu0 0.0
    %1275 = vmatpush1.msra.mxu0 %v14
    %1276 = vmatprep.subr.mxu0 0.0
    %1277 = vmatpush1.msra.mxu0 %v15
    %1278 = vmatprep.subr.mxu0 0.0
    %1279 = vmatpush1.msra.mxu0 %v16
    %1280 = vmatprep.subr.mxu0 0.0
    %1281 = vmatpush1.msra.mxu0 %v17
    %1282 = vmatprep.subr.mxu0 0.0
    %1283 = vmatpush1.msra.mxu0 0.0
    %1284 = vmatprep.subr.mxu0 0.0
    %1285 = vmatpush1.msra.mxu0 0.0
    %1286 = vmatprep.subr.mxu0 0.0
    %1287 = vmatpush1.msra.mxu0 0.0
    %1288 = vmatprep.subr.mxu0 0.0
    %1289 = vmatpush1.msra.mxu0 0.0
    %1290 = vmatprep.subr.mxu0 0.0
    %1291 = vmatpush1.msra.mxu0 0.0
    %1292 = vmatprep.subr.mxu0 0.0
    %1293 = vmatpush1.msra.mxu0 0.0
    %1294 = vmatprep.subr.mxu0 0.0
    %1295 = vmatpush1.msra.mxu0 0.0
    %1296 = vmatprep.subr.mxu0 0.0
    %1297 = vmatpush1.msra.mxu0 0.0
    %1298 = vmatprep.subr.mxu0 0.0
    %1299 = vmatpush1.msra.mxu0 0.0
    %1300 = vmatprep.subr.mxu0 0.0
    %1301 = vmatpush1.msra.mxu0 0.0
    %1302 = vmatprep.subr.mxu0 0.0
    %1303 = vmatpush1.msra.mxu0 0.0
    %1304 = vmatprep.subr.mxu0 0.0
    %1305 = vmatpush1.msra.mxu0 0.0
    %1306 = vmatprep.subr.mxu0 0.0
    %1307 = vmatpush1.msra.mxu0 0.0
    %1308 = vmatprep.subr.mxu0 0.0
    %1309 = vmatpush1.msra.mxu0 0.0
    %1310 = vmatprep.subr.mxu0 0.0
    %1311 = vmatpush1.msra.mxu0 0.0
    %1312 = vmatprep.subr.mxu0 0.0
    %1313 = vmatpush1.msra.mxu0 0.0
    %1314 = vmatprep.subr.mxu0 0.0
    %1315 = vmatpush1.msra.mxu0 0.0
    %1316 = vmatprep.subr.mxu0 0.0
    %1317 = vmatpush1.msra.mxu0 0.0
    %1318 = vmatprep.subr.mxu0 0.0
    %1319 = vmatpush1.msra.mxu0 0.0
    %1320 = vmatprep.subr.mxu0 0.0
    %1321 = vmatpush1.msra.mxu0 0.0
    %1322 = vmatprep.subr.mxu0 0.0
    %1323 = vmatpush1.msra.mxu0 0.0
    %1324 = vmatprep.subr.mxu0 0.0
    %1325 = vmatpush1.msra.mxu0 0.0
    %1326 = vmatprep.subr.mxu0 0.0
    %1327 = vmatpush1.msra.mxu0 0.0
    %1328 = vmatprep.subr.mxu0 0.0
    %1329 = vmatpush1.msra.mxu0 0.0
    %1330 = vmatprep.subr.mxu0 0.0
    %1331 = vmatpush1.msra.mxu0 0.0
    %1332 = vmatprep.subr.mxu0 0.0
    %1333 = vmatpush1.msra.mxu0 0.0
    %1334 = vmatprep.subr.mxu0 0.0
    %1335 = vmatpush1.msra.mxu0 0.0
    %1336 = vmatprep.subr.mxu0 0.0
    %1337 = vmatpush1.msra.mxu0 0.0
    %1338 = vmatprep.mubr.f32.mxu0 0.0
    %1339 = vmatmul.mubr.f32.gmra.mrb[0].mxu0 %v1272
    %v1340 = vpop.f32.mrb[0].mxu0
    %v1341 = vadd.f32 0.0, %v1340
    %v1342 = vpop.f32.mrb[0].mxu0
    %1343 = vdwg.mxu0
    %v1344 = vsel %vm24, %v1263, 0
    %1346 = vmatprep.subr.mxu0 0.0
    %1347 = vmatpush1.msra.mxu0 %v18
    %1348 = vmatprep.subr.mxu0 0.0
    %1349 = vmatpush1.msra.mxu0 %v19
    %1350 = vmatprep.subr.mxu0 0.0
    %1351 = vmatpush1.msra.mxu0 %v20
    %1352 = vmatprep.subr.mxu0 0.0
    %1353 = vmatpush1.msra.mxu0 %v21
    %1354 = vmatprep.subr.mxu0 0.0
    %1355 = vmatpush1.msra.mxu0 0.0
    %1356 = vmatprep.subr.mxu0 0.0
    %1357 = vmatpush1.msra.mxu0 0.0
    %1358 = vmatprep.subr.mxu0 0.0
    %1359 = vmatpush1.msra.mxu0 0.0
    %1360 = vmatprep.subr.mxu0 0.0
    %1361 = vmatpush1.msra.mxu0 0.0
    %1362 = vmatprep.subr.mxu0 0.0
    %1363 = vmatpush1.msra.mxu0 0.0
    %1364 = vmatprep.subr.mxu0 0.0
    %1365 = vmatpush1.msra.mxu0 0.0
    %1366 = vmatprep.subr.mxu0 0.0
    %1367 = vmatpush1.msra.mxu0 0.0
    %1368 = vmatprep.subr.mxu0 0.0
    %1369 = vmatpush1.msra.mxu0 0.0
    %1370 = vmatprep.subr.mxu0 0.0
    %1371 = vmatpush1.msra.mxu0 0.0
    %1372 = vmatprep.subr.mxu0 0.0
    %1373 = vmatpush1.msra.mxu0 0.0
    %1374 = vmatprep.subr.mxu0 0.0
    %1375 = vmatpush1.msra.mxu0 0.0
    %1376 = vmatprep.subr.mxu0 0.0
    %1377 = vmatpush1.msra.mxu0 0.0
    %1378 = vmatprep.subr.mxu0 0.0
    %1379 = vmatpush1.msra.mxu0 0.0
    %1380 = vmatprep.subr.mxu0 0.0
    %1381 = vmatpush1.msra.mxu0 0.0
    %1382 = vmatprep.subr.mxu0 0.0
    %1383 = vmatpush1.msra.mxu0 0.0
    %1384 = vmatprep.subr.mxu0 0.0
    %1385 = vmatpush1.msra.mxu0 0.0
    %1386 = vmatprep.subr.mxu0 0.0
    %1387 = vmatpush1.msra.mxu0 0.0
    %1388 = vmatprep.subr.mxu0 0.0
    %1389 = vmatpush1.msra.mxu0 0.0
    %1390 = vmatprep.subr.mxu0 0.0
    %1391 = vmatpush1.msra.mxu0 0.0
    %1392 = vmatprep.subr.mxu0 0.0
    %1393 = vmatpush1.msra.mxu0 0.0
    %1394 = vmatprep.subr.mxu0 0.0
    %1395 = vmatpush1.msra.mxu0 0.0
    %1396 = vmatprep.subr.mxu0 0.0
    %1397 = vmatpush1.msra.mxu0 0.0
    %1398 = vmatprep.subr.mxu0 0.0
    %1399 = vmatpush1.msra.mxu0 0.0
    %1400 = vmatprep.subr.mxu0 0.0
    %1401 = vmatpush1.msra.mxu0 0.0
    %1402 = vmatprep.subr.mxu0 0.0
    %1403 = vmatpush1.msra.mxu0 0.0
    %1404 = vmatprep.subr.mxu0 0.0
    %1405 = vmatpush1.msra.mxu0 0.0
    %1406 = vmatprep.subr.mxu0 0.0
    %1407 = vmatpush1.msra.mxu0 0.0
    %1408 = vmatprep.subr.mxu0 0.0
    %1409 = vmatpush1.msra.mxu0 0.0
    %1410 = vmatprep.mubr.f32.mxu0 0.0
    %1411 = vmatmul.mubr.f32.gmra.mrb[0].mxu0 %v1344
    %v1412 = vpop.f32.mrb[0].mxu0
    %v1413 = vadd.f32 0.0, %v1412
    %v1414 = vpop.f32.mrb[0].mxu0
    %1415 = vdwg.mxu0
    %v1416 = vadd.f32 %v1270, %v1341
    %v1417 = vadd.f32 %v1271, %v1413
    %v1418 = vxor.u32 %v1416, 2147483648
    %v1419 = vxor.u32 %v1417, 2147483648
    %v1420 = vmul.f32 %v1418, 1.442695
    %v1421 = vpow.pop %v1420
    %v1422 = vmul.f32 %v1419, 1.442695
    %v1423 = vpow.pop %v1422
    %v1424 = vadd.f32 %v1421, 1.0
    %v1425 = vadd.f32 %v1423, 1.0
    %v1426 = vrcp.pop %v1424
    %v1427 = vmul.f32 1.0, %v1426
    %v1428 = vrcp.pop %v1425
    %v1429 = vmul.f32 1.0, %v1428
    %v1430 = vtanh.pop %v1416
    %v1431 = vtanh.pop %v1417
    %v1432 = vmul.f32 %v1427, %v1244
    %v1433 = vmul.f32 %v1429, %v1245
    %1436 = vrot.lane.b32.xlu0 %v1430, 64
    %v1437 = vpop.permute.xlu0 %1436
    %1438 = vrot.lane.b32.xlu0 %v1431, 64
    %v1439 = vpop.permute.xlu0 %1438
    %v1442 = vmul.f32 %v1427, %v1437
    %v1443 = vmul.f32 %v1429, %v1439
    %1446 = vrot.lane.b32.xlu0 %v1442, 32
    %v1447 = vpop.permute.xlu0 %1446
    %1448 = vrot.lane.b32.xlu0 %v1443, 32
    %v1449 = vpop.permute.xlu0 %1448
    %v1452 = vadd.f32 %v1432, %v1447
    %v1453 = vadd.f32 %v1433, %v1449
    %v1454 = vtanh.pop %v1452
    %v1455 = vtanh.pop %v1453
    %1458 = vrot.lane.b32.xlu0 %v1454, 64
    %v1459 = vpop.permute.xlu0 %1458
    %1460 = vrot.lane.b32.xlu0 %v1455, 64
    %v1461 = vpop.permute.xlu0 %1460
    %v1464 = vmul.f32 %v1427, %v1459
    %v1465 = vmul.f32 %v1429, %v1461
    %1468 = vrot.lane.b32.xlu0 %v1464, 32
    %v1469 = vpop.permute.xlu0 %1468
    %1470 = vrot.lane.b32.xlu0 %v1465, 32
    %v1471 = vpop.permute.xlu0 %1470
    %s1474 = scalar_lea.vmem [#allocation2], 48
    %1475 = vst.msk [vmem:[%s1474] sm:$0xf] %vm226, %v1469
    %1476 = vst.msk [vmem:[%s1474 + $0x4] sm:$0xf] %vm226, %v1471
    %s1477 = scalar_lea.vmem %s0, 56
    %v1478 = vld [vmem:[%s1477] sm:$0xf]
    %v1479 = vld [vmem:[%s1477 + $0x4] sm:$0xf]
    %v1480 = vsel %vm24, %v1469, 0
    %1482 = vmatprep.subr.mxu0 0.0
    %1483 = vmatpush1.msra.mxu0 %v14
    %1484 = vmatprep.subr.mxu0 0.0
    %1485 = vmatpush1.msra.mxu0 %v15
    %1486 = vmatprep.subr.mxu0 0.0
    %1487 = vmatpush1.msra.mxu0 %v16
    %1488 = vmatprep.subr.mxu0 0.0
    %1489 = vmatpush1.msra.mxu0 %v17
    %1490 = vmatprep.subr.mxu0 0.0
    %1491 = vmatpush1.msra.mxu0 0.0
    %1492 = vmatprep.subr.mxu0 0.0
    %1493 = vmatpush1.msra.mxu0 0.0
    %1494 = vmatprep.subr.mxu0 0.0
    %1495 = vmatpush1.msra.mxu0 0.0
    %1496 = vmatprep.subr.mxu0 0.0
    %1497 = vmatpush1.msra.mxu0 0.0
    %1498 = vmatprep.subr.mxu0 0.0
    %1499 = vmatpush1.msra.mxu0 0.0
    %1500 = vmatprep.subr.mxu0 0.0
    %1501 = vmatpush1.msra.mxu0 0.0
    %1502 = vmatprep.subr.mxu0 0.0
    %1503 = vmatpush1.msra.mxu0 0.0
    %1504 = vmatprep.subr.mxu0 0.0
    %1505 = vmatpush1.msra.mxu0 0.0
    %1506 = vmatprep.subr.mxu0 0.0
    %1507 = vmatpush1.msra.mxu0 0.0
    %1508 = vmatprep.subr.mxu0 0.0
    %1509 = vmatpush1.msra.mxu0 0.0
    %1510 = vmatprep.subr.mxu0 0.0
    %1511 = vmatpush1.msra.mxu0 0.0
    %1512 = vmatprep.subr.mxu0 0.0
    %1513 = vmatpush1.msra.mxu0 0.0
    %1514 = vmatprep.subr.mxu0 0.0
    %1515 = vmatpush1.msra.mxu0 0.0
    %1516 = vmatprep.subr.mxu0 0.0
    %1517 = vmatpush1.msra.mxu0 0.0
    %1518 = vmatprep.subr.mxu0 0.0
    %1519 = vmatpush1.msra.mxu0 0.0
    %1520 = vmatprep.subr.mxu0 0.0
    %1521 = vmatpush1.msra.mxu0 0.0
    %1522 = vmatprep.subr.mxu0 0.0
    %1523 = vmatpush1.msra.mxu0 0.0
    %1524 = vmatprep.subr.mxu0 0.0
    %1525 = vmatpush1.msra.mxu0 0.0
    %1526 = vmatprep.subr.mxu0 0.0
    %1527 = vmatpush1.msra.mxu0 0.0
    %1528 = vmatprep.subr.mxu0 0.0
    %1529 = vmatpush1.msra.mxu0 0.0
    %1530 = vmatprep.subr.mxu0 0.0
    %1531 = vmatpush1.msra.mxu0 0.0
    %1532 = vmatprep.subr.mxu0 0.0
    %1533 = vmatpush1.msra.mxu0 0.0
    %1534 = vmatprep.subr.mxu0 0.0
    %1535 = vmatpush1.msra.mxu0 0.0
    %1536 = vmatprep.subr.mxu0 0.0
    %1537 = vmatpush1.msra.mxu0 0.0
    %1538 = vmatprep.subr.mxu0 0.0
    %1539 = vmatpush1.msra.mxu0 0.0
    %1540 = vmatprep.subr.mxu0 0.0
    %1541 = vmatpush1.msra.mxu0 0.0
    %1542 = vmatprep.subr.mxu0 0.0
    %1543 = vmatpush1.msra.mxu0 0.0
    %1544 = vmatprep.subr.mxu0 0.0
    %1545 = vmatpush1.msra.mxu0 0.0
    %1546 = vmatprep.mubr.f32.mxu0 0.0
    %1547 = vmatmul.mubr.f32.gmra.mrb[0].mxu0 %v1480
    %v1548 = vpop.f32.mrb[0].mxu0
    %v1549 = vadd.f32 0.0, %v1548
    %v1550 = vpop.f32.mrb[0].mxu0
    %1551 = vdwg.mxu0
    %v1552 = vsel %vm24, %v1471, 0
    %1554 = vmatprep.subr.mxu0 0.0
    %1555 = vmatpush1.msra.mxu0 %v18
    %1556 = vmatprep.subr.mxu0 0.0
    %1557 = vmatpush1.msra.mxu0 %v19
    %1558 = vmatprep.subr.mxu0 0.0
    %1559 = vmatpush1.msra.mxu0 %v20
    %1560 = vmatprep.subr.mxu0 0.0
    %1561 = vmatpush1.msra.mxu0 %v21
    %1562 = vmatprep.subr.mxu0 0.0
    %1563 = vmatpush1.msra.mxu0 0.0
    %1564 = vmatprep.subr.mxu0 0.0
    %1565 = vmatpush1.msra.mxu0 0.0
    %1566 = vmatprep.subr.mxu0 0.0
    %1567 = vmatpush1.msra.mxu0 0.0
    %1568 = vmatprep.subr.mxu0 0.0
    %1569 = vmatpush1.msra.mxu0 0.0
    %1570 = vmatprep.subr.mxu0 0.0
    %1571 = vmatpush1.msra.mxu0 0.0
    %1572 = vmatprep.subr.mxu0 0.0
    %1573 = vmatpush1.msra.mxu0 0.0
    %1574 = vmatprep.subr.mxu0 0.0
    %1575 = vmatpush1.msra.mxu0 0.0
    %1576 = vmatprep.subr.mxu0 0.0
    %1577 = vmatpush1.msra.mxu0 0.0
    %1578 = vmatprep.subr.mxu0 0.0
    %1579 = vmatpush1.msra.mxu0 0.0
    %1580 = vmatprep.subr.mxu0 0.0
    %1581 = vmatpush1.msra.mxu0 0.0
    %1582 = vmatprep.subr.mxu0 0.0
    %1583 = vmatpush1.msra.mxu0 0.0
    %1584 = vmatprep.subr.mxu0 0.0
    %1585 = vmatpush1.msra.mxu0 0.0
    %1586 = vmatprep.subr.mxu0 0.0
    %1587 = vmatpush1.msra.mxu0 0.0
    %1588 = vmatprep.subr.mxu0 0.0
    %1589 = vmatpush1.msra.mxu0 0.0
    %1590 = vmatprep.subr.mxu0 0.0
    %1591 = vmatpush1.msra.mxu0 0.0
    %1592 = vmatprep.subr.mxu0 0.0
    %1593 = vmatpush1.msra.mxu0 0.0
    %1594 = vmatprep.subr.mxu0 0.0
    %1595 = vmatpush1.msra.mxu0 0.0
    %1596 = vmatprep.subr.mxu0 0.0
    %1597 = vmatpush1.msra.mxu0 0.0
    %1598 = vmatprep.subr.mxu0 0.0
    %1599 = vmatpush1.msra.mxu0 0.0
    %1600 = vmatprep.subr.mxu0 0.0
    %1601 = vmatpush1.msra.mxu0 0.0
    %1602 = vmatprep.subr.mxu0 0.0
    %1603 = vmatpush1.msra.mxu0 0.0
    %1604 = vmatprep.subr.mxu0 0.0
    %1605 = vmatpush1.msra.mxu0 0.0
    %1606 = vmatprep.subr.mxu0 0.0
    %1607 = vmatpush1.msra.mxu0 0.0
    %1608 = vmatprep.subr.mxu0 0.0
    %1609 = vmatpush1.msra.mxu0 0.0
    %1610 = vmatprep.subr.mxu0 0.0
    %1611 = vmatpush1.msra.mxu0 0.0
    %1612 = vmatprep.subr.mxu0 0.0
    %1613 = vmatpush1.msra.mxu0 0.0
    %1614 = vmatprep.subr.mxu0 0.0
    %1615 = vmatpush1.msra.mxu0 0.0
    %1616 = vmatprep.subr.mxu0 0.0
    %1617 = vmatpush1.msra.mxu0 0.0
    %1618 = vmatprep.mubr.f32.mxu0 0.0
    %1619 = vmatmul.mubr.f32.gmra.mrb[0].mxu0 %v1552
    %v1620 = vpop.f32.mrb[0].mxu0
    %v1621 = vadd.f32 0.0, %v1620
    %v1622 = vpop.f32.mrb[0].mxu0
    %1623 = vdwg.mxu0
    %v1624 = vadd.f32 %v1478, %v1549
    %v1625 = vadd.f32 %v1479, %v1621
    %v1626 = vxor.u32 %v1624, 2147483648
    %v1627 = vxor.u32 %v1625, 2147483648
    %v1628 = vmul.f32 %v1626, 1.442695
    %v1629 = vpow.pop %v1628
    %v1630 = vmul.f32 %v1627, 1.442695
    %v1631 = vpow.pop %v1630
    %v1632 = vadd.f32 %v1629, 1.0
    %v1633 = vadd.f32 %v1631, 1.0
    %v1634 = vrcp.pop %v1632
    %v1635 = vmul.f32 1.0, %v1634
    %v1636 = vrcp.pop %v1633
    %v1637 = vmul.f32 1.0, %v1636
    %v1638 = vtanh.pop %v1624
    %v1639 = vtanh.pop %v1625
    %v1640 = vmul.f32 %v1635, %v1452
    %v1641 = vmul.f32 %v1637, %v1453
    %1644 = vrot.lane.b32.xlu0 %v1638, 64
    %v1645 = vpop.permute.xlu0 %1644
    %1646 = vrot.lane.b32.xlu0 %v1639, 64
    %v1647 = vpop.permute.xlu0 %1646
    %v1650 = vmul.f32 %v1635, %v1645
    %v1651 = vmul.f32 %v1637, %v1647
    %1654 = vrot.lane.b32.xlu0 %v1650, 32
    %v1655 = vpop.permute.xlu0 %1654
    %1656 = vrot.lane.b32.xlu0 %v1651, 32
    %v1657 = vpop.permute.xlu0 %1656
    %v1660 = vadd.f32 %v1640, %v1655
    %v1661 = vadd.f32 %v1641, %v1657
    %v1662 = vtanh.pop %v1660
    %v1663 = vtanh.pop %v1661
    %1666 = vrot.lane.b32.xlu0 %v1662, 64
    %v1667 = vpop.permute.xlu0 %1666
    %1668 = vrot.lane.b32.xlu0 %v1663, 64
    %v1669 = vpop.permute.xlu0 %1668
    %v1672 = vmul.f32 %v1635, %v1667
    %v1673 = vmul.f32 %v1637, %v1669
    %1676 = vrot.lane.b32.xlu0 %v1672, 32
    %v1677 = vpop.permute.xlu0 %1676
    %1678 = vrot.lane.b32.xlu0 %v1673, 32
    %v1679 = vpop.permute.xlu0 %1678
    %s1682 = scalar_lea.vmem [#allocation2], 56
    %1683 = vst.msk [vmem:[%s1682] sm:$0xf] %vm226, %v1677
    %1684 = vst.msk [vmem:[%s1682 + $0x4] sm:$0xf] %vm226, %v1679
    %1685 = vst.msk [vmem:[%s3] sm:$0xf] %vm226, %v1677
    %1686 = vst.msk [vmem:[%s3 + $0x4] sm:$0xf] %vm226, %v1679
    // Predicated region
    $region10: #{rnn_model_forward.3} parent=1 // pred_check
      _
    $region11: #{rnn_model_forward.3} parent=1 // pred_check_branch
      %1688 = sbr.rel (0) target = $region13
    $region12: #{rnn_model_forward.3} parent=1 // pred_region
      %s1690 = ssub.s32 1024, 1024
      %1691 = vsyncadd [#allocation3], %s1690
      %s1692 = sshll.u32 [#allocation2], 4
      %s1693 = int_to_ptr.vmem [resolvable:$true] %s1692
      %1698 = dma.vmem_to_hbm [thread:$0]  %s1693, 1024, %s2, [#allocation3], 64, 64, 4
    $region13: #{rnn_model_forward.3} parent=1 // pred_fallthru
      _
    // Predicated region
    $region14: #{rnn_model_forward.3} parent=1 // pred_check
      _
    $region15: #{rnn_model_forward.3} parent=1 // pred_check_branch
      %1700 = sbr.rel (0) target = $region17
    $region16: #{rnn_model_forward.3} parent=1 // pred_region
      _
    $region17: #{rnn_model_forward.3} parent=1 // pred_fallthru
      _
    // Predicated region
    $region18: #{rnn_model_forward.3} parent=1 // pred_check
      _
    $region19: #{rnn_model_forward.3} parent=1 // pred_check_branch
      %1702 = sbr.rel (0) target = $region21
    $region20: #{rnn_model_forward.3} parent=1 // pred_region
      %1703 = dma.done [#allocation3], 1024
    $region21: #{rnn_model_forward.3} parent=1 // pred_fallthru
      _
    // Predicated region
    $region22: #{rnn_model_forward.3} parent=1 // pred_check
      _
    $region23: #{rnn_model_forward.3} parent=1 // pred_check_branch
      %1705 = sbr.rel (0) target = $region25
    $region24: #{rnn_model_forward.3} parent=1 // pred_region
      _
    $region25: #{rnn_model_forward.3} parent=1 // pred_fallthru
      _
    %1706 = vsyncpa [#allocation3], 1

// kernel: rnn_model_forward.2
$region0: #{rnn_model_forward.2}
  #allocation0 [shape = 'u32[]', space=smem, size = 0x4, offset = 0x4, fixed_abs, tag = 'smem constant byte address 0x4 - core index']
  #allocation1 [shape = 'u32[144,128]{1,0:T(1,128)}', space=vmem, size = 0x12000, scoped, tag = 'internal scratch']
  %s0 = inlined_call_operand.vmem [shape: f32[8,2,4,128], index: 0, kind: input, shape index: {}]
  %s1 = inlined_call_operand.vmem [shape: f32[2,32,128], index: 1, kind: input, shape index: {}]
  %s2 = inlined_call_operand.vmem [shape: f32[8,2,4,32], index: 2, kind: output, shape index: {0}]
  %s3 = inlined_call_operand.hbm [shape: f32[2,4,32], index: 3, kind: output, shape index: {1}]
  %4 = xla_tuple %s2, %s3
  %s5 = sld [smem:[#allocation0]]
  $region26: #{rnn_model_forward.2} parent=0
    _
  %s7 = ssub.s32 1, %s5
  %s8 = scalar_select 0, %s7, %s5
  $region1: #{rnn_model_forward.2} parent=0
    #allocation2 [shape = 'u8[4096]{0}', space=vmem, size = 0x1000, scoped, tag = 'output window, operand 1, single buffered']
    #allocation3 [shape = 's32[1]{0}', space=sflag, size = 0x4, scoped, tag = 'scoped memory for rnn_model_forward.2']
    %9 = vsyncpa [#allocation3], 0
    // Predicated region
    $region2: #{rnn_model_forward.2} parent=1 // pred_check
      _
    $region3: #{rnn_model_forward.2} parent=1 // pred_check_branch
      %11 = sbr.rel (0) target = $region5
    $region4: #{rnn_model_forward.2} parent=1 // pred_region
      _
    $region5: #{rnn_model_forward.2} parent=1 // pred_fallthru
      _
    // Predicated region
    $region6: #{rnn_model_forward.2} parent=1 // pred_check
      _
    $region7: #{rnn_model_forward.2} parent=1 // pred_check_branch
      %13 = sbr.rel (0) target = $region9
    $region8: #{rnn_model_forward.2} parent=1 // pred_region
      _
    $region9: #{rnn_model_forward.2} parent=1 // pred_fallthru
      _
    %v14 = vld [vmem:[%s1] sm:$0xff]
    %v15 = vld [vmem:[%s1 + $0x8] sm:$0xff]
    %v16 = vld [vmem:[%s1 + $0x10] sm:$0xff]
    %v17 = vld [vmem:[%s1 + $0x18] sm:$0xff]
    %v18 = vld [vmem:[%s1 + $0x20] sm:$0xff]
    %v19 = vld [vmem:[%s1 + $0x28] sm:$0xff]
    %v20 = vld [vmem:[%s1 + $0x30] sm:$0xff]
    %v21 = vld [vmem:[%s1 + $0x38] sm:$0xff]
    %v22 = vld [vmem:[%s0] sm:$0xf]
    %v23 = vld [vmem:[%s0 + $0x4] sm:$0xf]
    %vm24 = vcmask 261120
    %v26 = vsel %vm24, 0.0, 0
    %28 = vmatprep.subr.mxu0 0.0
    %29 = vmatpush1.msra.mxu0 %v14
    %30 = vmatprep.subr.mxu0 0.0
    %31 = vmatpush1.msra.mxu0 %v15
    %32 = vmatprep.subr.mxu0 0.0
    %33 = vmatpush1.msra.mxu0 %v16
    %34 = vmatprep.subr.mxu0 0.0
    %35 = vmatpush1.msra.mxu0 %v17
    %36 = vmatprep.subr.mxu0 0.0
    %37 = vmatpush1.msra.mxu0 0.0
    %38 = vmatprep.subr.mxu0 0.0
    %39 = vmatpush1.msra.mxu0 0.0
    %40 = vmatprep.subr.mxu0 0.0
    %41 = vmatpush1.msra.mxu0 0.0
    %42 = vmatprep.subr.mxu0 0.0
    %43 = vmatpush1.msra.mxu0 0.0
    %44 = vmatprep.subr.mxu0 0.0
    %45 = vmatpush1.msra.mxu0 0.0
    %46 = vmatprep.subr.mxu0 0.0
    %47 = vmatpush1.msra.mxu0 0.0
    %48 = vmatprep.subr.mxu0 0.0
    %49 = vmatpush1.msra.mxu0 0.0
    %50 = vmatprep.subr.mxu0 0.0
    %51 = vmatpush1.msra.mxu0 0.0
    %52 = vmatprep.subr.mxu0 0.0
    %53 = vmatpush1.msra.mxu0 0.0
    %54 = vmatprep.subr.mxu0 0.0
    %55 = vmatpush1.msra.mxu0 0.0
    %56 = vmatprep.subr.mxu0 0.0
    %57 = vmatpush1.msra.mxu0 0.0
    %58 = vmatprep.subr.mxu0 0.0
    %59 = vmatpush1.msra.mxu0 0.0
    %60 = vmatprep.subr.mxu0 0.0
    %61 = vmatpush1.msra.mxu0 0.0
    %62 = vmatprep.subr.mxu0 0.0
    %63 = vmatpush1.msra.mxu0 0.0
    %64 = vmatprep.subr.mxu0 0.0
    %65 = vmatpush1.msra.mxu0 0.0
    %66 = vmatprep.subr.mxu0 0.0
    %67 = vmatpush1.msra.mxu0 0.0
    %68 = vmatprep.subr.mxu0 0.0
    %69 = vmatpush1.msra.mxu0 0.0
    %70 = vmatprep.subr.mxu0 0.0
    %71 = vmatpush1.msra.mxu0 0.0
    %72 = vmatprep.subr.mxu0 0.0
    %73 = vmatpush1.msra.mxu0 0.0
    %74 = vmatprep.subr.mxu0 0.0
    %75 = vmatpush1.msra.mxu0 0.0
    %76 = vmatprep.subr.mxu0 0.0
    %77 = vmatpush1.msra.mxu0 0.0
    %78 = vmatprep.subr.mxu0 0.0
    %79 = vmatpush1.msra.mxu0 0.0
    %80 = vmatprep.subr.mxu0 0.0
    %81 = vmatpush1.msra.mxu0 0.0
    %82 = vmatprep.subr.mxu0 0.0
    %83 = vmatpush1.msra.mxu0 0.0
    %84 = vmatprep.subr.mxu0 0.0
    %85 = vmatpush1.msra.mxu0 0.0
    %86 = vmatprep.subr.mxu0 0.0
    %87 = vmatpush1.msra.mxu0 0.0
    %88 = vmatprep.subr.mxu0 0.0
    %89 = vmatpush1.msra.mxu0 0.0
    %90 = vmatprep.subr.mxu0 0.0
    %91 = vmatpush1.msra.mxu0 0.0
    %92 = vmatprep.mubr.f32.mxu0 0.0
    %93 = vmatmul.mubr.f32.gmra.mrb[0].mxu0 %v26
    %v94 = vpop.f32.mrb[0].mxu0
    %v95 = vadd.f32 0.0, %v94
    %v96 = vpop.f32.mrb[0].mxu0
    %97 = vdwg.mxu0
    %98 = vmatprep.subr.mxu0 0.0
    %99 = vmatpush1.msra.mxu0 %v18
    %100 = vmatprep.subr.mxu0 0.0
    %101 = vmatpush1.msra.mxu0 %v19
    %102 = vmatprep.subr.mxu0 0.0
    %103 = vmatpush1.msra.mxu0 %v20
    %104 = vmatprep.subr.mxu0 0.0
    %105 = vmatpush1.msra.mxu0 %v21
    %106 = vmatprep.subr.mxu0 0.0
    %107 = vmatpush1.msra.mxu0 0.0
    %108 = vmatprep.subr.mxu0 0.0
    %109 = vmatpush1.msra.mxu0 0.0
    %110 = vmatprep.subr.mxu0 0.0
    %111 = vmatpush1.msra.mxu0 0.0
    %112 = vmatprep.subr.mxu0 0.0
    %113 = vmatpush1.msra.mxu0 0.0
    %114 = vmatprep.subr.mxu0 0.0
    %115 = vmatpush1.msra.mxu0 0.0
    %116 = vmatprep.subr.mxu0 0.0
    %117 = vmatpush1.msra.mxu0 0.0
    %118 = vmatprep.subr.mxu0 0.0
    %119 = vmatpush1.msra.mxu0 0.0
    %120 = vmatprep.subr.mxu0 0.0
    %121 = vmatpush1.msra.mxu0 0.0
    %122 = vmatprep.subr.mxu0 0.0
    %123 = vmatpush1.msra.mxu0 0.0
    %124 = vmatprep.subr.mxu0 0.0
    %125 = vmatpush1.msra.mxu0 0.0
    %126 = vmatprep.subr.mxu0 0.0
    %127 = vmatpush1.msra.mxu0 0.0
    %128 = vmatprep.subr.mxu0 0.0
    %129 = vmatpush1.msra.mxu0 0.0
    %130 = vmatprep.subr.mxu0 0.0
    %131 = vmatpush1.msra.mxu0 0.0
    %132 = vmatprep.subr.mxu0 0.0
    %133 = vmatpush1.msra.mxu0 0.0
    %134 = vmatprep.subr.mxu0 0.0
    %135 = vmatpush1.msra.mxu0 0.0
    %136 = vmatprep.subr.mxu0 0.0
    %137 = vmatpush1.msra.mxu0 0.0
    %138 = vmatprep.subr.mxu0 0.0
    %139 = vmatpush1.msra.mxu0 0.0
    %140 = vmatprep.subr.mxu0 0.0
    %141 = vmatpush1.msra.mxu0 0.0
    %142 = vmatprep.subr.mxu0 0.0
    %143 = vmatpush1.msra.mxu0 0.0
    %144 = vmatprep.subr.mxu0 0.0
    %145 = vmatpush1.msra.mxu0 0.0
    %146 = vmatprep.subr.mxu0 0.0
    %147 = vmatpush1.msra.mxu0 0.0
    %148 = vmatprep.subr.mxu0 0.0
    %149 = vmatpush1.msra.mxu0 0.0
    %150 = vmatprep.subr.mxu0 0.0
    %151 = vmatpush1.msra.mxu0 0.0
    %152 = vmatprep.subr.mxu0 0.0
    %153 = vmatpush1.msra.mxu0 0.0
    %154 = vmatprep.subr.mxu0 0.0
    %155 = vmatpush1.msra.mxu0 0.0
    %156 = vmatprep.subr.mxu0 0.0
    %157 = vmatpush1.msra.mxu0 0.0
    %158 = vmatprep.subr.mxu0 0.0
    %159 = vmatpush1.msra.mxu0 0.0
    %160 = vmatprep.subr.mxu0 0.0
    %161 = vmatpush1.msra.mxu0 0.0
    %162 = vmatprep.mubr.f32.mxu0 0.0
    %163 = vmatmul.mubr.f32.gmra.mrb[0].mxu0 %v26
    %v164 = vpop.f32.mrb[0].mxu0
    %v165 = vadd.f32 0.0, %v164
    %v166 = vpop.f32.mrb[0].mxu0
    %167 = vdwg.mxu0
    %v168 = vadd.f32 %v22, %v95
    %v169 = vadd.f32 %v23, %v165
    %v170 = vxor.u32 %v168, 2147483648
    %v171 = vxor.u32 %v169, 2147483648
    %v172 = vmul.f32 %v170, 1.442695
    %v173 = vpow.pop %v172
    %v174 = vmul.f32 %v171, 1.442695
    %v175 = vpow.pop %v174
    %v176 = vadd.f32 %v173, 1.0
    %v177 = vadd.f32 %v175, 1.0
    %v178 = vrcp.pop %v176
    %v179 = vmul.f32 1.0, %v178
    %v180 = vrcp.pop %v177
    %v181 = vmul.f32 1.0, %v180
    %v182 = vtanh.pop %v168
    %v183 = vtanh.pop %v169
    %v184 = vmul.f32 %v179, 0.0
    %v185 = vmul.f32 %v181, 0.0
    %188 = vrot.lane.b32.xlu0 %v182, 64
    %v189 = vpop.permute.xlu0 %188
    %190 = vrot.lane.b32.xlu0 %v183, 64
    %v191 = vpop.permute.xlu0 %190
    %v194 = vmul.f32 %v179, %v189
    %v195 = vmul.f32 %v181, %v191
    %198 = vrot.lane.b32.xlu0 %v194, 32
    %v199 = vpop.permute.xlu0 %198
    %200 = vrot.lane.b32.xlu0 %v195, 32
    %v201 = vpop.permute.xlu0 %200
    %v204 = vadd.f32 %v184, %v199
    %v205 = vadd.f32 %v185, %v201
    %v206 = vtanh.pop %v204
    %v207 = vtanh.pop %v205
    %210 = vrot.lane.b32.xlu0 %v206, 64
    %v211 = vpop.permute.xlu0 %210
    %212 = vrot.lane.b32.xlu0 %v207, 64
    %v213 = vpop.permute.xlu0 %212
    %v216 = vmul.f32 %v179, %v211
    %v217 = vmul.f32 %v181, %v213
    %220 = vrot.lane.b32.xlu0 %v216, 32
    %v221 = vpop.permute.xlu0 %220
    %222 = vrot.lane.b32.xlu0 %v217, 32
    %v223 = vpop.permute.xlu0 %222
    %vm226 = vcmask 257024
    %227 = vst.msk [vmem:[%s2] sm:$0xf] %vm226, %v221
    %228 = vst.msk [vmem:[%s2 + $0x4] sm:$0xf] %vm226, %v223
    %s229 = scalar_lea.vmem %s0, 8
    %v230 = vld [vmem:[%s229] sm:$0xf]
    %v231 = vld [vmem:[%s229 + $0x4] sm:$0xf]
    %v232 = vsel %vm24, %v221, 0
    %234 = vmatprep.subr.mxu0 0.0
    %235 = vmatpush1.msra.mxu0 %v14
    %236 = vmatprep.subr.mxu0 0.0
    %237 = vmatpush1.msra.mxu0 %v15
    %238 = vmatprep.subr.mxu0 0.0
    %239 = vmatpush1.msra.mxu0 %v16
    %240 = vmatprep.subr.mxu0 0.0
    %241 = vmatpush1.msra.mxu0 %v17
    %242 = vmatprep.subr.mxu0 0.0
    %243 = vmatpush1.msra.mxu0 0.0
    %244 = vmatprep.subr.mxu0 0.0
    %245 = vmatpush1.msra.mxu0 0.0
    %246 = vmatprep.subr.mxu0 0.0
    %247 = vmatpush1.msra.mxu0 0.0
    %248 = vmatprep.subr.mxu0 0.0
    %249 = vmatpush1.msra.mxu0 0.0
    %250 = vmatprep.subr.mxu0 0.0
    %251 = vmatpush1.msra.mxu0 0.0
    %252 = vmatprep.subr.mxu0 0.0
    %253 = vmatpush1.msra.mxu0 0.0
    %254 = vmatprep.subr.mxu0 0.0
    %255 = vmatpush1.msra.mxu0 0.0
    %256 = vmatprep.subr.mxu0 0.0
    %257 = vmatpush1.msra.mxu0 0.0
    %258 = vmatprep.subr.mxu0 0.0
    %259 = vmatpush1.msra.mxu0 0.0
    %260 = vmatprep.subr.mxu0 0.0
    %261 = vmatpush1.msra.mxu0 0.0
    %262 = vmatprep.subr.mxu0 0.0
    %263 = vmatpush1.msra.mxu0 0.0
    %264 = vmatprep.subr.mxu0 0.0
    %265 = vmatpush1.msra.mxu0 0.0
    %266 = vmatprep.subr.mxu0 0.0
    %267 = vmatpush1.msra.mxu0 0.0
    %268 = vmatprep.subr.mxu0 0.0
    %269 = vmatpush1.msra.mxu0 0.0
    %270 = vmatprep.subr.mxu0 0.0
    %271 = vmatpush1.msra.mxu0 0.0
    %272 = vmatprep.subr.mxu0 0.0
    %273 = vmatpush1.msra.mxu0 0.0
    %274 = vmatprep.subr.mxu0 0.0
    %275 = vmatpush1.msra.mxu0 0.0
    %276 = vmatprep.subr.mxu0 0.0
    %277 = vmatpush1.msra.mxu0 0.0
    %278 = vmatprep.subr.mxu0 0.0
    %279 = vmatpush1.msra.mxu0 0.0
    %280 = vmatprep.subr.mxu0 0.0
    %281 = vmatpush1.msra.mxu0 0.0
    %282 = vmatprep.subr.mxu0 0.0
    %283 = vmatpush1.msra.mxu0 0.0
    %284 = vmatprep.subr.mxu0 0.0
    %285 = vmatpush1.msra.mxu0 0.0
    %286 = vmatprep.subr.mxu0 0.0
    %287 = vmatpush1.msra.mxu0 0.0
    %288 = vmatprep.subr.mxu0 0.0
    %289 = vmatpush1.msra.mxu0 0.0
    %290 = vmatprep.subr.mxu0 0.0
    %291 = vmatpush1.msra.mxu0 0.0
    %292 = vmatprep.subr.mxu0 0.0
    %293 = vmatpush1.msra.mxu0 0.0
    %294 = vmatprep.subr.mxu0 0.0
    %295 = vmatpush1.msra.mxu0 0.0
    %296 = vmatprep.subr.mxu0 0.0
    %297 = vmatpush1.msra.mxu0 0.0
    %298 = vmatprep.mubr.f32.mxu0 0.0
    %299 = vmatmul.mubr.f32.gmra.mrb[0].mxu0 %v232
    %v300 = vpop.f32.mrb[0].mxu0
    %v301 = vadd.f32 0.0, %v300
    %v302 = vpop.f32.mrb[0].mxu0
    %303 = vdwg.mxu0
    %v304 = vsel %vm24, %v223, 0
    %306 = vmatprep.subr.mxu0 0.0
    %307 = vmatpush1.msra.mxu0 %v18
    %308 = vmatprep.subr.mxu0 0.0
    %309 = vmatpush1.msra.mxu0 %v19
    %310 = vmatprep.subr.mxu0 0.0
    %311 = vmatpush1.msra.mxu0 %v20
    %312 = vmatprep.subr.mxu0 0.0
    %313 = vmatpush1.msra.mxu0 %v21
    %314 = vmatprep.subr.mxu0 0.0
    %315 = vmatpush1.msra.mxu0 0.0
    %316 = vmatprep.subr.mxu0 0.0
    %317 = vmatpush1.msra.mxu0 0.0
    %318 = vmatprep.subr.mxu0 0.0
    %319 = vmatpush1.msra.mxu0 0.0
    %320 = vmatprep.subr.mxu0 0.0
    %321 = vmatpush1.msra.mxu0 0.0
    %322 = vmatprep.subr.mxu0 0.0
    %323 = vmatpush1.msra.mxu0 0.0
    %324 = vmatprep.subr.mxu0 0.0
    %325 = vmatpush1.msra.mxu0 0.0
    %326 = vmatprep.subr.mxu0 0.0
    %327 = vmatpush1.msra.mxu0 0.0
    %328 = vmatprep.subr.mxu0 0.0
    %329 = vmatpush1.msra.mxu0 0.0
    %330 = vmatprep.subr.mxu0 0.0
    %331 = vmatpush1.msra.mxu0 0.0
    %332 = vmatprep.subr.mxu0 0.0
    %333 = vmatpush1.msra.mxu0 0.0
    %334 = vmatprep.subr.mxu0 0.0
    %335 = vmatpush1.msra.mxu0 0.0
    %336 = vmatprep.subr.mxu0 0.0
    %337 = vmatpush1.msra.mxu0 0.0
    %338 = vmatprep.subr.mxu0 0.0
    %339 = vmatpush1.msra.mxu0 0.0
    %340 = vmatprep.subr.mxu0 0.0
    %341 = vmatpush1.msra.mxu0 0.0
    %342 = vmatprep.subr.mxu0 0.0
    %343 = vmatpush1.msra.mxu0 0.0
    %344 = vmatprep.subr.mxu0 0.0
    %345 = vmatpush1.msra.mxu0 0.0
    %346 = vmatprep.subr.mxu0 0.0
    %347 = vmatpush1.msra.mxu0 0.0
    %348 = vmatprep.subr.mxu0 0.0
    %349 = vmatpush1.msra.mxu0 0.0
    %350 = vmatprep.subr.mxu0 0.0
    %351 = vmatpush1.msra.mxu0 0.0
    %352 = vmatprep.subr.mxu0 0.0
    %353 = vmatpush1.msra.mxu0 0.0
    %354 = vmatprep.subr.mxu0 0.0
    %355 = vmatpush1.msra.mxu0 0.0
    %356 = vmatprep.subr.mxu0 0.0
    %357 = vmatpush1.msra.mxu0 0.0
    %358 = vmatprep.subr.mxu0 0.0
    %359 = vmatpush1.msra.mxu0 0.0
    %360 = vmatprep.subr.mxu0 0.0
    %361 = vmatpush1.msra.mxu0 0.0
    %362 = vmatprep.subr.mxu0 0.0
    %363 = vmatpush1.msra.mxu0 0.0
    %364 = vmatprep.subr.mxu0 0.0
    %365 = vmatpush1.msra.mxu0 0.0
    %366 = vmatprep.subr.mxu0 0.0
    %367 = vmatpush1.msra.mxu0 0.0
    %368 = vmatprep.subr.mxu0 0.0
    %369 = vmatpush1.msra.mxu0 0.0
    %370 = vmatprep.mubr.f32.mxu0 0.0
    %371 = vmatmul.mubr.f32.gmra.mrb[0].mxu0 %v304
    %v372 = vpop.f32.mrb[0].mxu0
    %v373 = vadd.f32 0.0, %v372
    %v374 = vpop.f32.mrb[0].mxu0
    %375 = vdwg.mxu0
    %v376 = vadd.f32 %v230, %v301
    %v377 = vadd.f32 %v231, %v373
    %v378 = vxor.u32 %v376, 2147483648
    %v379 = vxor.u32 %v377, 2147483648
    %v380 = vmul.f32 %v378, 1.442695
    %v381 = vpow.pop %v380
    %v382 = vmul.f32 %v379, 1.442695
    %v383 = vpow.pop %v382
    %v384 = vadd.f32 %v381, 1.0
    %v385 = vadd.f32 %v383, 1.0
    %v386 = vrcp.pop %v384
    %v387 = vmul.f32 1.0, %v386
    %v388 = vrcp.pop %v385
    %v389 = vmul.f32 1.0, %v388
    %v390 = vtanh.pop %v376
    %v391 = vtanh.pop %v377
    %v392 = vmul.f32 %v387, %v204
    %v393 = vmul.f32 %v389, %v205
    %396 = vrot.lane.b32.xlu0 %v390, 64
    %v397 = vpop.permute.xlu0 %396
    %398 = vrot.lane.b32.xlu0 %v391, 64
    %v399 = vpop.permute.xlu0 %398
    %v402 = vmul.f32 %v387, %v397
    %v403 = vmul.f32 %v389, %v399
    %406 = vrot.lane.b32.xlu0 %v402, 32
    %v407 = vpop.permute.xlu0 %406
    %408 = vrot.lane.b32.xlu0 %v403, 32
    %v409 = vpop.permute.xlu0 %408
    %v412 = vadd.f32 %v392, %v407
    %v413 = vadd.f32 %v393, %v409
    %v414 = vtanh.pop %v412
    %v415 = vtanh.pop %v413
    %418 = vrot.lane.b32.xlu0 %v414, 64
    %v419 = vpop.permute.xlu0 %418
    %420 = vrot.lane.b32.xlu0 %v415, 64
    %v421 = vpop.permute.xlu0 %420
    %v424 = vmul.f32 %v387, %v419
    %v425 = vmul.f32 %v389, %v421
    %428 = vrot.lane.b32.xlu0 %v424, 32
    %v429 = vpop.permute.xlu0 %428
    %430 = vrot.lane.b32.xlu0 %v425, 32
    %v431 = vpop.permute.xlu0 %430
    %s434 = scalar_lea.vmem %s2, 8
    %435 = vst.msk [vmem:[%s434] sm:$0xf] %vm226, %v429
    %436 = vst.msk [vmem:[%s434 + $0x4] sm:$0xf] %vm226, %v431
    %s437 = scalar_lea.vmem %s0, 16
    %v438 = vld [vmem:[%s437] sm:$0xf]
    %v439 = vld [vmem:[%s437 + $0x4] sm:$0xf]
    %v440 = vsel %vm24, %v429, 0
    %442 = vmatprep.subr.mxu0 0.0
    %443 = vmatpush1.msra.mxu0 %v14
    %444 = vmatprep.subr.mxu0 0.0
    %445 = vmatpush1.msra.mxu0 %v15
    %446 = vmatprep.subr.mxu0 0.0
    %447 = vmatpush1.msra.mxu0 %v16
    %448 = vmatprep.subr.mxu0 0.0
    %449 = vmatpush1.msra.mxu0 %v17
    %450 = vmatprep.subr.mxu0 0.0
    %451 = vmatpush1.msra.mxu0 0.0
    %452 = vmatprep.subr.mxu0 0.0
    %453 = vmatpush1.msra.mxu0 0.0
    %454 = vmatprep.subr.mxu0 0.0
    %455 = vmatpush1.msra.mxu0 0.0
    %456 = vmatprep.subr.mxu0 0.0
    %457 = vmatpush1.msra.mxu0 0.0
    %458 = vmatprep.subr.mxu0 0.0
    %459 = vmatpush1.msra.mxu0 0.0
    %460 = vmatprep.subr.mxu0 0.0
    %461 = vmatpush1.msra.mxu0 0.0
    %462 = vmatprep.subr.mxu0 0.0
    %463 = vmatpush1.msra.mxu0 0.0
    %464 = vmatprep.subr.mxu0 0.0
    %465 = vmatpush1.msra.mxu0 0.0
    %466 = vmatprep.subr.mxu0 0.0
    %467 = vmatpush1.msra.mxu0 0.0
    %468 = vmatprep.subr.mxu0 0.0
    %469 = vmatpush1.msra.mxu0 0.0
    %470 = vmatprep.subr.mxu0 0.0
    %471 = vmatpush1.msra.mxu0 0.0
    %472 = vmatprep.subr.mxu0 0.0
    %473 = vmatpush1.msra.mxu0 0.0
    %474 = vmatprep.subr.mxu0 0.0
    %475 = vmatpush1.msra.mxu0 0.0
    %476 = vmatprep.subr.mxu0 0.0
    %477 = vmatpush1.msra.mxu0 0.0
    %478 = vmatprep.subr.mxu0 0.0
    %479 = vmatpush1.msra.mxu0 0.0
    %480 = vmatprep.subr.mxu0 0.0
    %481 = vmatpush1.msra.mxu0 0.0
    %482 = vmatprep.subr.mxu0 0.0
    %483 = vmatpush1.msra.mxu0 0.0
    %484 = vmatprep.subr.mxu0 0.0
    %485 = vmatpush1.msra.mxu0 0.0
    %486 = vmatprep.subr.mxu0 0.0
    %487 = vmatpush1.msra.mxu0 0.0
    %488 = vmatprep.subr.mxu0 0.0
    %489 = vmatpush1.msra.mxu0 0.0
    %490 = vmatprep.subr.mxu0 0.0
    %491 = vmatpush1.msra.mxu0 0.0
    %492 = vmatprep.subr.mxu0 0.0
    %493 = vmatpush1.msra.mxu0 0.0
    %494 = vmatprep.subr.mxu0 0.0
    %495 = vmatpush1.msra.mxu0 0.0
    %496 = vmatprep.subr.mxu0 0.0
    %497 = vmatpush1.msra.mxu0 0.0
    %498 = vmatprep.subr.mxu0 0.0
    %499 = vmatpush1.msra.mxu0 0.0
    %500 = vmatprep.subr.mxu0 0.0
    %501 = vmatpush1.msra.mxu0 0.0
    %502 = vmatprep.subr.mxu0 0.0
    %503 = vmatpush1.msra.mxu0 0.0
    %504 = vmatprep.subr.mxu0 0.0
    %505 = vmatpush1.msra.mxu0 0.0
    %506 = vmatprep.mubr.f32.mxu0 0.0
    %507 = vmatmul.mubr.f32.gmra.mrb[0].mxu0 %v440
    %v508 = vpop.f32.mrb[0].mxu0
    %v509 = vadd.f32 0.0, %v508
    %v510 = vpop.f32.mrb[0].mxu0
    %511 = vdwg.mxu0
    %v512 = vsel %vm24, %v431, 0
    %514 = vmatprep.subr.mxu0 0.0
    %515 = vmatpush1.msra.mxu0 %v18
    %516 = vmatprep.subr.mxu0 0.0
    %517 = vmatpush1.msra.mxu0 %v19
    %518 = vmatprep.subr.mxu0 0.0
    %519 = vmatpush1.msra.mxu0 %v20
    %520 = vmatprep.subr.mxu0 0.0
    %521 = vmatpush1.msra.mxu0 %v21
    %522 = vmatprep.subr.mxu0 0.0
    %523 = vmatpush1.msra.mxu0 0.0
    %524 = vmatprep.subr.mxu0 0.0
    %525 = vmatpush1.msra.mxu0 0.0
    %526 = vmatprep.subr.mxu0 0.0
    %527 = vmatpush1.msra.mxu0 0.0
    %528 = vmatprep.subr.mxu0 0.0
    %529 = vmatpush1.msra.mxu0 0.0
    %530 = vmatprep.subr.mxu0 0.0
    %531 = vmatpush1.msra.mxu0 0.0
    %532 = vmatprep.subr.mxu0 0.0
    %533 = vmatpush1.msra.mxu0 0.0
    %534 = vmatprep.subr.mxu0 0.0
    %535 = vmatpush1.msra.mxu0 0.0
    %536 = vmatprep.subr.mxu0 0.0
    %537 = vmatpush1.msra.mxu0 0.0
    %538 = vmatprep.subr.mxu0 0.0
    %539 = vmatpush1.msra.mxu0 0.0
    %540 = vmatprep.subr.mxu0 0.0
    %541 = vmatpush1.msra.mxu0 0.0
    %542 = vmatprep.subr.mxu0 0.0
    %543 = vmatpush1.msra.mxu0 0.0
    %544 = vmatprep.subr.mxu0 0.0
    %545 = vmatpush1.msra.mxu0 0.0
    %546 = vmatprep.subr.mxu0 0.0
    %547 = vmatpush1.msra.mxu0 0.0
    %548 = vmatprep.subr.mxu0 0.0
    %549 = vmatpush1.msra.mxu0 0.0
    %550 = vmatprep.subr.mxu0 0.0
    %551 = vmatpush1.msra.mxu0 0.0
    %552 = vmatprep.subr.mxu0 0.0
    %553 = vmatpush1.msra.mxu0 0.0
    %554 = vmatprep.subr.mxu0 0.0
    %555 = vmatpush1.msra.mxu0 0.0
    %556 = vmatprep.subr.mxu0 0.0
    %557 = vmatpush1.msra.mxu0 0.0
    %558 = vmatprep.subr.mxu0 0.0
    %559 = vmatpush1.msra.mxu0 0.0
    %560 = vmatprep.subr.mxu0 0.0
    %561 = vmatpush1.msra.mxu0 0.0
    %562 = vmatprep.subr.mxu0 0.0
    %563 = vmatpush1.msra.mxu0 0.0
    %564 = vmatprep.subr.mxu0 0.0
    %565 = vmatpush1.msra.mxu0 0.0
    %566 = vmatprep.subr.mxu0 0.0
    %567 = vmatpush1.msra.mxu0 0.0
    %568 = vmatprep.subr.mxu0 0.0
    %569 = vmatpush1.msra.mxu0 0.0
    %570 = vmatprep.subr.mxu0 0.0
    %571 = vmatpush1.msra.mxu0 0.0
    %572 = vmatprep.subr.mxu0 0.0
    %573 = vmatpush1.msra.mxu0 0.0
    %574 = vmatprep.subr.mxu0 0.0
    %575 = vmatpush1.msra.mxu0 0.0
    %576 = vmatprep.subr.mxu0 0.0
    %577 = vmatpush1.msra.mxu0 0.0
    %578 = vmatprep.mubr.f32.mxu0 0.0
    %579 = vmatmul.mubr.f32.gmra.mrb[0].mxu0 %v512
    %v580 = vpop.f32.mrb[0].mxu0
    %v581 = vadd.f32 0.0, %v580
    %v582 = vpop.f32.mrb[0].mxu0
    %583 = vdwg.mxu0
    %v584 = vadd.f32 %v438, %v509
    %v585 = vadd.f32 %v439, %v581
    %v586 = vxor.u32 %v584, 2147483648
    %v587 = vxor.u32 %v585, 2147483648
    %v588 = vmul.f32 %v586, 1.442695
    %v589 = vpow.pop %v588
    %v590 = vmul.f32 %v587, 1.442695
    %v591 = vpow.pop %v590
    %v592 = vadd.f32 %v589, 1.0
    %v593 = vadd.f32 %v591, 1.0
    %v594 = vrcp.pop %v592
    %v595 = vmul.f32 1.0, %v594
    %v596 = vrcp.pop %v593
    %v597 = vmul.f32 1.0, %v596
    %v598 = vtanh.pop %v584
    %v599 = vtanh.pop %v585
    %v600 = vmul.f32 %v595, %v412
    %v601 = vmul.f32 %v597, %v413
    %604 = vrot.lane.b32.xlu0 %v598, 64
    %v605 = vpop.permute.xlu0 %604
    %606 = vrot.lane.b32.xlu0 %v599, 64
    %v607 = vpop.permute.xlu0 %606
    %v610 = vmul.f32 %v595, %v605
    %v611 = vmul.f32 %v597, %v607
    %614 = vrot.lane.b32.xlu0 %v610, 32
    %v615 = vpop.permute.xlu0 %614
    %616 = vrot.lane.b32.xlu0 %v611, 32
    %v617 = vpop.permute.xlu0 %616
    %v620 = vadd.f32 %v600, %v615
    %v621 = vadd.f32 %v601, %v617
    %v622 = vtanh.pop %v620
    %v623 = vtanh.pop %v621
    %626 = vrot.lane.b32.xlu0 %v622, 64
    %v627 = vpop.permute.xlu0 %626
    %628 = vrot.lane.b32.xlu0 %v623, 64
    %v629 = vpop.permute.xlu0 %628
    %v632 = vmul.f32 %v595, %v627
    %v633 = vmul.f32 %v597, %v629
    %636 = vrot.lane.b32.xlu0 %v632, 32
    %v637 = vpop.permute.xlu0 %636
    %638 = vrot.lane.b32.xlu0 %v633, 32
    %v639 = vpop.permute.xlu0 %638
    %s642 = scalar_lea.vmem %s2, 16
    %643 = vst.msk [vmem:[%s642] sm:$0xf] %vm226, %v637
    %644 = vst.msk [vmem:[%s642 + $0x4] sm:$0xf] %vm226, %v639
    %s645 = scalar_lea.vmem %s0, 24
    %v646 = vld [vmem:[%s645] sm:$0xf]
    %v647 = vld [vmem:[%s645 + $0x4] sm:$0xf]
    %v648 = vsel %vm24, %v637, 0
    %650 = vmatprep.subr.mxu0 0.0
    %651 = vmatpush1.msra.mxu0 %v14
    %652 = vmatprep.subr.mxu0 0.0
    %653 = vmatpush1.msra.mxu0 %v15
    %654 = vmatprep.subr.mxu0 0.0
    %655 = vmatpush1.msra.mxu0 %v16
    %656 = vmatprep.subr.mxu0 0.0
    %657 = vmatpush1.msra.mxu0 %v17
    %658 = vmatprep.subr.mxu0 0.0
    %659 = vmatpush1.msra.mxu0 0.0
    %660 = vmatprep.subr.mxu0 0.0
    %661 = vmatpush1.msra.mxu0 0.0
    %662 = vmatprep.subr.mxu0 0.0
    %663 = vmatpush1.msra.mxu0 0.0
    %664 = vmatprep.subr.mxu0 0.0
    %665 = vmatpush1.msra.mxu0 0.0
    %666 = vmatprep.subr.mxu0 0.0
    %667 = vmatpush1.msra.mxu0 0.0
    %668 = vmatprep.subr.mxu0 0.0
    %669 = vmatpush1.msra.mxu0 0.0
    %670 = vmatprep.subr.mxu0 0.0
    %671 = vmatpush1.msra.mxu0 0.0
    %672 = vmatprep.subr.mxu0 0.0
    %673 = vmatpush1.msra.mxu0 0.0
    %674 = vmatprep.subr.mxu0 0.0
    %675 = vmatpush1.msra.mxu0 0.0
    %676 = vmatprep.subr.mxu0 0.0
    %677 = vmatpush1.msra.mxu0 0.0
    %678 = vmatprep.subr.mxu0 0.0
    %679 = vmatpush1.msra.mxu0 0.0
    %680 = vmatprep.subr.mxu0 0.0
    %681 = vmatpush1.msra.mxu0 0.0
    %682 = vmatprep.subr.mxu0 0.0
    %683 = vmatpush1.msra.mxu0 0.0
    %684 = vmatprep.subr.mxu0 0.0
    %685 = vmatpush1.msra.mxu0 0.0
    %686 = vmatprep.subr.mxu0 0.0
    %687 = vmatpush1.msra.mxu0 0.0
    %688 = vmatprep.subr.mxu0 0.0
    %689 = vmatpush1.msra.mxu0 0.0
    %690 = vmatprep.subr.mxu0 0.0
    %691 = vmatpush1.msra.mxu0 0.0
    %692 = vmatprep.subr.mxu0 0.0
    %693 = vmatpush1.msra.mxu0 0.0
    %694 = vmatprep.subr.mxu0 0.0
    %695 = vmatpush1.msra.mxu0 0.0
    %696 = vmatprep.subr.mxu0 0.0
    %697 = vmatpush1.msra.mxu0 0.0
    %698 = vmatprep.subr.mxu0 0.0
    %699 = vmatpush1.msra.mxu0 0.0
    %700 = vmatprep.subr.mxu0 0.0
    %701 = vmatpush1.msra.mxu0 0.0
    %702 = vmatprep.subr.mxu0 0.0
    %703 = vmatpush1.msra.mxu0 0.0
    %704 = vmatprep.subr.mxu0 0.0
    %705 = vmatpush1.msra.mxu0 0.0
    %706 = vmatprep.subr.mxu0 0.0
    %707 = vmatpush1.msra.mxu0 0.0
    %708 = vmatprep.subr.mxu0 0.0
    %709 = vmatpush1.msra.mxu0 0.0
    %710 = vmatprep.subr.mxu0 0.0
    %711 = vmatpush1.msra.mxu0 0.0
    %712 = vmatprep.subr.mxu0 0.0
    %713 = vmatpush1.msra.mxu0 0.0
    %714 = vmatprep.mubr.f32.mxu0 0.0
    %715 = vmatmul.mubr.f32.gmra.mrb[0].mxu0 %v648
    %v716 = vpop.f32.mrb[0].mxu0
    %v717 = vadd.f32 0.0, %v716
    %v718 = vpop.f32.mrb[0].mxu0
    %719 = vdwg.mxu0
    %v720 = vsel %vm24, %v639, 0
    %722 = vmatprep.subr.mxu0 0.0
    %723 = vmatpush1.msra.mxu0 %v18
    %724 = vmatprep.subr.mxu0 0.0
    %725 = vmatpush1.msra.mxu0 %v19
    %726 = vmatprep.subr.mxu0 0.0
    %727 = vmatpush1.msra.mxu0 %v20
    %728 = vmatprep.subr.mxu0 0.0
    %729 = vmatpush1.msra.mxu0 %v21
    %730 = vmatprep.subr.mxu0 0.0
    %731 = vmatpush1.msra.mxu0 0.0
    %732 = vmatprep.subr.mxu0 0.0
    %733 = vmatpush1.msra.mxu0 0.0
    %734 = vmatprep.subr.mxu0 0.0
    %735 = vmatpush1.msra.mxu0 0.0
    %736 = vmatprep.subr.mxu0 0.0
    %737 = vmatpush1.msra.mxu0 0.0
    %738 = vmatprep.subr.mxu0 0.0
    %739 = vmatpush1.msra.mxu0 0.0
    %740 = vmatprep.subr.mxu0 0.0
    %741 = vmatpush1.msra.mxu0 0.0
    %742 = vmatprep.subr.mxu0 0.0
    %743 = vmatpush1.msra.mxu0 0.0
    %744 = vmatprep.subr.mxu0 0.0
    %745 = vmatpush1.msra.mxu0 0.0
    %746 = vmatprep.subr.mxu0 0.0
    %747 = vmatpush1.msra.mxu0 0.0
    %748 = vmatprep.subr.mxu0 0.0
    %749 = vmatpush1.msra.mxu0 0.0
    %750 = vmatprep.subr.mxu0 0.0
    %751 = vmatpush1.msra.mxu0 0.0
    %752 = vmatprep.subr.mxu0 0.0
    %753 = vmatpush1.msra.mxu0 0.0
    %754 = vmatprep.subr.mxu0 0.0
    %755 = vmatpush1.msra.mxu0 0.0
    %756 = vmatprep.subr.mxu0 0.0
    %757 = vmatpush1.msra.mxu0 0.0
    %758 = vmatprep.subr.mxu0 0.0
    %759 = vmatpush1.msra.mxu0 0.0
    %760 = vmatprep.subr.mxu0 0.0
    %761 = vmatpush1.msra.mxu0 0.0
    %762 = vmatprep.subr.mxu0 0.0
    %763 = vmatpush1.msra.mxu0 0.0
    %764 = vmatprep.subr.mxu0 0.0
    %765 = vmatpush1.msra.mxu0 0.0
    %766 = vmatprep.subr.mxu0 0.0
    %767 = vmatpush1.msra.mxu0 0.0
    %768 = vmatprep.subr.mxu0 0.0
    %769 = vmatpush1.msra.mxu0 0.0
    %770 = vmatprep.subr.mxu0 0.0
    %771 = vmatpush1.msra.mxu0 0.0
    %772 = vmatprep.subr.mxu0 0.0
    %773 = vmatpush1.msra.mxu0 0.0
    %774 = vmatprep.subr.mxu0 0.0
    %775 = vmatpush1.msra.mxu0 0.0
    %776 = vmatprep.subr.mxu0 0.0
    %777 = vmatpush1.msra.mxu0 0.0
    %778 = vmatprep.subr.mxu0 0.0
    %779 = vmatpush1.msra.mxu0 0.0
    %780 = vmatprep.subr.mxu0 0.0
    %781 = vmatpush1.msra.mxu0 0.0
    %782 = vmatprep.subr.mxu0 0.0
    %783 = vmatpush1.msra.mxu0 0.0
    %784 = vmatprep.subr.mxu0 0.0
    %785 = vmatpush1.msra.mxu0 0.0
    %786 = vmatprep.mubr.f32.mxu0 0.0
    %787 = vmatmul.mubr.f32.gmra.mrb[0].mxu0 %v720
    %v788 = vpop.f32.mrb[0].mxu0
    %v789 = vadd.f32 0.0, %v788
    %v790 = vpop.f32.mrb[0].mxu0
    %791 = vdwg.mxu0
    %v792 = vadd.f32 %v646, %v717
    %v793 = vadd.f32 %v647, %v789
    %v794 = vxor.u32 %v792, 2147483648
    %v795 = vxor.u32 %v793, 2147483648
    %v796 = vmul.f32 %v794, 1.442695
    %v797 = vpow.pop %v796
    %v798 = vmul.f32 %v795, 1.442695
    %v799 = vpow.pop %v798
    %v800 = vadd.f32 %v797, 1.0
    %v801 = vadd.f32 %v799, 1.0
    %v802 = vrcp.pop %v800
    %v803 = vmul.f32 1.0, %v802
    %v804 = vrcp.pop %v801
    %v805 = vmul.f32 1.0, %v804
    %v806 = vtanh.pop %v792
    %v807 = vtanh.pop %v793
    %v808 = vmul.f32 %v803, %v620
    %v809 = vmul.f32 %v805, %v621
    %812 = vrot.lane.b32.xlu0 %v806, 64
    %v813 = vpop.permute.xlu0 %812
    %814 = vrot.lane.b32.xlu0 %v807, 64
    %v815 = vpop.permute.xlu0 %814
    %v818 = vmul.f32 %v803, %v813
    %v819 = vmul.f32 %v805, %v815
    %822 = vrot.lane.b32.xlu0 %v818, 32
    %v823 = vpop.permute.xlu0 %822
    %824 = vrot.lane.b32.xlu0 %v819, 32
    %v825 = vpop.permute.xlu0 %824
    %v828 = vadd.f32 %v808, %v823
    %v829 = vadd.f32 %v809, %v825
    %v830 = vtanh.pop %v828
    %v831 = vtanh.pop %v829
    %834 = vrot.lane.b32.xlu0 %v830, 64
    %v835 = vpop.permute.xlu0 %834
    %836 = vrot.lane.b32.xlu0 %v831, 64
    %v837 = vpop.permute.xlu0 %836
    %v840 = vmul.f32 %v803, %v835
    %v841 = vmul.f32 %v805, %v837
    %844 = vrot.lane.b32.xlu0 %v840, 32
    %v845 = vpop.permute.xlu0 %844
    %846 = vrot.lane.b32.xlu0 %v841, 32
    %v847 = vpop.permute.xlu0 %846
    %s850 = scalar_lea.vmem %s2, 24
    %851 = vst.msk [vmem:[%s850] sm:$0xf] %vm226, %v845
    %852 = vst.msk [vmem:[%s850 + $0x4] sm:$0xf] %vm226, %v847
    %s853 = scalar_lea.vmem %s0, 32
    %v854 = vld [vmem:[%s853] sm:$0xf]
    %v855 = vld [vmem:[%s853 + $0x4] sm:$0xf]
    %v856 = vsel %vm24, %v845, 0
    %858 = vmatprep.subr.mxu0 0.0
    %859 = vmatpush1.msra.mxu0 %v14
    %860 = vmatprep.subr.mxu0 0.0
    %861 = vmatpush1.msra.mxu0 %v15
    %862 = vmatprep.subr.mxu0 0.0
    %863 = vmatpush1.msra.mxu0 %v16
    %864 = vmatprep.subr.mxu0 0.0
    %865 = vmatpush1.msra.mxu0 %v17
    %866 = vmatprep.subr.mxu0 0.0
    %867 = vmatpush1.msra.mxu0 0.0
    %868 = vmatprep.subr.mxu0 0.0
    %869 = vmatpush1.msra.mxu0 0.0
    %870 = vmatprep.subr.mxu0 0.0
    %871 = vmatpush1.msra.mxu0 0.0
    %872 = vmatprep.subr.mxu0 0.0
    %873 = vmatpush1.msra.mxu0 0.0
    %874 = vmatprep.subr.mxu0 0.0
    %875 = vmatpush1.msra.mxu0 0.0
    %876 = vmatprep.subr.mxu0 0.0
    %877 = vmatpush1.msra.mxu0 0.0
    %878 = vmatprep.subr.mxu0 0.0
    %879 = vmatpush1.msra.mxu0 0.0
    %880 = vmatprep.subr.mxu0 0.0
    %881 = vmatpush1.msra.mxu0 0.0
    %882 = vmatprep.subr.mxu0 0.0
    %883 = vmatpush1.msra.mxu0 0.0
    %884 = vmatprep.subr.mxu0 0.0
    %885 = vmatpush1.msra.mxu0 0.0
    %886 = vmatprep.subr.mxu0 0.0
    %887 = vmatpush1.msra.mxu0 0.0
    %888 = vmatprep.subr.mxu0 0.0
    %889 = vmatpush1.msra.mxu0 0.0
    %890 = vmatprep.subr.mxu0 0.0
    %891 = vmatpush1.msra.mxu0 0.0
    %892 = vmatprep.subr.mxu0 0.0
    %893 = vmatpush1.msra.mxu0 0.0
    %894 = vmatprep.subr.mxu0 0.0
    %895 = vmatpush1.msra.mxu0 0.0
    %896 = vmatprep.subr.mxu0 0.0
    %897 = vmatpush1.msra.mxu0 0.0
    %898 = vmatprep.subr.mxu0 0.0
    %899 = vmatpush1.msra.mxu0 0.0
    %900 = vmatprep.subr.mxu0 0.0
    %901 = vmatpush1.msra.mxu0 0.0
    %902 = vmatprep.subr.mxu0 0.0
    %903 = vmatpush1.msra.mxu0 0.0
    %904 = vmatprep.subr.mxu0 0.0
    %905 = vmatpush1.msra.mxu0 0.0
    %906 = vmatprep.subr.mxu0 0.0
    %907 = vmatpush1.msra.mxu0 0.0
    %908 = vmatprep.subr.mxu0 0.0
    %909 = vmatpush1.msra.mxu0 0.0
    %910 = vmatprep.subr.mxu0 0.0
    %911 = vmatpush1.msra.mxu0 0.0
    %912 = vmatprep.subr.mxu0 0.0
    %913 = vmatpush1.msra.mxu0 0.0
    %914 = vmatprep.subr.mxu0 0.0
    %915 = vmatpush1.msra.mxu0 0.0
    %916 = vmatprep.subr.mxu0 0.0
    %917 = vmatpush1.msra.mxu0 0.0
    %918 = vmatprep.subr.mxu0 0.0
    %919 = vmatpush1.msra.mxu0 0.0
    %920 = vmatprep.subr.mxu0 0.0
    %921 = vmatpush1.msra.mxu0 0.0
    %922 = vmatprep.mubr.f32.mxu0 0.0
    %923 = vmatmul.mubr.f32.gmra.mrb[0].mxu0 %v856
    %v924 = vpop.f32.mrb[0].mxu0
    %v925 = vadd.f32 0.0, %v924
    %v926 = vpop.f32.mrb[0].mxu0
    %927 = vdwg.mxu0
    %v928 = vsel %vm24, %v847, 0
    %930 = vmatprep.subr.mxu0 0.0
    %931 = vmatpush1.msra.mxu0 %v18
    %932 = vmatprep.subr.mxu0 0.0
    %933 = vmatpush1.msra.mxu0 %v19
    %934 = vmatprep.subr.mxu0 0.0
    %935 = vmatpush1.msra.mxu0 %v20
    %936 = vmatprep.subr.mxu0 0.0
    %937 = vmatpush1.msra.mxu0 %v21
    %938 = vmatprep.subr.mxu0 0.0
    %939 = vmatpush1.msra.mxu0 0.0
    %940 = vmatprep.subr.mxu0 0.0
    %941 = vmatpush1.msra.mxu0 0.0
    %942 = vmatprep.subr.mxu0 0.0
    %943 = vmatpush1.msra.mxu0 0.0
    %944 = vmatprep.subr.mxu0 0.0
    %945 = vmatpush1.msra.mxu0 0.0
    %946 = vmatprep.subr.mxu0 0.0
    %947 = vmatpush1.msra.mxu0 0.0
    %948 = vmatprep.subr.mxu0 0.0
    %949 = vmatpush1.msra.mxu0 0.0
    %950 = vmatprep.subr.mxu0 0.0
    %951 = vmatpush1.msra.mxu0 0.0
    %952 = vmatprep.subr.mxu0 0.0
    %953 = vmatpush1.msra.mxu0 0.0
    %954 = vmatprep.subr.mxu0 0.0
    %955 = vmatpush1.msra.mxu0 0.0
    %956 = vmatprep.subr.mxu0 0.0
    %957 = vmatpush1.msra.mxu0 0.0
    %958 = vmatprep.subr.mxu0 0.0
    %959 = vmatpush1.msra.mxu0 0.0
    %960 = vmatprep.subr.mxu0 0.0
    %961 = vmatpush1.msra.mxu0 0.0
    %962 = vmatprep.subr.mxu0 0.0
    %963 = vmatpush1.msra.mxu0 0.0
    %964 = vmatprep.subr.mxu0 0.0
    %965 = vmatpush1.msra.mxu0 0.0
    %966 = vmatprep.subr.mxu0 0.0
    %967 = vmatpush1.msra.mxu0 0.0
    %968 = vmatprep.subr.mxu0 0.0
    %969 = vmatpush1.msra.mxu0 0.0
    %970 = vmatprep.subr.mxu0 0.0
    %971 = vmatpush1.msra.mxu0 0.0
    %972 = vmatprep.subr.mxu0 0.0
    %973 = vmatpush1.msra.mxu0 0.0
    %974 = vmatprep.subr.mxu0 0.0
    %975 = vmatpush1.msra.mxu0 0.0
    %976 = vmatprep.subr.mxu0 0.0
    %977 = vmatpush1.msra.mxu0 0.0
    %978 = vmatprep.subr.mxu0 0.0
    %979 = vmatpush1.msra.mxu0 0.0
    %980 = vmatprep.subr.mxu0 0.0
    %981 = vmatpush1.msra.mxu0 0.0
    %982 = vmatprep.subr.mxu0 0.0
    %983 = vmatpush1.msra.mxu0 0.0
    %984 = vmatprep.subr.mxu0 0.0
    %985 = vmatpush1.msra.mxu0 0.0
    %986 = vmatprep.subr.mxu0 0.0
    %987 = vmatpush1.msra.mxu0 0.0
    %988 = vmatprep.subr.mxu0 0.0
    %989 = vmatpush1.msra.mxu0 0.0
    %990 = vmatprep.subr.mxu0 0.0
    %991 = vmatpush1.msra.mxu0 0.0
    %992 = vmatprep.subr.mxu0 0.0
    %993 = vmatpush1.msra.mxu0 0.0
    %994 = vmatprep.mubr.f32.mxu0 0.0
    %995 = vmatmul.mubr.f32.gmra.mrb[0].mxu0 %v928
    %v996 = vpop.f32.mrb[0].mxu0
    %v997 = vadd.f32 0.0, %v996
    %v998 = vpop.f32.mrb[0].mxu0
    %999 = vdwg.mxu0
    %v1000 = vadd.f32 %v854, %v925
    %v1001 = vadd.f32 %v855, %v997
    %v1002 = vxor.u32 %v1000, 2147483648
    %v1003 = vxor.u32 %v1001, 2147483648
    %v1004 = vmul.f32 %v1002, 1.442695
    %v1005 = vpow.pop %v1004
    %v1006 = vmul.f32 %v1003, 1.442695
    %v1007 = vpow.pop %v1006
    %v1008 = vadd.f32 %v1005, 1.0
    %v1009 = vadd.f32 %v1007, 1.0
    %v1010 = vrcp.pop %v1008
    %v1011 = vmul.f32 1.0, %v1010
    %v1012 = vrcp.pop %v1009
    %v1013 = vmul.f32 1.0, %v1012
    %v1014 = vtanh.pop %v1000
    %v1015 = vtanh.pop %v1001
    %v1016 = vmul.f32 %v1011, %v828
    %v1017 = vmul.f32 %v1013, %v829
    %1020 = vrot.lane.b32.xlu0 %v1014, 64
    %v1021 = vpop.permute.xlu0 %1020
    %1022 = vrot.lane.b32.xlu0 %v1015, 64
    %v1023 = vpop.permute.xlu0 %1022
    %v1026 = vmul.f32 %v1011, %v1021
    %v1027 = vmul.f32 %v1013, %v1023
    %1030 = vrot.lane.b32.xlu0 %v1026, 32
    %v1031 = vpop.permute.xlu0 %1030
    %1032 = vrot.lane.b32.xlu0 %v1027, 32
    %v1033 = vpop.permute.xlu0 %1032
    %v1036 = vadd.f32 %v1016, %v1031
    %v1037 = vadd.f32 %v1017, %v1033
    %v1038 = vtanh.pop %v1036
    %v1039 = vtanh.pop %v1037
    %1042 = vrot.lane.b32.xlu0 %v1038, 64
    %v1043 = vpop.permute.xlu0 %1042
    %1044 = vrot.lane.b32.xlu0 %v1039, 64
    %v1045 = vpop.permute.xlu0 %1044
    %v1048 = vmul.f32 %v1011, %v1043
    %v1049 = vmul.f32 %v1013, %v1045
    %1052 = vrot.lane.b32.xlu0 %v1048, 32
    %v1053 = vpop.permute.xlu0 %1052
    %1054 = vrot.lane.b32.xlu0 %v1049, 32
    %v1055 = vpop.permute.xlu0 %1054
    %s1058 = scalar_lea.vmem %s2, 32
    %1059 = vst.msk [vmem:[%s1058] sm:$0xf] %vm226, %v1053
    %1060 = vst.msk [vmem:[%s1058 + $0x4] sm:$0xf] %vm226, %v1055
    %s1061 = scalar_lea.vmem %s0, 40
    %v1062 = vld [vmem:[%s1061] sm:$0xf]
    %v1063 = vld [vmem:[%s1061 + $0x4] sm:$0xf]
    %v1064 = vsel %vm24, %v1053, 0
    %1066 = vmatprep.subr.mxu0 0.0
    %1067 = vmatpush1.msra.mxu0 %v14
    %1068 = vmatprep.subr.mxu0 0.0
    %1069 = vmatpush1.msra.mxu0 %v15
    %1070 = vmatprep.subr.mxu0 0.0
    %1071 = vmatpush1.msra.mxu0 %v16
    %1072 = vmatprep.subr.mxu0 0.0
    %1073 = vmatpush1.msra.mxu0 %v17
    %1074 = vmatprep.subr.mxu0 0.0
    %1075 = vmatpush1.msra.mxu0 0.0
    %1076 = vmatprep.subr.mxu0 0.0
    %1077 = vmatpush1.msra.mxu0 0.0
    %1078 = vmatprep.subr.mxu0 0.0
    %1079 = vmatpush1.msra.mxu0 0.0
    %1080 = vmatprep.subr.mxu0 0.0
    %1081 = vmatpush1.msra.mxu0 0.0
    %1082 = vmatprep.subr.mxu0 0.0
    %1083 = vmatpush1.msra.mxu0 0.0
    %1084 = vmatprep.subr.mxu0 0.0
    %1085 = vmatpush1.msra.mxu0 0.0
    %1086 = vmatprep.subr.mxu0 0.0
    %1087 = vmatpush1.msra.mxu0 0.0
    %1088 = vmatprep.subr.mxu0 0.0
    %1089 = vmatpush1.msra.mxu0 0.0
    %1090 = vmatprep.subr.mxu0 0.0
    %1091 = vmatpush1.msra.mxu0 0.0
    %1092 = vmatprep.subr.mxu0 0.0
    %1093 = vmatpush1.msra.mxu0 0.0
    %1094 = vmatprep.subr.mxu0 0.0
    %1095 = vmatpush1.msra.mxu0 0.0
    %1096 = vmatprep.subr.mxu0 0.0
    %1097 = vmatpush1.msra.mxu0 0.0
    %1098 = vmatprep.subr.mxu0 0.0
    %1099 = vmatpush1.msra.mxu0 0.0
    %1100 = vmatprep.subr.mxu0 0.0
    %1101 = vmatpush1.msra.mxu0 0.0
    %1102 = vmatprep.subr.mxu0 0.0
    %1103 = vmatpush1.msra.mxu0 0.0
    %1104 = vmatprep.subr.mxu0 0.0
    %1105 = vmatpush1.msra.mxu0 0.0
    %1106 = vmatprep.subr.mxu0 0.0
    %1107 = vmatpush1.msra.mxu0 0.0
    %1108 = vmatprep.subr.mxu0 0.0
    %1109 = vmatpush1.msra.mxu0 0.0
    %1110 = vmatprep.subr.mxu0 0.0
    %1111 = vmatpush1.msra.mxu0 0.0
    %1112 = vmatprep.subr.mxu0 0.0
    %1113 = vmatpush1.msra.mxu0 0.0
    %1114 = vmatprep.subr.mxu0 0.0
    %1115 = vmatpush1.msra.mxu0 0.0
    %1116 = vmatprep.subr.mxu0 0.0
    %1117 = vmatpush1.msra.mxu0 0.0
    %1118 = vmatprep.subr.mxu0 0.0
    %1119 = vmatpush1.msra.mxu0 0.0
    %1120 = vmatprep.subr.mxu0 0.0
    %1121 = vmatpush1.msra.mxu0 0.0
    %1122 = vmatprep.subr.mxu0 0.0
    %1123 = vmatpush1.msra.mxu0 0.0
    %1124 = vmatprep.subr.mxu0 0.0
    %1125 = vmatpush1.msra.mxu0 0.0
    %1126 = vmatprep.subr.mxu0 0.0
    %1127 = vmatpush1.msra.mxu0 0.0
    %1128 = vmatprep.subr.mxu0 0.0
    %1129 = vmatpush1.msra.mxu0 0.0
    %1130 = vmatprep.mubr.f32.mxu0 0.0
    %1131 = vmatmul.mubr.f32.gmra.mrb[0].mxu0 %v1064
    %v1132 = vpop.f32.mrb[0].mxu0
    %v1133 = vadd.f32 0.0, %v1132
    %v1134 = vpop.f32.mrb[0].mxu0
    %1135 = vdwg.mxu0
    %v1136 = vsel %vm24, %v1055, 0
    %1138 = vmatprep.subr.mxu0 0.0
    %1139 = vmatpush1.msra.mxu0 %v18
    %1140 = vmatprep.subr.mxu0 0.0
    %1141 = vmatpush1.msra.mxu0 %v19
    %1142 = vmatprep.subr.mxu0 0.0
    %1143 = vmatpush1.msra.mxu0 %v20
    %1144 = vmatprep.subr.mxu0 0.0
    %1145 = vmatpush1.msra.mxu0 %v21
    %1146 = vmatprep.subr.mxu0 0.0
    %1147 = vmatpush1.msra.mxu0 0.0
    %1148 = vmatprep.subr.mxu0 0.0
    %1149 = vmatpush1.msra.mxu0 0.0
    %1150 = vmatprep.subr.mxu0 0.0
    %1151 = vmatpush1.msra.mxu0 0.0
    %1152 = vmatprep.subr.mxu0 0.0
    %1153 = vmatpush1.msra.mxu0 0.0
    %1154 = vmatprep.subr.mxu0 0.0
    %1155 = vmatpush1.msra.mxu0 0.0
    %1156 = vmatprep.subr.mxu0 0.0
    %1157 = vmatpush1.msra.mxu0 0.0
    %1158 = vmatprep.subr.mxu0 0.0
    %1159 = vmatpush1.msra.mxu0 0.0
    %1160 = vmatprep.subr.mxu0 0.0
    %1161 = vmatpush1.msra.mxu0 0.0
    %1162 = vmatprep.subr.mxu0 0.0
    %1163 = vmatpush1.msra.mxu0 0.0
    %1164 = vmatprep.subr.mxu0 0.0
    %1165 = vmatpush1.msra.mxu0 0.0
    %1166 = vmatprep.subr.mxu0 0.0
    %1167 = vmatpush1.msra.mxu0 0.0
    %1168 = vmatprep.subr.mxu0 0.0
    %1169 = vmatpush1.msra.mxu0 0.0
    %1170 = vmatprep.subr.mxu0 0.0
    %1171 = vmatpush1.msra.mxu0 0.0
    %1172 = vmatprep.subr.mxu0 0.0
    %1173 = vmatpush1.msra.mxu0 0.0
    %1174 = vmatprep.subr.mxu0 0.0
    %1175 = vmatpush1.msra.mxu0 0.0
    %1176 = vmatprep.subr.mxu0 0.0
    %1177 = vmatpush1.msra.mxu0 0.0
    %1178 = vmatprep.subr.mxu0 0.0
    %1179 = vmatpush1.msra.mxu0 0.0
    %1180 = vmatprep.subr.mxu0 0.0
    %1181 = vmatpush1.msra.mxu0 0.0
    %1182 = vmatprep.subr.mxu0 0.0
    %1183 = vmatpush1.msra.mxu0 0.0
    %1184 = vmatprep.subr.mxu0 0.0
    %1185 = vmatpush1.msra.mxu0 0.0
    %1186 = vmatprep.subr.mxu0 0.0
    %1187 = vmatpush1.msra.mxu0 0.0
    %1188 = vmatprep.subr.mxu0 0.0
    %1189 = vmatpush1.msra.mxu0 0.0
    %1190 = vmatprep.subr.mxu0 0.0
    %1191 = vmatpush1.msra.mxu0 0.0
    %1192 = vmatprep.subr.mxu0 0.0
    %1193 = vmatpush1.msra.mxu0 0.0
    %1194 = vmatprep.subr.mxu0 0.0
    %1195 = vmatpush1.msra.mxu0 0.0
    %1196 = vmatprep.subr.mxu0 0.0
    %1197 = vmatpush1.msra.mxu0 0.0
    %1198 = vmatprep.subr.mxu0 0.0
    %1199 = vmatpush1.msra.mxu0 0.0
    %1200 = vmatprep.subr.mxu0 0.0
    %1201 = vmatpush1.msra.mxu0 0.0
    %1202 = vmatprep.mubr.f32.mxu0 0.0
    %1203 = vmatmul.mubr.f32.gmra.mrb[0].mxu0 %v1136
    %v1204 = vpop.f32.mrb[0].mxu0
    %v1205 = vadd.f32 0.0, %v1204
    %v1206 = vpop.f32.mrb[0].mxu0
    %1207 = vdwg.mxu0
    %v1208 = vadd.f32 %v1062, %v1133
    %v1209 = vadd.f32 %v1063, %v1205
    %v1210 = vxor.u32 %v1208, 2147483648
    %v1211 = vxor.u32 %v1209, 2147483648
    %v1212 = vmul.f32 %v1210, 1.442695
    %v1213 = vpow.pop %v1212
    %v1214 = vmul.f32 %v1211, 1.442695
    %v1215 = vpow.pop %v1214
    %v1216 = vadd.f32 %v1213, 1.0
    %v1217 = vadd.f32 %v1215, 1.0
    %v1218 = vrcp.pop %v1216
    %v1219 = vmul.f32 1.0, %v1218
    %v1220 = vrcp.pop %v1217
    %v1221 = vmul.f32 1.0, %v1220
    %v1222 = vtanh.pop %v1208
    %v1223 = vtanh.pop %v1209
    %v1224 = vmul.f32 %v1219, %v1036
    %v1225 = vmul.f32 %v1221, %v1037
    %1228 = vrot.lane.b32.xlu0 %v1222, 64
    %v1229 = vpop.permute.xlu0 %1228
    %1230 = vrot.lane.b32.xlu0 %v1223, 64
    %v1231 = vpop.permute.xlu0 %1230
    %v1234 = vmul.f32 %v1219, %v1229
    %v1235 = vmul.f32 %v1221, %v1231
    %1238 = vrot.lane.b32.xlu0 %v1234, 32
    %v1239 = vpop.permute.xlu0 %1238
    %1240 = vrot.lane.b32.xlu0 %v1235, 32
    %v1241 = vpop.permute.xlu0 %1240
    %v1244 = vadd.f32 %v1224, %v1239
    %v1245 = vadd.f32 %v1225, %v1241
    %v1246 = vtanh.pop %v1244
    %v1247 = vtanh.pop %v1245
    %1250 = vrot.lane.b32.xlu0 %v1246, 64
    %v1251 = vpop.permute.xlu0 %1250
    %1252 = vrot.lane.b32.xlu0 %v1247, 64
    %v1253 = vpop.permute.xlu0 %1252
    %v1256 = vmul.f32 %v1219, %v1251
    %v1257 = vmul.f32 %v1221, %v1253
    %1260 = vrot.lane.b32.xlu0 %v1256, 32
    %v1261 = vpop.permute.xlu0 %1260
    %1262 = vrot.lane.b32.xlu0 %v1257, 32
    %v1263 = vpop.permute.xlu0 %1262
    %s1266 = scalar_lea.vmem %s2, 40
    %1267 = vst.msk [vmem:[%s1266] sm:$0xf] %vm226, %v1261
    %1268 = vst.msk [vmem:[%s1266 + $0x4] sm:$0xf] %vm226, %v1263
    %s1269 = scalar_lea.vmem %s0, 48
    %v1270 = vld [vmem:[%s1269] sm:$0xf]
    %v1271 = vld [vmem:[%s1269 + $0x4] sm:$0xf]
    %v1272 = vsel %vm24, %v1261, 0
    %1274 = vmatprep.subr.mxu0 0.0
    %1275 = vmatpush1.msra.mxu0 %v14
    %1276 = vmatprep.subr.mxu0 0.0
    %1277 = vmatpush1.msra.mxu0 %v15
    %1278 = vmatprep.subr.mxu0 0.0
    %1279 = vmatpush1.msra.mxu0 %v16
    %1280 = vmatprep.subr.mxu0 0.0
    %1281 = vmatpush1.msra.mxu0 %v17
    %1282 = vmatprep.subr.mxu0 0.0
    %1283 = vmatpush1.msra.mxu0 0.0
    %1284 = vmatprep.subr.mxu0 0.0
    %1285 = vmatpush1.msra.mxu0 0.0
    %1286 = vmatprep.subr.mxu0 0.0
    %1287 = vmatpush1.msra.mxu0 0.0
    %1288 = vmatprep.subr.mxu0 0.0
    %1289 = vmatpush1.msra.mxu0 0.0
    %1290 = vmatprep.subr.mxu0 0.0
    %1291 = vmatpush1.msra.mxu0 0.0
    %1292 = vmatprep.subr.mxu0 0.0
    %1293 = vmatpush1.msra.mxu0 0.0
    %1294 = vmatprep.subr.mxu0 0.0
    %1295 = vmatpush1.msra.mxu0 0.0
    %1296 = vmatprep.subr.mxu0 0.0
    %1297 = vmatpush1.msra.mxu0 0.0
    %1298 = vmatprep.subr.mxu0 0.0
    %1299 = vmatpush1.msra.mxu0 0.0
    %1300 = vmatprep.subr.mxu0 0.0
    %1301 = vmatpush1.msra.mxu0 0.0
    %1302 = vmatprep.subr.mxu0 0.0
    %1303 = vmatpush1.msra.mxu0 0.0
    %1304 = vmatprep.subr.mxu0 0.0
    %1305 = vmatpush1.msra.mxu0 0.0
    %1306 = vmatprep.subr.mxu0 0.0
    %1307 = vmatpush1.msra.mxu0 0.0
    %1308 = vmatprep.subr.mxu0 0.0
    %1309 = vmatpush1.msra.mxu0 0.0
    %1310 = vmatprep.subr.mxu0 0.0
    %1311 = vmatpush1.msra.mxu0 0.0
    %1312 = vmatprep.subr.mxu0 0.0
    %1313 = vmatpush1.msra.mxu0 0.0
    %1314 = vmatprep.subr.mxu0 0.0
    %1315 = vmatpush1.msra.mxu0 0.0
    %1316 = vmatprep.subr.mxu0 0.0
    %1317 = vmatpush1.msra.mxu0 0.0
    %1318 = vmatprep.subr.mxu0 0.0
    %1319 = vmatpush1.msra.mxu0 0.0
    %1320 = vmatprep.subr.mxu0 0.0
    %1321 = vmatpush1.msra.mxu0 0.0
    %1322 = vmatprep.subr.mxu0 0.0
    %1323 = vmatpush1.msra.mxu0 0.0
    %1324 = vmatprep.subr.mxu0 0.0
    %1325 = vmatpush1.msra.mxu0 0.0
    %1326 = vmatprep.subr.mxu0 0.0
    %1327 = vmatpush1.msra.mxu0 0.0
    %1328 = vmatprep.subr.mxu0 0.0
    %1329 = vmatpush1.msra.mxu0 0.0
    %1330 = vmatprep.subr.mxu0 0.0
    %1331 = vmatpush1.msra.mxu0 0.0
    %1332 = vmatprep.subr.mxu0 0.0
    %1333 = vmatpush1.msra.mxu0 0.0
    %1334 = vmatprep.subr.mxu0 0.0
    %1335 = vmatpush1.msra.mxu0 0.0
    %1336 = vmatprep.subr.mxu0 0.0
    %1337 = vmatpush1.msra.mxu0 0.0
    %1338 = vmatprep.mubr.f32.mxu0 0.0
    %1339 = vmatmul.mubr.f32.gmra.mrb[0].mxu0 %v1272
    %v1340 = vpop.f32.mrb[0].mxu0
    %v1341 = vadd.f32 0.0, %v1340
    %v1342 = vpop.f32.mrb[0].mxu0
    %1343 = vdwg.mxu0
    %v1344 = vsel %vm24, %v1263, 0
    %1346 = vmatprep.subr.mxu0 0.0
    %1347 = vmatpush1.msra.mxu0 %v18
    %1348 = vmatprep.subr.mxu0 0.0
    %1349 = vmatpush1.msra.mxu0 %v19
    %1350 = vmatprep.subr.mxu0 0.0
    %1351 = vmatpush1.msra.mxu0 %v20
    %1352 = vmatprep.subr.mxu0 0.0
    %1353 = vmatpush1.msra.mxu0 %v21
    %1354 = vmatprep.subr.mxu0 0.0
    %1355 = vmatpush1.msra.mxu0 0.0
    %1356 = vmatprep.subr.mxu0 0.0
    %1357 = vmatpush1.msra.mxu0 0.0
    %1358 = vmatprep.subr.mxu0 0.0
    %1359 = vmatpush1.msra.mxu0 0.0
    %1360 = vmatprep.subr.mxu0 0.0
    %1361 = vmatpush1.msra.mxu0 0.0
    %1362 = vmatprep.subr.mxu0 0.0
    %1363 = vmatpush1.msra.mxu0 0.0
    %1364 = vmatprep.subr.mxu0 0.0
    %1365 = vmatpush1.msra.mxu0 0.0
    %1366 = vmatprep.subr.mxu0 0.0
    %1367 = vmatpush1.msra.mxu0 0.0
    %1368 = vmatprep.subr.mxu0 0.0
    %1369 = vmatpush1.msra.mxu0 0.0
    %1370 = vmatprep.subr.mxu0 0.0
    %1371 = vmatpush1.msra.mxu0 0.0
    %1372 = vmatprep.subr.mxu0 0.0
    %1373 = vmatpush1.msra.mxu0 0.0
    %1374 = vmatprep.subr.mxu0 0.0
    %1375 = vmatpush1.msra.mxu0 0.0
    %1376 = vmatprep.subr.mxu0 0.0
    %1377 = vmatpush1.msra.mxu0 0.0
    %1378 = vmatprep.subr.mxu0 0.0
    %1379 = vmatpush1.msra.mxu0 0.0
    %1380 = vmatprep.subr.mxu0 0.0
    %1381 = vmatpush1.msra.mxu0 0.0
    %1382 = vmatprep.subr.mxu0 0.0
    %1383 = vmatpush1.msra.mxu0 0.0
    %1384 = vmatprep.subr.mxu0 0.0
    %1385 = vmatpush1.msra.mxu0 0.0
    %1386 = vmatprep.subr.mxu0 0.0
    %1387 = vmatpush1.msra.mxu0 0.0
    %1388 = vmatprep.subr.mxu0 0.0
    %1389 = vmatpush1.msra.mxu0 0.0
    %1390 = vmatprep.subr.mxu0 0.0
    %1391 = vmatpush1.msra.mxu0 0.0
    %1392 = vmatprep.subr.mxu0 0.0
    %1393 = vmatpush1.msra.mxu0 0.0
    %1394 = vmatprep.subr.mxu0 0.0
    %1395 = vmatpush1.msra.mxu0 0.0
    %1396 = vmatprep.subr.mxu0 0.0
    %1397 = vmatpush1.msra.mxu0 0.0
    %1398 = vmatprep.subr.mxu0 0.0
    %1399 = vmatpush1.msra.mxu0 0.0
    %1400 = vmatprep.subr.mxu0 0.0
    %1401 = vmatpush1.msra.mxu0 0.0
    %1402 = vmatprep.subr.mxu0 0.0
    %1403 = vmatpush1.msra.mxu0 0.0
    %1404 = vmatprep.subr.mxu0 0.0
    %1405 = vmatpush1.msra.mxu0 0.0
    %1406 = vmatprep.subr.mxu0 0.0
    %1407 = vmatpush1.msra.mxu0 0.0
    %1408 = vmatprep.subr.mxu0 0.0
    %1409 = vmatpush1.msra.mxu0 0.0
    %1410 = vmatprep.mubr.f32.mxu0 0.0
    %1411 = vmatmul.mubr.f32.gmra.mrb[0].mxu0 %v1344
    %v1412 = vpop.f32.mrb[0].mxu0
    %v1413 = vadd.f32 0.0, %v1412
    %v1414 = vpop.f32.mrb[0].mxu0
    %1415 = vdwg.mxu0
    %v1416 = vadd.f32 %v1270, %v1341
    %v1417 = vadd.f32 %v1271, %v1413
    %v1418 = vxor.u32 %v1416, 2147483648
    %v1419 = vxor.u32 %v1417, 2147483648
    %v1420 = vmul.f32 %v1418, 1.442695
    %v1421 = vpow.pop %v1420
    %v1422 = vmul.f32 %v1419, 1.442695
    %v1423 = vpow.pop %v1422
    %v1424 = vadd.f32 %v1421, 1.0
    %v1425 = vadd.f32 %v1423, 1.0
    %v1426 = vrcp.pop %v1424
    %v1427 = vmul.f32 1.0, %v1426
    %v1428 = vrcp.pop %v1425
    %v1429 = vmul.f32 1.0, %v1428
    %v1430 = vtanh.pop %v1416
    %v1431 = vtanh.pop %v1417
    %v1432 = vmul.f32 %v1427, %v1244
    %v1433 = vmul.f32 %v1429, %v1245
    %1436 = vrot.lane.b32.xlu0 %v1430, 64
    %v1437 = vpop.permute.xlu0 %1436
    %1438 = vrot.lane.b32.xlu0 %v1431, 64
    %v1439 = vpop.permute.xlu0 %1438
    %v1442 = vmul.f32 %v1427, %v1437
    %v1443 = vmul.f32 %v1429, %v1439
    %1446 = vrot.lane.b32.xlu0 %v1442, 32
    %v1447 = vpop.permute.xlu0 %1446
    %1448 = vrot.lane.b32.xlu0 %v1443, 32
    %v1449 = vpop.permute.xlu0 %1448
    %v1452 = vadd.f32 %v1432, %v1447
    %v1453 = vadd.f32 %v1433, %v1449
    %v1454 = vtanh.pop %v1452
    %v1455 = vtanh.pop %v1453
    %1458 = vrot.lane.b32.xlu0 %v1454, 64
    %v1459 = vpop.permute.xlu0 %1458
    %1460 = vrot.lane.b32.xlu0 %v1455, 64
    %v1461 = vpop.permute.xlu0 %1460
    %v1464 = vmul.f32 %v1427, %v1459
    %v1465 = vmul.f32 %v1429, %v1461
    %1468 = vrot.lane.b32.xlu0 %v1464, 32
    %v1469 = vpop.permute.xlu0 %1468
    %1470 = vrot.lane.b32.xlu0 %v1465, 32
    %v1471 = vpop.permute.xlu0 %1470
    %s1474 = scalar_lea.vmem %s2, 48
    %1475 = vst.msk [vmem:[%s1474] sm:$0xf] %vm226, %v1469
    %1476 = vst.msk [vmem:[%s1474 + $0x4] sm:$0xf] %vm226, %v1471
    %s1477 = scalar_lea.vmem %s0, 56
    %v1478 = vld [vmem:[%s1477] sm:$0xf]
    %v1479 = vld [vmem:[%s1477 + $0x4] sm:$0xf]
    %v1480 = vsel %vm24, %v1469, 0
    %1482 = vmatprep.subr.mxu0 0.0
    %1483 = vmatpush1.msra.mxu0 %v14
    %1484 = vmatprep.subr.mxu0 0.0
    %1485 = vmatpush1.msra.mxu0 %v15
    %1486 = vmatprep.subr.mxu0 0.0
    %1487 = vmatpush1.msra.mxu0 %v16
    %1488 = vmatprep.subr.mxu0 0.0
    %1489 = vmatpush1.msra.mxu0 %v17
    %1490 = vmatprep.subr.mxu0 0.0
    %1491 = vmatpush1.msra.mxu0 0.0
    %1492 = vmatprep.subr.mxu0 0.0
    %1493 = vmatpush1.msra.mxu0 0.0
    %1494 = vmatprep.subr.mxu0 0.0
    %1495 = vmatpush1.msra.mxu0 0.0
    %1496 = vmatprep.subr.mxu0 0.0
    %1497 = vmatpush1.msra.mxu0 0.0
    %1498 = vmatprep.subr.mxu0 0.0
    %1499 = vmatpush1.msra.mxu0 0.0
    %1500 = vmatprep.subr.mxu0 0.0
    %1501 = vmatpush1.msra.mxu0 0.0
    %1502 = vmatprep.subr.mxu0 0.0
    %1503 = vmatpush1.msra.mxu0 0.0
    %1504 = vmatprep.subr.mxu0 0.0
    %1505 = vmatpush1.msra.mxu0 0.0
    %1506 = vmatprep.subr.mxu0 0.0
    %1507 = vmatpush1.msra.mxu0 0.0
    %1508 = vmatprep.subr.mxu0 0.0
    %1509 = vmatpush1.msra.mxu0 0.0
    %1510 = vmatprep.subr.mxu0 0.0
    %1511 = vmatpush1.msra.mxu0 0.0
    %1512 = vmatprep.subr.mxu0 0.0
    %1513 = vmatpush1.msra.mxu0 0.0
    %1514 = vmatprep.subr.mxu0 0.0
    %1515 = vmatpush1.msra.mxu0 0.0
    %1516 = vmatprep.subr.mxu0 0.0
    %1517 = vmatpush1.msra.mxu0 0.0
    %1518 = vmatprep.subr.mxu0 0.0
    %1519 = vmatpush1.msra.mxu0 0.0
    %1520 = vmatprep.subr.mxu0 0.0
    %1521 = vmatpush1.msra.mxu0 0.0
    %1522 = vmatprep.subr.mxu0 0.0
    %1523 = vmatpush1.msra.mxu0 0.0
    %1524 = vmatprep.subr.mxu0 0.0
    %1525 = vmatpush1.msra.mxu0 0.0
    %1526 = vmatprep.subr.mxu0 0.0
    %1527 = vmatpush1.msra.mxu0 0.0
    %1528 = vmatprep.subr.mxu0 0.0
    %1529 = vmatpush1.msra.mxu0 0.0
    %1530 = vmatprep.subr.mxu0 0.0
    %1531 = vmatpush1.msra.mxu0 0.0
    %1532 = vmatprep.subr.mxu0 0.0
    %1533 = vmatpush1.msra.mxu0 0.0
    %1534 = vmatprep.subr.mxu0 0.0
    %1535 = vmatpush1.msra.mxu0 0.0
    %1536 = vmatprep.subr.mxu0 0.0
    %1537 = vmatpush1.msra.mxu0 0.0
    %1538 = vmatprep.subr.mxu0 0.0
    %1539 = vmatpush1.msra.mxu0 0.0
    %1540 = vmatprep.subr.mxu0 0.0
    %1541 = vmatpush1.msra.mxu0 0.0
    %1542 = vmatprep.subr.mxu0 0.0
    %1543 = vmatpush1.msra.mxu0 0.0
    %1544 = vmatprep.subr.mxu0 0.0
    %1545 = vmatpush1.msra.mxu0 0.0
    %1546 = vmatprep.mubr.f32.mxu0 0.0
    %1547 = vmatmul.mubr.f32.gmra.mrb[0].mxu0 %v1480
    %v1548 = vpop.f32.mrb[0].mxu0
    %v1549 = vadd.f32 0.0, %v1548
    %v1550 = vpop.f32.mrb[0].mxu0
    %1551 = vdwg.mxu0
    %v1552 = vsel %vm24, %v1471, 0
    %1554 = vmatprep.subr.mxu0 0.0
    %1555 = vmatpush1.msra.mxu0 %v18
    %1556 = vmatprep.subr.mxu0 0.0
    %1557 = vmatpush1.msra.mxu0 %v19
    %1558 = vmatprep.subr.mxu0 0.0
    %1559 = vmatpush1.msra.mxu0 %v20
    %1560 = vmatprep.subr.mxu0 0.0
    %1561 = vmatpush1.msra.mxu0 %v21
    %1562 = vmatprep.subr.mxu0 0.0
    %1563 = vmatpush1.msra.mxu0 0.0
    %1564 = vmatprep.subr.mxu0 0.0
    %1565 = vmatpush1.msra.mxu0 0.0
    %1566 = vmatprep.subr.mxu0 0.0
    %1567 = vmatpush1.msra.mxu0 0.0
    %1568 = vmatprep.subr.mxu0 0.0
    %1569 = vmatpush1.msra.mxu0 0.0
    %1570 = vmatprep.subr.mxu0 0.0
    %1571 = vmatpush1.msra.mxu0 0.0
    %1572 = vmatprep.subr.mxu0 0.0
    %1573 = vmatpush1.msra.mxu0 0.0
    %1574 = vmatprep.subr.mxu0 0.0
    %1575 = vmatpush1.msra.mxu0 0.0
    %1576 = vmatprep.subr.mxu0 0.0
    %1577 = vmatpush1.msra.mxu0 0.0
    %1578 = vmatprep.subr.mxu0 0.0
    %1579 = vmatpush1.msra.mxu0 0.0
    %1580 = vmatprep.subr.mxu0 0.0
    %1581 = vmatpush1.msra.mxu0 0.0
    %1582 = vmatprep.subr.mxu0 0.0
    %1583 = vmatpush1.msra.mxu0 0.0
    %1584 = vmatprep.subr.mxu0 0.0
    %1585 = vmatpush1.msra.mxu0 0.0
    %1586 = vmatprep.subr.mxu0 0.0
    %1587 = vmatpush1.msra.mxu0 0.0
    %1588 = vmatprep.subr.mxu0 0.0
    %1589 = vmatpush1.msra.mxu0 0.0
    %1590 = vmatprep.subr.mxu0 0.0
    %1591 = vmatpush1.msra.mxu0 0.0
    %1592 = vmatprep.subr.mxu0 0.0
    %1593 = vmatpush1.msra.mxu0 0.0
    %1594 = vmatprep.subr.mxu0 0.0
    %1595 = vmatpush1.msra.mxu0 0.0
    %1596 = vmatprep.subr.mxu0 0.0
    %1597 = vmatpush1.msra.mxu0 0.0
    %1598 = vmatprep.subr.mxu0 0.0
    %1599 = vmatpush1.msra.mxu0 0.0
    %1600 = vmatprep.subr.mxu0 0.0
    %1601 = vmatpush1.msra.mxu0 0.0
    %1602 = vmatprep.subr.mxu0 0.0
    %1603 = vmatpush1.msra.mxu0 0.0
    %1604 = vmatprep.subr.mxu0 0.0
    %1605 = vmatpush1.msra.mxu0 0.0
    %1606 = vmatprep.subr.mxu0 0.0
    %1607 = vmatpush1.msra.mxu0 0.0
    %1608 = vmatprep.subr.mxu0 0.0
    %1609 = vmatpush1.msra.mxu0 0.0
    %1610 = vmatprep.subr.mxu0 0.0
    %1611 = vmatpush1.msra.mxu0 0.0
    %1612 = vmatprep.subr.mxu0 0.0
    %1613 = vmatpush1.msra.mxu0 0.0
    %1614 = vmatprep.subr.mxu0 0.0
    %1615 = vmatpush1.msra.mxu0 0.0
    %1616 = vmatprep.subr.mxu0 0.0
    %1617 = vmatpush1.msra.mxu0 0.0
    %1618 = vmatprep.mubr.f32.mxu0 0.0
    %1619 = vmatmul.mubr.f32.gmra.mrb[0].mxu0 %v1552
    %v1620 = vpop.f32.mrb[0].mxu0
    %v1621 = vadd.f32 0.0, %v1620
    %v1622 = vpop.f32.mrb[0].mxu0
    %1623 = vdwg.mxu0
    %v1624 = vadd.f32 %v1478, %v1549
    %v1625 = vadd.f32 %v1479, %v1621
    %v1626 = vxor.u32 %v1624, 2147483648
    %v1627 = vxor.u32 %v1625, 2147483648
    %v1628 = vmul.f32 %v1626, 1.442695
    %v1629 = vpow.pop %v1628
    %v1630 = vmul.f32 %v1627, 1.442695
    %v1631 = vpow.pop %v1630
    %v1632 = vadd.f32 %v1629, 1.0
    %v1633 = vadd.f32 %v1631, 1.0
    %v1634 = vrcp.pop %v1632
    %v1635 = vmul.f32 1.0, %v1634
    %v1636 = vrcp.pop %v1633
    %v1637 = vmul.f32 1.0, %v1636
    %v1638 = vtanh.pop %v1624
    %v1639 = vtanh.pop %v1625
    %v1640 = vmul.f32 %v1635, %v1452
    %v1641 = vmul.f32 %v1637, %v1453
    %1644 = vrot.lane.b32.xlu0 %v1638, 64
    %v1645 = vpop.permute.xlu0 %1644
    %1646 = vrot.lane.b32.xlu0 %v1639, 64
    %v1647 = vpop.permute.xlu0 %1646
    %v1650 = vmul.f32 %v1635, %v1645
    %v1651 = vmul.f32 %v1637, %v1647
    %1654 = vrot.lane.b32.xlu0 %v1650, 32
    %v1655 = vpop.permute.xlu0 %1654
    %1656 = vrot.lane.b32.xlu0 %v1651, 32
    %v1657 = vpop.permute.xlu0 %1656
    %v1660 = vadd.f32 %v1640, %v1655
    %v1661 = vadd.f32 %v1641, %v1657
    %v1662 = vtanh.pop %v1660
    %v1663 = vtanh.pop %v1661
    %1666 = vrot.lane.b32.xlu0 %v1662, 64
    %v1667 = vpop.permute.xlu0 %1666
    %1668 = vrot.lane.b32.xlu0 %v1663, 64
    %v1669 = vpop.permute.xlu0 %1668
    %v1672 = vmul.f32 %v1635, %v1667
    %v1673 = vmul.f32 %v1637, %v1669
    %1676 = vrot.lane.b32.xlu0 %v1672, 32
    %v1677 = vpop.permute.xlu0 %1676
    %1678 = vrot.lane.b32.xlu0 %v1673, 32
    %v1679 = vpop.permute.xlu0 %1678
    %s1682 = scalar_lea.vmem %s2, 56
    %1683 = vst.msk [vmem:[%s1682] sm:$0xf] %vm226, %v1677
    %1684 = vst.msk [vmem:[%s1682 + $0x4] sm:$0xf] %vm226, %v1679
    %1685 = vst.msk [vmem:[#allocation2] sm:$0xf] %vm226, %v1677
    %1686 = vst.msk [vmem:[#allocation2 + $0x4] sm:$0xf] %vm226, %v1679
    // Predicated region
    $region10: #{rnn_model_forward.2} parent=1 // pred_check
      _
    $region11: #{rnn_model_forward.2} parent=1 // pred_check_branch
      %1688 = sbr.rel (0) target = $region13
    $region12: #{rnn_model_forward.2} parent=1 // pred_region
      _
    $region13: #{rnn_model_forward.2} parent=1 // pred_fallthru
      _
    // Predicated region
    $region14: #{rnn_model_forward.2} parent=1 // pred_check
      _
    $region15: #{rnn_model_forward.2} parent=1 // pred_check_branch
      %1690 = sbr.rel (0) target = $region17
    $region16: #{rnn_model_forward.2} parent=1 // pred_region
      %s1692 = ssub.s32 128, 128
      %1693 = vsyncadd [#allocation3], %s1692
      %s1694 = sshll.u32 [#allocation2], 4
      %s1695 = int_to_ptr.vmem [resolvable:$true] %s1694
      %1700 = dma.vmem_to_hbm [thread:$0]  %s1695, 128, %s3, [#allocation3], 64, 64, 4
    $region17: #{rnn_model_forward.2} parent=1 // pred_fallthru
      _
    // Predicated region
    $region18: #{rnn_model_forward.2} parent=1 // pred_check
      _
    $region19: #{rnn_model_forward.2} parent=1 // pred_check_branch
      %1702 = sbr.rel (0) target = $region21
    $region20: #{rnn_model_forward.2} parent=1 // pred_region
      _
    $region21: #{rnn_model_forward.2} parent=1 // pred_fallthru
      _
    // Predicated region
    $region22: #{rnn_model_forward.2} parent=1 // pred_check
      _
    $region23: #{rnn_model_forward.2} parent=1 // pred_check_branch
      %1704 = sbr.rel (0) target = $region25
    $region24: #{rnn_model_forward.2} parent=1 // pred_region
      %1705 = dma.done [#allocation3], 128
    $region25: #{rnn_model_forward.2} parent=1 // pred_fallthru
      _
    %1706 = vsyncpa [#allocation3], 1

</llo_original>
